<compile_context>
chip_gen: v7x
topology: tpu7x:2x2x1
jax: 0.10.0
libtpu: 0.0.40
codegen_flags: <defaults>
</compile_context>

<pallas_src>
import functools

import jax
import jax.numpy as jnp
from jax.experimental import pallas as pl
from jax.experimental.pallas import tpu as pltpu


def _fused_kernel(x_ref, w_ref, b_ref, res_ref, g_ref, beta_ref, o_ref,
                  *, eps, inv_h):
    # x_ref:   (TR, H_in)   input rows (native dtype)
    # w_ref:   (H_in, H_out) weight, stored (in, out) so y = x @ W
    # b_ref:   (1, H_out)   bias
    # res_ref: (TR, H_out)  residual (x28)
    # g_ref:   (1, H_out)   layernorm gamma
    # beta_ref:(1, H_out)   layernorm beta

    # Linear on the MXU in the native input dtype; accumulate in f32.
    y = jnp.dot(x_ref[...], w_ref[...], preferred_element_type=jnp.float32)

    # Hoisted f32 views of the grid-invariant (1, H) vectors (cast once).
    b = b_ref[...].astype(jnp.float32)
    g = g_ref[...].astype(jnp.float32)
    beta = beta_ref[...].astype(jnp.float32)

    # Bias + Dropout(p=0.1, eval mode -> identity) + residual add, in f32.
    # TODO(synk): training-mode dropout (prng mask + 1/(1-p) scale) not emitted.
    z = y + b + res_ref[...].astype(jnp.float32)

    # LayerNorm over the last axis, eps=1e-12, elementwise affine.
    # sum * (1/H) instead of mean: divide-by-H becomes a constant multiply.
    mean = jnp.sum(z, axis=-1, keepdims=True) * inv_h
    zc = z - mean
    var = jnp.sum(zc * zc, axis=-1, keepdims=True) * inv_h
    zn = zc * jax.lax.rsqrt(var + eps)
    o_ref[...] = (zn * g + beta).astype(o_ref.dtype)


def _choose_tile_rows(n, target=256, cap=1024):
    """Pick a row tile: a divisor of n, multiple of 8, close to `target`,
    strictly smaller than n when possible so the grid has >= 2 steps."""
    best = None
    for t in range(8, min(n - 1, cap) + 1, 8):
        if n % t == 0 and (best is None or abs(t - target) < abs(best - target)):
            best = t
    return best if best is not None else n


def fused_linear_add_layernorm(x2d, w, b, res2d, gamma, beta,
                               *, eps=1e-12, tile_rows=None):
    """x2d: (N, H_in), w: (H_in, H_out) (pre-transposed), res2d: (N, H_out)."""
    n, h_in = x2d.shape
    h_out = w.shape[1]
    if tile_rows is None:
        tile_rows = _choose_tile_rows(n)
    assert n % tile_rows == 0
    assert tile_rows % 8 == 0 or tile_rows == n
    # Lane-dense output: H should be a multiple of 128 for production shapes.
    # (BERT H=768 satisfies this; arbitrary H still works but pays masked stores.)

    b2 = b.reshape(1, h_out)
    g2 = gamma.reshape(1, h_out)
    be2 = beta.reshape(1, h_out)

    grid = (n // tile_rows,)
    kernel = functools.partial(_fused_kernel, eps=eps, inv_h=1.0 / h_out)

    # --- explicit VMEM budget (v7x has 64 MiB physical / 32 MiB scoped default) ---
    itemsize = jnp.dtype(x2d.dtype).itemsize
    w_bytes = h_in * h_out * jnp.dtype(w.dtype).itemsize          # resident weight
    stream_bytes = 2 * tile_rows * (h_in + 2 * h_out) * itemsize  # x/res/out, double-buffered
    vec_bytes = 6 * h_out * 4                                     # bias/gamma/beta (+f32 copies)
    tmp_bytes = 3 * tile_rows * h_out * 4                         # f32 temporaries in-kernel
    need = w_bytes + stream_bytes + vec_bytes + tmp_bytes
    vmem_limit = min(max(2 * need, 16 << 20), 48 << 20)

    # --- cost estimate for the XLA scheduler ---
    cost = pl.CostEstimate(
        flops=2 * n * h_in * h_out + 10 * n * h_out,
        transcendentals=n,  # one rsqrt per row
        bytes_accessed=(n * h_in + h_in * h_out + 2 * n * h_out + 3 * h_out)
        * itemsize,
    )

    return pl.pallas_call(
        kernel,
        out_shape=jax.ShapeDtypeStruct((n, h_out), x2d.dtype),
        grid_spec=pltpu.PrefetchScalarGridSpec(
            num_scalar_prefetch=0,
            grid=grid,
            in_specs=[
                pl.BlockSpec((tile_rows, h_in), lambda i: (i, 0)),   # x (streamed)
                pl.BlockSpec((h_in, h_out), lambda i: (0, 0)),       # W (resident)
                pl.BlockSpec((1, h_out), lambda i: (0, 0)),          # bias
                pl.BlockSpec((tile_rows, h_out), lambda i: (i, 0)),  # residual (streamed)
                pl.BlockSpec((1, h_out), lambda i: (0, 0)),          # gamma
                pl.BlockSpec((1, h_out), lambda i: (0, 0)),          # beta
            ],
            out_specs=pl.BlockSpec((tile_rows, h_out), lambda i: (i, 0)),
        ),
        compiler_params=pltpu.CompilerParams(
            dimension_semantics=("parallel",),
            vmem_limit_bytes=int(vmem_limit)),
        cost_estimate=cost,
    )(x2d, w, b2, res2d, g2, be2)


def module_forward(x56, x59, x28, params):
    """Mirrors M.forward: view -> linear -> dropout(eval) -> add -> layernorm."""
    x60 = x56.reshape(x59)                       # view
    B, S, H = x60.shape
    x2d = x60.reshape(B * S, H)
    res2d = x28.reshape(B * S, H)
    out2d = fused_linear_add_layernorm(
        x2d, params["w_t"], params["b"], res2d,
        params["gamma"], params["beta"], eps=1e-12)
    return out2d.reshape(B, S, H)


if __name__ == "__main__":
    # Shapes consistent with the module: x56 (1, 384, 12, 64), hidden = 768.
    B, S, NH, HD = 1, 384, 12, 64
    H = NH * HD  # 768 (lane-dense: multiple of 128)

    key = jax.random.PRNGKey(0)
    k1, k2, k3, k4 = jax.random.split(key, 4)

    x56 = jax.random.normal(k1, (B, S, NH, HD), dtype=jnp.float32)
    x28 = jax.random.normal(k2, (B, S, H), dtype=jnp.float32)
    x59 = (B, S, H)

    # Synthetic parameters (PyTorch Linear weight is (out, in); stored here
    # pre-transposed as (in, out)).
    w = jax.random.normal(k3, (H, H), dtype=jnp.float32) * (1.0 / jnp.sqrt(H))
    b = jax.random.normal(k4, (H,), dtype=jnp.float32) * 0.01
    gamma = jnp.ones((H,), dtype=jnp.float32)
    beta = jnp.zeros((H,), dtype=jnp.float32)
    params = {"w_t": w, "b": b, "gamma": gamma, "beta": beta}

    out = module_forward(x56, x59, x28, params)
    out = jax.block_until_ready(out)

    # Reference check in plain JAX (high-precision matmul to match f32 MXU acc).
    x60 = x56.reshape(x59)
    y_ref = jnp.einsum("bsh,ho->bso", x60, w,
                       precision=jax.lax.Precision.HIGHEST) + b
    z_ref = y_ref + x28
    mean = jnp.mean(z_ref, axis=-1, keepdims=True)
    var = jnp.mean((z_ref - mean) ** 2, axis=-1, keepdims=True)
    ref = (z_ref - mean) * jax.lax.rsqrt(var + 1e-12) * gamma + beta

    assert out.shape == (B, S, H)
    assert jnp.allclose(out, ref, atol=5e-3, rtol=5e-3), \
        float(jnp.max(jnp.abs(out - ref)))
    print("KERNEL_OK")
</pallas_src>

<mosaic_0001>
module attributes {stable_mosaic.version = 11 : i64} {
  func.func @_fused_kernel(%arg0: i32, %arg1: memref<192x768xf32, #tpu.memory_space<vmem>>, %arg2: memref<768x768xf32, #tpu.memory_space<vmem>>, %arg3: memref<1x768xf32, #tpu.memory_space<vmem>>, %arg4: memref<192x768xf32, #tpu.memory_space<vmem>>, %arg5: memref<1x768xf32, #tpu.memory_space<vmem>>, %arg6: memref<1x768xf32, #tpu.memory_space<vmem>>, %arg7: memref<192x768xf32, #tpu.memory_space<vmem>>) attributes {dimension_semantics = [#tpu.dimension_semantics<parallel>], iteration_bounds = array<i64: 2>, scalar_prefetch = 0 : i64, scratch_operands = 0 : i64, tpu.core_type = #tpu.core_type<tc>, window_params = [{transform_indices = @transform_0, window_bounds = array<i64: 192, 768>}, {pipeline_mode = #tpu.pipeline_mode<synchronous>, transform_indices = @transform_1, window_bounds = array<i64: 768, 768>}, {pipeline_mode = #tpu.pipeline_mode<synchronous>, transform_indices = @transform_2, window_bounds = array<i64: 1, 768>}, {transform_indices = @transform_3, window_bounds = array<i64: 192, 768>}, {pipeline_mode = #tpu.pipeline_mode<synchronous>, transform_indices = @transform_4, window_bounds = array<i64: 1, 768>}, {pipeline_mode = #tpu.pipeline_mode<synchronous>, transform_indices = @transform_5, window_bounds = array<i64: 1, 768>}, {transform_indices = @transform_6, window_bounds = array<i64: 192, 768>}]} {
    %c0 = arith.constant 0 : index
    %c0_0 = arith.constant 0 : index
    %0 = vector.load %arg1[%c0, %c0_0] : memref<192x768xf32, #tpu.memory_space<vmem>>, vector<192x768xf32>
    %c0_1 = arith.constant 0 : index
    %c0_2 = arith.constant 0 : index
    %1 = vector.load %arg2[%c0_1, %c0_2] : memref<768x768xf32, #tpu.memory_space<vmem>>, vector<768x768xf32>
    %cst = arith.constant dense<0.000000e+00> : vector<192x768xf32>
    %2 = tpu.matmul %0, %1, %cst {dimension_numbers = #tpu.dot_dimension_numbers<[1], [0], [0], [1], [0, 0, 1, 1], [], []>} : vector<192x768xf32>, vector<768x768xf32>, vector<192x768xf32> -> vector<192x768xf32>
    %c0_3 = arith.constant 0 : index
    %c0_4 = arith.constant 0 : index
    %3 = vector.load %arg3[%c0_3, %c0_4] : memref<1x768xf32, #tpu.memory_space<vmem>>, vector<1x768xf32>
    %c0_5 = arith.constant 0 : index
    %c0_6 = arith.constant 0 : index
    %4 = vector.load %arg5[%c0_5, %c0_6] : memref<1x768xf32, #tpu.memory_space<vmem>>, vector<1x768xf32>
    %c0_7 = arith.constant 0 : index
    %c0_8 = arith.constant 0 : index
    %5 = vector.load %arg6[%c0_7, %c0_8] : memref<1x768xf32, #tpu.memory_space<vmem>>, vector<1x768xf32>
    %6 = vector.broadcast %3 : vector<1x768xf32> to vector<192x768xf32>
    %7 = arith.addf %2, %6 : vector<192x768xf32>
    %c0_9 = arith.constant 0 : index
    %c0_10 = arith.constant 0 : index
    %8 = vector.load %arg4[%c0_9, %c0_10] : memref<192x768xf32, #tpu.memory_space<vmem>>, vector<192x768xf32>
    %9 = arith.addf %7, %8 : vector<192x768xf32>
    %cst_11 = arith.constant dense<0.000000e+00> : vector<192xf32>
    %10 = vector.multi_reduction <add>, %9, %cst_11 [1] : vector<192x768xf32> to vector<192xf32>
    %11 = vector.shape_cast %10 : vector<192xf32> to vector<192x1xf32>
    %cst_12 = arith.constant 0.00130208337 : f32
    %12 = vector.broadcast %cst_12 : f32 to vector<192x1xf32>
    %13 = arith.mulf %11, %12 : vector<192x1xf32>
    %14 = vector.broadcast %13 : vector<192x1xf32> to vector<192x768xf32>
    %15 = arith.subf %9, %14 : vector<192x768xf32>
    %16 = arith.mulf %15, %15 : vector<192x768xf32>
    %cst_13 = arith.constant dense<0.000000e+00> : vector<192xf32>
    %17 = vector.multi_reduction <add>, %16, %cst_13 [1] : vector<192x768xf32> to vector<192xf32>
    %18 = vector.shape_cast %17 : vector<192xf32> to vector<192x1xf32>
    %cst_14 = arith.constant 0.00130208337 : f32
    %19 = vector.broadcast %cst_14 : f32 to vector<192x1xf32>
    %20 = arith.mulf %18, %19 : vector<192x1xf32>
    %cst_15 = arith.constant 9.99999996E-13 : f32
    %21 = vector.broadcast %cst_15 : f32 to vector<192x1xf32>
    %22 = arith.addf %20, %21 : vector<192x1xf32>
    %23 = math.rsqrt %22 : vector<192x1xf32>
    %24 = vector.broadcast %23 : vector<192x1xf32> to vector<192x768xf32>
    %25 = arith.mulf %15, %24 : vector<192x768xf32>
    %26 = vector.broadcast %4 : vector<1x768xf32> to vector<192x768xf32>
    %27 = arith.mulf %25, %26 : vector<192x768xf32>
    %28 = vector.broadcast %5 : vector<1x768xf32> to vector<192x768xf32>
    %29 = arith.addf %27, %28 : vector<192x768xf32>
    %c0_16 = arith.constant 0 : index
    %c0_17 = arith.constant 0 : index
    %30 = vector.load %arg7[%c0_16, %c0_17] : memref<192x768xf32, #tpu.memory_space<vmem>>, vector<192x768xf32>
    tpu.vector_store %arg7[%c0_16, %c0_17], %29 {strides = array<i32>} : memref<192x768xf32, #tpu.memory_space<vmem>>, vector<192x768xf32>,
    return
  }
  func.func @transform_0(%arg0: i32) -> (i32, i32) {
    %c0_i32 = arith.constant 0 : i32
    %c0_i32_0 = arith.constant 0 : i32
    return %arg0, %c0_i32 : i32, i32
  }
  func.func @transform_1(%arg0: i32) -> (i32, i32) {
    %c0_i32 = arith.constant 0 : i32
    %c0_i32_0 = arith.constant 0 : i32
    %c0_i32_1 = arith.constant 0 : i32
    return %c0_i32, %c0_i32_0 : i32, i32
  }
  func.func @transform_2(%arg0: i32) -> (i32, i32) {
    %c0_i32 = arith.constant 0 : i32
    %c0_i32_0 = arith.constant 0 : i32
    %c0_i32_1 = arith.constant 0 : i32
    return %c0_i32, %c0_i32_0 : i32, i32
  }
  func.func @transform_3(%arg0: i32) -> (i32, i32) {
    %c0_i32 = arith.constant 0 : i32
    %c0_i32_0 = arith.constant 0 : i32
    return %arg0, %c0_i32 : i32, i32
  }
  func.func @transform_4(%arg0: i32) -> (i32, i32) {
    %c0_i32 = arith.constant 0 : i32
    %c0_i32_0 = arith.constant 0 : i32
    %c0_i32_1 = arith.constant 0 : i32
    return %c0_i32, %c0_i32_0 : i32, i32
  }
  func.func @transform_5(%arg0: i32) -> (i32, i32) {
    %c0_i32 = arith.constant 0 : i32
    %c0_i32_0 = arith.constant 0 : i32
    %c0_i32_1 = arith.constant 0 : i32
    return %c0_i32, %c0_i32_0 : i32, i32
  }
  func.func @transform_6(%arg0: i32) -> (i32, i32) {
    %c0_i32 = arith.constant 0 : i32
    %c0_i32_0 = arith.constant 0 : i32
    return %arg0, %c0_i32 : i32, i32
  }
}

</mosaic_0001>

<llo_original>
// kernel: tpu_custom_call.1
$region0: #{tpu_custom_call.1}
  #allocation0 [shape = 'u32[]', space=smem, size = 0x4, offset = 0x4, fixed_abs, tag = 'smem constant byte address 0x4 - core index']
  #allocation1 [shape = 'u32[144,128]{1,0:T(1,128)}', space=vmem, size = 0x12000, scoped, tag = 'internal scratch']
  %s0 = inlined_call_operand.hbm [shape: f32[384,768], index: 0, kind: input, shape index: {}]
  %s1 = inlined_call_operand.hbm [shape: f32[768,768], index: 1, kind: input, shape index: {}]
  %s2 = inlined_call_operand.hbm [shape: f32[1,768], index: 2, kind: input, shape index: {}]
  %s3 = inlined_call_operand.hbm [shape: f32[384,768], index: 3, kind: input, shape index: {}]
  %s4 = inlined_call_operand.hbm [shape: f32[1,768], index: 4, kind: input, shape index: {}]
  %s5 = inlined_call_operand.hbm [shape: f32[1,768], index: 5, kind: input, shape index: {}]
  %s6 = inlined_call_operand.hbm [shape: f32[384,768], index: 6, kind: output, shape index: {}]
  %s7 = sld [smem:[#allocation0]]
  $region81: #{tpu_custom_call.1} parent=0
    _
  %s9 = ssub.s32 1, %s7
  %s10 = scalar_select 0, %s9, %s7
  $region1: #{tpu_custom_call.1} parent=0
    #allocation2 [shape = 'u8[1179648]{0}', space=vmem, size = 0x120000, scoped, tag = 'input window, operand 0']
    #allocation3 [shape = 's32[2]{0}', space=sflag, size = 0x8, scoped, tag = 'scoped memory for tpu_custom_call.1']
    #allocation4 [shape = 's32[2]{0}', space=sflag, size = 0x8, scoped, tag = 'scoped memory for tpu_custom_call.1']
    #allocation5 [shape = 'u8[2359296]{0}', space=vmem, size = 0x240000, scoped, tag = 'input window, operand 1, single buffered']
    #allocation6 [shape = 's32[1]{0}', space=sflag, size = 0x4, scoped, tag = 'scoped memory for tpu_custom_call.1']
    #allocation7 [shape = 'u8[3072]{0}', space=vmem, size = 0xc00, scoped, tag = 'input window, operand 2, single buffered']
    #allocation8 [shape = 'u8[1179648]{0}', space=vmem, size = 0x120000, scoped, tag = 'input window, operand 3']
    #allocation9 [shape = 's32[2]{0}', space=sflag, size = 0x8, scoped, tag = 'scoped memory for tpu_custom_call.1']
    #allocation10 [shape = 'u8[3072]{0}', space=vmem, size = 0xc00, scoped, tag = 'input window, operand 4, single buffered']
    #allocation11 [shape = 'u8[3072]{0}', space=vmem, size = 0xc00, scoped, tag = 'input window, operand 5, single buffered']
    #allocation12 [shape = 's32[1]{0}', space=sflag, size = 0x4, scoped, tag = 'scoped memory for tpu_custom_call.1']
    #allocation13 [shape = 'u8[1179648]{0}', space=vmem, size = 0x120000, scoped, tag = 'output window, operand 0']
    %11 = vsyncpa [#allocation3], 0
    %s12 = scalar_lea.sflag [#allocation3], 1
    %13 = vsyncpa %s12, 0
    %14 = vsyncpa [#allocation6], 0
    %15 = vsyncpa [#allocation9], 0
    %s16 = scalar_lea.sflag [#allocation9], 1
    %17 = vsyncpa %s16, 0
    %18 = vsyncpa [#allocation12], 0
    %19 = vsyncpa [#allocation4], 0
    %s20 = scalar_lea.sflag [#allocation4], 1
    %21 = vsyncpa %s20, 0
    loop: start=0, step=1, limit=4
    $region2: #{tpu_custom_call.1} parent=1 // loop_pre_header
      _
    $region3: #{tpu_custom_call.1} parent=1 // loop_header
      %s23 = sphi 0, %s27
      %p24 = scmp.ge.s32.totalorder %s23, 4
      %s33 = sphi 0, %s35
      %s36 = sphi 0, %s33
      %s37 = sphi 0, %s36
      %s53 = sphi 0, %s37
      %s57 = sphi 0, %s57
      %s59 = sphi 0, %s57
      %s60 = sphi 0, %s59
      %s74 = sphi 0, %s60
      %s78 = sphi 0, %s78
      %s80 = sphi 0, %s78
      %s81 = sphi 0, %s80
      %s95 = sphi 0, %s81
      %s101 = sphi 0, %s103
      %s104 = sphi 0, %s101
      %s105 = sphi 0, %s104
      %s121 = sphi 0, %s105
      %s125 = sphi 0, %s125
      %s127 = sphi 0, %s125
      %s128 = sphi 0, %s127
      %s142 = sphi 0, %s128
      %s146 = sphi 0, %s146
      %s148 = sphi 0, %s146
      %s149 = sphi 0, %s148
      %s163 = sphi 0, %s149
      %s169 = sphi 0, %s171
      %s172 = sphi 0, %s169
      %s173 = sphi 0, %s172
      %s189 = sphi 0, %s173
    $region4: #{tpu_custom_call.1} parent=1 // loop_header_branch
      %26 = sbr.rel (%p24) target = $region8
    $region5: #{tpu_custom_call.1} parent=1 // loop_body
      %s28 = ssub.s32 %s23, 1
      %s29 = ssub.s32 %s23, 2
      %s30 = sadd.s32 %s23, 1
      %s31 = ssub.s32 %s23, %s30
      %p32 = scmp.eq.s32.totalorder %s31, 0
      %s34 = sadd.s32 %s33, 1
      %s35 = scalar_select %p32, %s33, %s34
      %p38 = pneg %p32
      %p39 = scmp.eq.s32.totalorder %s23, 1
      %p40 = por %p38, %p39
      %p41 = scmp.ne.s32.totalorder %s33, %s36
      %p42 = scmp.eq.s32.totalorder %s23, 0
      %p43 = por %p41, %p42
      %p44 = scmp.ne.s32.totalorder %s33, %s36
      %p45 = scmp.eq.s32.totalorder %s28, 1
      %p46 = por %p44, %p45
      %p47 = scmp.ne.s32.totalorder %s36, %s37
      %p48 = scmp.eq.s32.totalorder %s28, 0
      %p49 = por %p47, %p48
      %p50 = scmp.ne.s32.totalorder %s36, %s37
      %p51 = scmp.eq.s32.totalorder %s29, 1
      %p52 = por %p50, %p51
      %p54 = scmp.ne.s32.totalorder %s37, %s53
      %p55 = scmp.eq.s32.totalorder %s29, 0
      %p56 = por %p54, %p55
      %s58 = sadd.s32 %s57, 1
      %p61 = scmp.eq.s32.totalorder %s23, 1
      %p62 = scmp.ne.s32.totalorder %s57, %s59
      %p63 = scmp.eq.s32.totalorder %s23, 0
      %p64 = por %p62, %p63
      %p65 = scmp.ne.s32.totalorder %s57, %s59
      %p66 = scmp.eq.s32.totalorder %s28, 1
      %p67 = por %p65, %p66
      %p68 = scmp.ne.s32.totalorder %s59, %s60
      %p69 = scmp.eq.s32.totalorder %s28, 0
      %p70 = por %p68, %p69
      %p71 = scmp.ne.s32.totalorder %s59, %s60
      %p72 = scmp.eq.s32.totalorder %s29, 1
      %p73 = por %p71, %p72
      %p75 = scmp.ne.s32.totalorder %s60, %s74
      %p76 = scmp.eq.s32.totalorder %s29, 0
      %p77 = por %p75, %p76
      %s79 = sadd.s32 %s78, 1
      %p82 = scmp.eq.s32.totalorder %s23, 1
      %p83 = scmp.ne.s32.totalorder %s78, %s80
      %p84 = scmp.eq.s32.totalorder %s23, 0
      %p85 = por %p83, %p84
      %p86 = scmp.ne.s32.totalorder %s78, %s80
      %p87 = scmp.eq.s32.totalorder %s28, 1
      %p88 = por %p86, %p87
      %p89 = scmp.ne.s32.totalorder %s80, %s81
      %p90 = scmp.eq.s32.totalorder %s28, 0
      %p91 = por %p89, %p90
      %p92 = scmp.ne.s32.totalorder %s80, %s81
      %p93 = scmp.eq.s32.totalorder %s29, 1
      %p94 = por %p92, %p93
      %p96 = scmp.ne.s32.totalorder %s81, %s95
      %p97 = scmp.eq.s32.totalorder %s29, 0
      %p98 = por %p96, %p97
      %s99 = ssub.s32 %s23, %s30
      %p100 = scmp.eq.s32.totalorder %s99, 0
      %s102 = sadd.s32 %s101, 1
      %s103 = scalar_select %p100, %s101, %s102
      %p106 = pneg %p100
      %p107 = scmp.eq.s32.totalorder %s23, 1
      %p108 = por %p106, %p107
      %p109 = scmp.ne.s32.totalorder %s101, %s104
      %p110 = scmp.eq.s32.totalorder %s23, 0
      %p111 = por %p109, %p110
      %p112 = scmp.ne.s32.totalorder %s101, %s104
      %p113 = scmp.eq.s32.totalorder %s28, 1
      %p114 = por %p112, %p113
      %p115 = scmp.ne.s32.totalorder %s104, %s105
      %p116 = scmp.eq.s32.totalorder %s28, 0
      %p117 = por %p115, %p116
      %p118 = scmp.ne.s32.totalorder %s104, %s105
      %p119 = scmp.eq.s32.totalorder %s29, 1
      %p120 = por %p118, %p119
      %p122 = scmp.ne.s32.totalorder %s105, %s121
      %p123 = scmp.eq.s32.totalorder %s29, 0
      %p124 = por %p122, %p123
      %s126 = sadd.s32 %s125, 1
      %p129 = scmp.eq.s32.totalorder %s23, 1
      %p130 = scmp.ne.s32.totalorder %s125, %s127
      %p131 = scmp.eq.s32.totalorder %s23, 0
      %p132 = por %p130, %p131
      %p133 = scmp.ne.s32.totalorder %s125, %s127
      %p134 = scmp.eq.s32.totalorder %s28, 1
      %p135 = por %p133, %p134
      %p136 = scmp.ne.s32.totalorder %s127, %s128
      %p137 = scmp.eq.s32.totalorder %s28, 0
      %p138 = por %p136, %p137
      %p139 = scmp.ne.s32.totalorder %s127, %s128
      %p140 = scmp.eq.s32.totalorder %s29, 1
      %p141 = por %p139, %p140
      %p143 = scmp.ne.s32.totalorder %s128, %s142
      %p144 = scmp.eq.s32.totalorder %s29, 0
      %p145 = por %p143, %p144
      %s147 = sadd.s32 %s146, 1
      %p150 = scmp.eq.s32.totalorder %s23, 1
      %p151 = scmp.ne.s32.totalorder %s146, %s148
      %p152 = scmp.eq.s32.totalorder %s23, 0
      %p153 = por %p151, %p152
      %p154 = scmp.ne.s32.totalorder %s146, %s148
      %p155 = scmp.eq.s32.totalorder %s28, 1
      %p156 = por %p154, %p155
      %p157 = scmp.ne.s32.totalorder %s148, %s149
      %p158 = scmp.eq.s32.totalorder %s28, 0
      %p159 = por %p157, %p158
      %p160 = scmp.ne.s32.totalorder %s148, %s149
      %p161 = scmp.eq.s32.totalorder %s29, 1
      %p162 = por %p160, %p161
      %p164 = scmp.ne.s32.totalorder %s149, %s163
      %p165 = scmp.eq.s32.totalorder %s29, 0
      %p166 = por %p164, %p165
      %s167 = ssub.s32 %s23, %s30
      %p168 = scmp.eq.s32.totalorder %s167, 0
      %s170 = sadd.s32 %s169, 1
      %s171 = scalar_select %p168, %s169, %s170
      %p174 = pneg %p168
      %p175 = scmp.eq.s32.totalorder %s23, 1
      %p176 = por %p174, %p175
      %p177 = scmp.ne.s32.totalorder %s169, %s172
      %p178 = scmp.eq.s32.totalorder %s23, 0
      %p179 = por %p177, %p178
      %p180 = scmp.ne.s32.totalorder %s169, %s172
      %p181 = scmp.eq.s32.totalorder %s28, 1
      %p182 = por %p180, %p181
      %p183 = scmp.ne.s32.totalorder %s172, %s173
      %p184 = scmp.eq.s32.totalorder %s28, 0
      %p185 = por %p183, %p184
      %p186 = scmp.ne.s32.totalorder %s172, %s173
      %p187 = scmp.eq.s32.totalorder %s29, 1
      %p188 = por %p186, %p187
      %p190 = scmp.ne.s32.totalorder %s173, %s189
      %p191 = scmp.eq.s32.totalorder %s29, 0
      %p192 = por %p190, %p191
      %p193 = scmp.le.s32.totalorder 1, %s23
      %p194 = scmp.lt.s32.totalorder %s23, 3
      %p195 = pnand %p193, %p194
      %p196 = pneg %p195
      // Predicated region
      $region9: #{tpu_custom_call.1} parent=5 // pred_check
        _
      $region10: #{tpu_custom_call.1} parent=5 // pred_check_branch
        %198 = sbr.rel (%p195) target = $region12
      $region11: #{tpu_custom_call.1} parent=5 // pred_region
        %s199 = ssub.s32 %s23, 1
        // Predicated region
        $region13: #{tpu_custom_call.1} parent=11 // pred_check
          %p200 = pneg %p70
        $region14: #{tpu_custom_call.1} parent=11 // pred_check_branch
          %202 = sbr.rel (%p200) target = $region16
        $region15: #{tpu_custom_call.1} parent=11 // pred_region
          %s204 = ssub.s32 73728, 73728
          %205 = vsyncadd [#allocation6], %s204
          %s206 = sshll.u32 [#allocation5], 4
          %s207 = int_to_ptr.vmem [resolvable:$true] %s206
          %212 = dma.hbm_to_vmem [thread:$0]  %s1, 73728, %s207, [#allocation6], 768, 768, 48
        $region16: #{tpu_custom_call.1} parent=11 // pred_fallthru
          _
        // Predicated region
        $region17: #{tpu_custom_call.1} parent=11 // pred_check
          %p213 = pneg %p91
        $region18: #{tpu_custom_call.1} parent=11 // pred_check_branch
          %215 = sbr.rel (%p213) target = $region20
        $region19: #{tpu_custom_call.1} parent=11 // pred_region
          %s217 = ssub.s32 96, 96
          %218 = vsyncadd [#allocation6], %s217
          %s220 = sshll.u32 [#allocation7], 4
          %s221 = int_to_ptr.vmem [resolvable:$true] %s220
          %223 = dma.hbm_to_vmem [thread:$0]  %s2, 96, %s221, [#allocation6]
        $region20: #{tpu_custom_call.1} parent=11 // pred_fallthru
          _
        // Predicated region
        $region21: #{tpu_custom_call.1} parent=11 // pred_check
          %p224 = pneg %p138
        $region22: #{tpu_custom_call.1} parent=11 // pred_check_branch
          %226 = sbr.rel (%p224) target = $region24
        $region23: #{tpu_custom_call.1} parent=11 // pred_region
          %s228 = ssub.s32 96, 96
          %229 = vsyncadd [#allocation9], %s228
          %s231 = sshll.u32 [#allocation10], 4
          %s232 = int_to_ptr.vmem [resolvable:$true] %s231
          %234 = dma.hbm_to_vmem [thread:$0]  %s4, 96, %s232, [#allocation9]
        $region24: #{tpu_custom_call.1} parent=11 // pred_fallthru
          _
        // Predicated region
        $region25: #{tpu_custom_call.1} parent=11 // pred_check
          %p235 = pneg %p159
        $region26: #{tpu_custom_call.1} parent=11 // pred_check_branch
          %237 = sbr.rel (%p235) target = $region28
        $region27: #{tpu_custom_call.1} parent=11 // pred_region
          %s239 = ssub.s32 96, 96
          %240 = vsyncadd [#allocation12], %s239
          %s242 = sshll.u32 [#allocation11], 4
          %s243 = int_to_ptr.vmem [resolvable:$true] %s242
          %245 = dma.hbm_to_vmem [thread:$0]  %s5, 96, %s243, [#allocation12]
        $region28: #{tpu_custom_call.1} parent=11 // pred_fallthru
          _
      $region12: #{tpu_custom_call.1} parent=5 // pred_fallthru
        _
      %p246 = scmp.lt.s32.totalorder %s23, 2
      // Predicated region
      $region29: #{tpu_custom_call.1} parent=5 // pred_check
        %p247 = pneg %p246
      $region30: #{tpu_custom_call.1} parent=5 // pred_check_branch
        %249 = sbr.rel (%p247) target = $region32
      $region31: #{tpu_custom_call.1} parent=5 // pred_region
        // Predicated region
        $region33: #{tpu_custom_call.1} parent=31 // pred_check
          %p250 = pneg %p43
        $region34: #{tpu_custom_call.1} parent=31 // pred_check_branch
          %252 = sbr.rel (%p250) target = $region36
        $region35: #{tpu_custom_call.1} parent=31 // pred_region
          %s253 = sand.u32 %s33, 1
          %s254 = scalar_lea.sflag [#allocation3], %s253
          %s255 = sand.u32 %s33, 1
          %s256 = smul.addr %s255, 1152
          %s257 = scalar_lea.vmem [#allocation2], %s256
          %s258 = smul.u32 24, %s23
          %s260 = ssub.s32 18432, 18432
          %261 = vsyncadd %s254, %s260
          %s262 = smul.addr %s258, 6
          %s263 = smul.addr %s262, 128
          %s264 = scalar_lea.hbm %s0, %s263
          %s265 = sshll.u32 %s257, 4
          %s266 = int_to_ptr.vmem [resolvable:$true] %s265
          %271 = dma.hbm_to_vmem [thread:$0]  %s264, 18432, %s266, %s254, 768, 768, 48
        $region36: #{tpu_custom_call.1} parent=31 // pred_fallthru
          _
        // Predicated region
        $region37: #{tpu_custom_call.1} parent=31 // pred_check
          %p272 = pneg %p111
        $region38: #{tpu_custom_call.1} parent=31 // pred_check_branch
          %274 = sbr.rel (%p272) target = $region40
        $region39: #{tpu_custom_call.1} parent=31 // pred_region
          %s275 = sand.u32 %s23, 1
          %s276 = scalar_lea.sflag [#allocation9], %s275
          %s277 = sand.u32 %s101, 1
          %s278 = smul.addr %s277, 1152
          %s279 = scalar_lea.vmem [#allocation8], %s278
          %s280 = smul.u32 24, %s23
          %s282 = ssub.s32 18432, 18432
          %283 = vsyncadd %s276, %s282
          %s284 = smul.addr %s280, 6
          %s285 = smul.addr %s284, 128
          %s286 = scalar_lea.hbm %s3, %s285
          %s287 = sshll.u32 %s279, 4
          %s288 = int_to_ptr.vmem [resolvable:$true] %s287
          %293 = dma.hbm_to_vmem [thread:$0]  %s286, 18432, %s288, %s276, 768, 768, 48
        $region40: #{tpu_custom_call.1} parent=31 // pred_fallthru
          _
      $region32: #{tpu_custom_call.1} parent=5 // pred_fallthru
        _
      %p294 = scmp.le.s32.totalorder 1, %s23
      %p295 = scmp.lt.s32.totalorder %s23, 3
      %p296 = pnand %p294, %p295
      %p297 = pneg %p296
      // Predicated region
      $region41: #{tpu_custom_call.1} parent=5 // pred_check
        _
      $region42: #{tpu_custom_call.1} parent=5 // pred_check_branch
        %299 = sbr.rel (%p296) target = $region44
      $region43: #{tpu_custom_call.1} parent=5 // pred_region
        %s300 = ssub.s32 %s23, 1
        %s301 = sand.u32 %s36, 1
        %s302 = scalar_lea.sflag [#allocation3], %s301
        %s303 = sand.u32 %s36, 1
        %s304 = smul.addr %s303, 1152
        %s305 = scalar_lea.vmem [#allocation2], %s304
        // Predicated region
        $region45: #{tpu_custom_call.1} parent=43 // pred_check
          %p306 = pneg %p49
        $region46: #{tpu_custom_call.1} parent=43 // pred_check_branch
          %308 = sbr.rel (%p306) target = $region48
        $region47: #{tpu_custom_call.1} parent=43 // pred_region
          %309 = dma.done %s302, 18432
        $region48: #{tpu_custom_call.1} parent=43 // pred_fallthru
          _
        // Predicated region
        $region49: #{tpu_custom_call.1} parent=43 // pred_check
          %p310 = pneg %p70
        $region50: #{tpu_custom_call.1} parent=43 // pred_check_branch
          %312 = sbr.rel (%p310) target = $region52
        $region51: #{tpu_custom_call.1} parent=43 // pred_region
          %313 = dma.done [#allocation6], 73728
        $region52: #{tpu_custom_call.1} parent=43 // pred_fallthru
          _
        // Predicated region
        $region53: #{tpu_custom_call.1} parent=43 // pred_check
          %p314 = pneg %p91
        $region54: #{tpu_custom_call.1} parent=43 // pred_check_branch
          %316 = sbr.rel (%p314) target = $region56
        $region55: #{tpu_custom_call.1} parent=43 // pred_region
          %317 = dma.done [#allocation6], 96
        $region56: #{tpu_custom_call.1} parent=43 // pred_fallthru
          _
        %s318 = sand.u32 %s28, 1
        %s319 = scalar_lea.sflag [#allocation9], %s318
        %s320 = sand.u32 %s104, 1
        %s321 = smul.addr %s320, 1152
        %s322 = scalar_lea.vmem [#allocation8], %s321
        // Predicated region
        $region57: #{tpu_custom_call.1} parent=43 // pred_check
          %p323 = pneg %p117
        $region58: #{tpu_custom_call.1} parent=43 // pred_check_branch
          %325 = sbr.rel (%p323) target = $region60
        $region59: #{tpu_custom_call.1} parent=43 // pred_region
          %326 = dma.done %s319, 18432
        $region60: #{tpu_custom_call.1} parent=43 // pred_fallthru
          _
        // Predicated region
        $region61: #{tpu_custom_call.1} parent=43 // pred_check
          %p327 = pneg %p138
        $region62: #{tpu_custom_call.1} parent=43 // pred_check_branch
          %329 = sbr.rel (%p327) target = $region64
        $region63: #{tpu_custom_call.1} parent=43 // pred_region
          %330 = dma.done [#allocation9], 96
        $region64: #{tpu_custom_call.1} parent=43 // pred_fallthru
          _
        // Predicated region
        $region65: #{tpu_custom_call.1} parent=43 // pred_check
          %p331 = pneg %p159
        $region66: #{tpu_custom_call.1} parent=43 // pred_check_branch
          %333 = sbr.rel (%p331) target = $region68
        $region67: #{tpu_custom_call.1} parent=43 // pred_region
          %334 = dma.done [#allocation12], 96
        $region68: #{tpu_custom_call.1} parent=43 // pred_fallthru
          _
        %s335 = sand.u32 %s36, 1
        %s336 = scalar_lea.sflag [#allocation3], %s335
        %s337 = sand.u32 %s36, 1
        %s338 = smul.addr %s337, 1152
        %s339 = scalar_lea.vmem [#allocation2], %s338
        %p340 = pneg %p49
        %p341 = pneg %p46
        %p342 = pneg %p70
        %p343 = pneg %p67
        %p344 = pneg %p91
        %p345 = pneg %p88
        %s346 = sand.u32 %s28, 1
        %s347 = scalar_lea.sflag [#allocation9], %s346
        %s348 = sand.u32 %s104, 1
        %s349 = smul.addr %s348, 1152
        %s350 = scalar_lea.vmem [#allocation8], %s349
        %p351 = pneg %p117
        %p352 = pneg %p114
        %p353 = pneg %p138
        %p354 = pneg %p135
        %p355 = pneg %p159
        %p356 = pneg %p156
        %p357 = pneg %p185
        %p358 = pneg %p182
        %s359 = sand.u32 %s172, 1
        %s360 = scalar_lea.sflag [#allocation4], %s359
        %s361 = sand.u32 %s172, 1
        %s362 = smul.addr %s361, 1152
        %s363 = scalar_lea.vmem [#allocation13], %s362
        %s364 = smul.u32 24, %s28
        %s365 = smul.u32 24, %s28
        %s366 = smul.u32 24, %s28
        %v367 = vld [vmem:[%s305] sm:$0xff]
        %v368 = vld [vmem:[%s305 + $0x8] sm:$0xff]
        %v369 = vld [vmem:[%s305 + $0x10] sm:$0xff]
        %v370 = vld [vmem:[%s305 + $0x18] sm:$0xff]
        %v371 = vld [vmem:[%s305 + $0x20] sm:$0xff]
        %v372 = vld [vmem:[%s305 + $0x28] sm:$0xff]
        %v373 = vld [vmem:[%s305 + $0x30] sm:$0xff]
        %v374 = vld [vmem:[%s305 + $0x38] sm:$0xff]
        %v375 = vld [vmem:[%s305 + $0x40] sm:$0xff]
        %v376 = vld [vmem:[%s305 + $0x48] sm:$0xff]
        %v377 = vld [vmem:[%s305 + $0x50] sm:$0xff]
        %v378 = vld [vmem:[%s305 + $0x58] sm:$0xff]
        %v379 = vld [vmem:[%s305 + $0x60] sm:$0xff]
        %v380 = vld [vmem:[%s305 + $0x68] sm:$0xff]
        %v381 = vld [vmem:[%s305 + $0x70] sm:$0xff]
        %v382 = vld [vmem:[%s305 + $0x78] sm:$0xff]
        %v383 = vld [vmem:[%s305 + $0x80] sm:$0xff]
        %v384 = vld [vmem:[%s305 + $0x88] sm:$0xff]
        %v385 = vld [vmem:[%s305 + $0x90] sm:$0xff]
        %v386 = vld [vmem:[%s305 + $0x98] sm:$0xff]
        %v387 = vld [vmem:[%s305 + $0xa0] sm:$0xff]
        %v388 = vld [vmem:[%s305 + $0xa8] sm:$0xff]
        %v389 = vld [vmem:[%s305 + $0xb0] sm:$0xff]
        %v390 = vld [vmem:[%s305 + $0xb8] sm:$0xff]
        %v391 = vld [vmem:[%s305 + $0xc0] sm:$0xff]
        %v392 = vld [vmem:[%s305 + $0xc8] sm:$0xff]
        %v393 = vld [vmem:[%s305 + $0xd0] sm:$0xff]
        %v394 = vld [vmem:[%s305 + $0xd8] sm:$0xff]
        %v395 = vld [vmem:[%s305 + $0xe0] sm:$0xff]
        %v396 = vld [vmem:[%s305 + $0xe8] sm:$0xff]
        %v397 = vld [vmem:[%s305 + $0xf0] sm:$0xff]
        %v398 = vld [vmem:[%s305 + $0xf8] sm:$0xff]
        %v399 = vld [vmem:[%s305 + $0x100] sm:$0xff]
        %v400 = vld [vmem:[%s305 + $0x108] sm:$0xff]
        %v401 = vld [vmem:[%s305 + $0x110] sm:$0xff]
        %v402 = vld [vmem:[%s305 + $0x118] sm:$0xff]
        %v403 = vld [vmem:[%s305 + $0x120] sm:$0xff]
        %v404 = vld [vmem:[%s305 + $0x128] sm:$0xff]
        %v405 = vld [vmem:[%s305 + $0x130] sm:$0xff]
        %v406 = vld [vmem:[%s305 + $0x138] sm:$0xff]
        %v407 = vld [vmem:[%s305 + $0x140] sm:$0xff]
        %v408 = vld [vmem:[%s305 + $0x148] sm:$0xff]
        %v409 = vld [vmem:[%s305 + $0x150] sm:$0xff]
        %v410 = vld [vmem:[%s305 + $0x158] sm:$0xff]
        %v411 = vld [vmem:[%s305 + $0x160] sm:$0xff]
        %v412 = vld [vmem:[%s305 + $0x168] sm:$0xff]
        %v413 = vld [vmem:[%s305 + $0x170] sm:$0xff]
        %v414 = vld [vmem:[%s305 + $0x178] sm:$0xff]
        %v415 = vld [vmem:[%s305 + $0x180] sm:$0xff]
        %v416 = vld [vmem:[%s305 + $0x188] sm:$0xff]
        %v417 = vld [vmem:[%s305 + $0x190] sm:$0xff]
        %v418 = vld [vmem:[%s305 + $0x198] sm:$0xff]
        %v419 = vld [vmem:[%s305 + $0x1a0] sm:$0xff]
        %v420 = vld [vmem:[%s305 + $0x1a8] sm:$0xff]
        %v421 = vld [vmem:[%s305 + $0x1b0] sm:$0xff]
        %v422 = vld [vmem:[%s305 + $0x1b8] sm:$0xff]
        %v423 = vld [vmem:[%s305 + $0x1c0] sm:$0xff]
        %v424 = vld [vmem:[%s305 + $0x1c8] sm:$0xff]
        %v425 = vld [vmem:[%s305 + $0x1d0] sm:$0xff]
        %v426 = vld [vmem:[%s305 + $0x1d8] sm:$0xff]
        %v427 = vld [vmem:[%s305 + $0x1e0] sm:$0xff]
        %v428 = vld [vmem:[%s305 + $0x1e8] sm:$0xff]
        %v429 = vld [vmem:[%s305 + $0x1f0] sm:$0xff]
        %v430 = vld [vmem:[%s305 + $0x1f8] sm:$0xff]
        %v431 = vld [vmem:[%s305 + $0x200] sm:$0xff]
        %v432 = vld [vmem:[%s305 + $0x208] sm:$0xff]
        %v433 = vld [vmem:[%s305 + $0x210] sm:$0xff]
        %v434 = vld [vmem:[%s305 + $0x218] sm:$0xff]
        %v435 = vld [vmem:[%s305 + $0x220] sm:$0xff]
        %v436 = vld [vmem:[%s305 + $0x228] sm:$0xff]
        %v437 = vld [vmem:[%s305 + $0x230] sm:$0xff]
        %v438 = vld [vmem:[%s305 + $0x238] sm:$0xff]
        %v439 = vld [vmem:[%s305 + $0x240] sm:$0xff]
        %v440 = vld [vmem:[%s305 + $0x248] sm:$0xff]
        %v441 = vld [vmem:[%s305 + $0x250] sm:$0xff]
        %v442 = vld [vmem:[%s305 + $0x258] sm:$0xff]
        %v443 = vld [vmem:[%s305 + $0x260] sm:$0xff]
        %v444 = vld [vmem:[%s305 + $0x268] sm:$0xff]
        %v445 = vld [vmem:[%s305 + $0x270] sm:$0xff]
        %v446 = vld [vmem:[%s305 + $0x278] sm:$0xff]
        %v447 = vld [vmem:[%s305 + $0x280] sm:$0xff]
        %v448 = vld [vmem:[%s305 + $0x288] sm:$0xff]
        %v449 = vld [vmem:[%s305 + $0x290] sm:$0xff]
        %v450 = vld [vmem:[%s305 + $0x298] sm:$0xff]
        %v451 = vld [vmem:[%s305 + $0x2a0] sm:$0xff]
        %v452 = vld [vmem:[%s305 + $0x2a8] sm:$0xff]
        %v453 = vld [vmem:[%s305 + $0x2b0] sm:$0xff]
        %v454 = vld [vmem:[%s305 + $0x2b8] sm:$0xff]
        %v455 = vld [vmem:[%s305 + $0x2c0] sm:$0xff]
        %v456 = vld [vmem:[%s305 + $0x2c8] sm:$0xff]
        %v457 = vld [vmem:[%s305 + $0x2d0] sm:$0xff]
        %v458 = vld [vmem:[%s305 + $0x2d8] sm:$0xff]
        %v459 = vld [vmem:[%s305 + $0x2e0] sm:$0xff]
        %v460 = vld [vmem:[%s305 + $0x2e8] sm:$0xff]
        %v461 = vld [vmem:[%s305 + $0x2f0] sm:$0xff]
        %v462 = vld [vmem:[%s305 + $0x2f8] sm:$0xff]
        %v463 = vld [vmem:[%s305 + $0x300] sm:$0xff]
        %v464 = vld [vmem:[%s305 + $0x308] sm:$0xff]
        %v465 = vld [vmem:[%s305 + $0x310] sm:$0xff]
        %v466 = vld [vmem:[%s305 + $0x318] sm:$0xff]
        %v467 = vld [vmem:[%s305 + $0x320] sm:$0xff]
        %v468 = vld [vmem:[%s305 + $0x328] sm:$0xff]
        %v469 = vld [vmem:[%s305 + $0x330] sm:$0xff]
        %v470 = vld [vmem:[%s305 + $0x338] sm:$0xff]
        %v471 = vld [vmem:[%s305 + $0x340] sm:$0xff]
        %v472 = vld [vmem:[%s305 + $0x348] sm:$0xff]
        %v473 = vld [vmem:[%s305 + $0x350] sm:$0xff]
        %v474 = vld [vmem:[%s305 + $0x358] sm:$0xff]
        %v475 = vld [vmem:[%s305 + $0x360] sm:$0xff]
        %v476 = vld [vmem:[%s305 + $0x368] sm:$0xff]
        %v477 = vld [vmem:[%s305 + $0x370] sm:$0xff]
        %v478 = vld [vmem:[%s305 + $0x378] sm:$0xff]
        %v479 = vld [vmem:[%s305 + $0x380] sm:$0xff]
        %v480 = vld [vmem:[%s305 + $0x388] sm:$0xff]
        %v481 = vld [vmem:[%s305 + $0x390] sm:$0xff]
        %v482 = vld [vmem:[%s305 + $0x398] sm:$0xff]
        %v483 = vld [vmem:[%s305 + $0x3a0] sm:$0xff]
        %v484 = vld [vmem:[%s305 + $0x3a8] sm:$0xff]
        %v485 = vld [vmem:[%s305 + $0x3b0] sm:$0xff]
        %v486 = vld [vmem:[%s305 + $0x3b8] sm:$0xff]
        %v487 = vld [vmem:[%s305 + $0x3c0] sm:$0xff]
        %v488 = vld [vmem:[%s305 + $0x3c8] sm:$0xff]
        %v489 = vld [vmem:[%s305 + $0x3d0] sm:$0xff]
        %v490 = vld [vmem:[%s305 + $0x3d8] sm:$0xff]
        %v491 = vld [vmem:[%s305 + $0x3e0] sm:$0xff]
        %v492 = vld [vmem:[%s305 + $0x3e8] sm:$0xff]
        %v493 = vld [vmem:[%s305 + $0x3f0] sm:$0xff]
        %v494 = vld [vmem:[%s305 + $0x3f8] sm:$0xff]
        %v495 = vld [vmem:[%s305 + $0x400] sm:$0xff]
        %v496 = vld [vmem:[%s305 + $0x408] sm:$0xff]
        %v497 = vld [vmem:[%s305 + $0x410] sm:$0xff]
        %v498 = vld [vmem:[%s305 + $0x418] sm:$0xff]
        %v499 = vld [vmem:[%s305 + $0x420] sm:$0xff]
        %v500 = vld [vmem:[%s305 + $0x428] sm:$0xff]
        %v501 = vld [vmem:[%s305 + $0x430] sm:$0xff]
        %v502 = vld [vmem:[%s305 + $0x438] sm:$0xff]
        %v503 = vld [vmem:[%s305 + $0x440] sm:$0xff]
        %v504 = vld [vmem:[%s305 + $0x448] sm:$0xff]
        %v505 = vld [vmem:[%s305 + $0x450] sm:$0xff]
        %v506 = vld [vmem:[%s305 + $0x458] sm:$0xff]
        %v507 = vld [vmem:[%s305 + $0x460] sm:$0xff]
        %v508 = vld [vmem:[%s305 + $0x468] sm:$0xff]
        %v509 = vld [vmem:[%s305 + $0x470] sm:$0xff]
        %v510 = vld [vmem:[%s305 + $0x478] sm:$0xff]
        %v511 = vld [vmem:[#allocation5] sm:$0xff]
        %v512 = vld [vmem:[#allocation5 + $0x8] sm:$0xff]
        %v513 = vld [vmem:[#allocation5 + $0x10] sm:$0xff]
        %v514 = vld [vmem:[#allocation5 + $0x18] sm:$0xff]
        %v515 = vld [vmem:[#allocation5 + $0x20] sm:$0xff]
        %v516 = vld [vmem:[#allocation5 + $0x28] sm:$0xff]
        %v517 = vld [vmem:[#allocation5 + $0x30] sm:$0xff]
        %v518 = vld [vmem:[#allocation5 + $0x38] sm:$0xff]
        %v519 = vld [vmem:[#allocation5 + $0x40] sm:$0xff]
        %v520 = vld [vmem:[#allocation5 + $0x48] sm:$0xff]
        %v521 = vld [vmem:[#allocation5 + $0x50] sm:$0xff]
        %v522 = vld [vmem:[#allocation5 + $0x58] sm:$0xff]
        %v523 = vld [vmem:[#allocation5 + $0x60] sm:$0xff]
        %v524 = vld [vmem:[#allocation5 + $0x68] sm:$0xff]
        %v525 = vld [vmem:[#allocation5 + $0x70] sm:$0xff]
        %v526 = vld [vmem:[#allocation5 + $0x78] sm:$0xff]
        %v527 = vld [vmem:[#allocation5 + $0x80] sm:$0xff]
        %v528 = vld [vmem:[#allocation5 + $0x88] sm:$0xff]
        %v529 = vld [vmem:[#allocation5 + $0x90] sm:$0xff]
        %v530 = vld [vmem:[#allocation5 + $0x98] sm:$0xff]
        %v531 = vld [vmem:[#allocation5 + $0xa0] sm:$0xff]
        %v532 = vld [vmem:[#allocation5 + $0xa8] sm:$0xff]
        %v533 = vld [vmem:[#allocation5 + $0xb0] sm:$0xff]
        %v534 = vld [vmem:[#allocation5 + $0xb8] sm:$0xff]
        %v535 = vld [vmem:[#allocation5 + $0xc0] sm:$0xff]
        %v536 = vld [vmem:[#allocation5 + $0xc8] sm:$0xff]
        %v537 = vld [vmem:[#allocation5 + $0xd0] sm:$0xff]
        %v538 = vld [vmem:[#allocation5 + $0xd8] sm:$0xff]
        %v539 = vld [vmem:[#allocation5 + $0xe0] sm:$0xff]
        %v540 = vld [vmem:[#allocation5 + $0xe8] sm:$0xff]
        %v541 = vld [vmem:[#allocation5 + $0xf0] sm:$0xff]
        %v542 = vld [vmem:[#allocation5 + $0xf8] sm:$0xff]
        %v543 = vld [vmem:[#allocation5 + $0x100] sm:$0xff]
        %v544 = vld [vmem:[#allocation5 + $0x108] sm:$0xff]
        %v545 = vld [vmem:[#allocation5 + $0x110] sm:$0xff]
        %v546 = vld [vmem:[#allocation5 + $0x118] sm:$0xff]
        %v547 = vld [vmem:[#allocation5 + $0x120] sm:$0xff]
        %v548 = vld [vmem:[#allocation5 + $0x128] sm:$0xff]
        %v549 = vld [vmem:[#allocation5 + $0x130] sm:$0xff]
        %v550 = vld [vmem:[#allocation5 + $0x138] sm:$0xff]
        %v551 = vld [vmem:[#allocation5 + $0x140] sm:$0xff]
        %v552 = vld [vmem:[#allocation5 + $0x148] sm:$0xff]
        %v553 = vld [vmem:[#allocation5 + $0x150] sm:$0xff]
        %v554 = vld [vmem:[#allocation5 + $0x158] sm:$0xff]
        %v555 = vld [vmem:[#allocation5 + $0x160] sm:$0xff]
        %v556 = vld [vmem:[#allocation5 + $0x168] sm:$0xff]
        %v557 = vld [vmem:[#allocation5 + $0x170] sm:$0xff]
        %v558 = vld [vmem:[#allocation5 + $0x178] sm:$0xff]
        %v559 = vld [vmem:[#allocation5 + $0x180] sm:$0xff]
        %v560 = vld [vmem:[#allocation5 + $0x188] sm:$0xff]
        %v561 = vld [vmem:[#allocation5 + $0x190] sm:$0xff]
        %v562 = vld [vmem:[#allocation5 + $0x198] sm:$0xff]
        %v563 = vld [vmem:[#allocation5 + $0x1a0] sm:$0xff]
        %v564 = vld [vmem:[#allocation5 + $0x1a8] sm:$0xff]
        %v565 = vld [vmem:[#allocation5 + $0x1b0] sm:$0xff]
        %v566 = vld [vmem:[#allocation5 + $0x1b8] sm:$0xff]
        %v567 = vld [vmem:[#allocation5 + $0x1c0] sm:$0xff]
        %v568 = vld [vmem:[#allocation5 + $0x1c8] sm:$0xff]
        %v569 = vld [vmem:[#allocation5 + $0x1d0] sm:$0xff]
        %v570 = vld [vmem:[#allocation5 + $0x1d8] sm:$0xff]
        %v571 = vld [vmem:[#allocation5 + $0x1e0] sm:$0xff]
        %v572 = vld [vmem:[#allocation5 + $0x1e8] sm:$0xff]
        %v573 = vld [vmem:[#allocation5 + $0x1f0] sm:$0xff]
        %v574 = vld [vmem:[#allocation5 + $0x1f8] sm:$0xff]
        %v575 = vld [vmem:[#allocation5 + $0x200] sm:$0xff]
        %v576 = vld [vmem:[#allocation5 + $0x208] sm:$0xff]
        %v577 = vld [vmem:[#allocation5 + $0x210] sm:$0xff]
        %v578 = vld [vmem:[#allocation5 + $0x218] sm:$0xff]
        %v579 = vld [vmem:[#allocation5 + $0x220] sm:$0xff]
        %v580 = vld [vmem:[#allocation5 + $0x228] sm:$0xff]
        %v581 = vld [vmem:[#allocation5 + $0x230] sm:$0xff]
        %v582 = vld [vmem:[#allocation5 + $0x238] sm:$0xff]
        %v583 = vld [vmem:[#allocation5 + $0x240] sm:$0xff]
        %v584 = vld [vmem:[#allocation5 + $0x248] sm:$0xff]
        %v585 = vld [vmem:[#allocation5 + $0x250] sm:$0xff]
        %v586 = vld [vmem:[#allocation5 + $0x258] sm:$0xff]
        %v587 = vld [vmem:[#allocation5 + $0x260] sm:$0xff]
        %v588 = vld [vmem:[#allocation5 + $0x268] sm:$0xff]
        %v589 = vld [vmem:[#allocation5 + $0x270] sm:$0xff]
        %v590 = vld [vmem:[#allocation5 + $0x278] sm:$0xff]
        %v591 = vld [vmem:[#allocation5 + $0x280] sm:$0xff]
        %v592 = vld [vmem:[#allocation5 + $0x288] sm:$0xff]
        %v593 = vld [vmem:[#allocation5 + $0x290] sm:$0xff]
        %v594 = vld [vmem:[#allocation5 + $0x298] sm:$0xff]
        %v595 = vld [vmem:[#allocation5 + $0x2a0] sm:$0xff]
        %v596 = vld [vmem:[#allocation5 + $0x2a8] sm:$0xff]
        %v597 = vld [vmem:[#allocation5 + $0x2b0] sm:$0xff]
        %v598 = vld [vmem:[#allocation5 + $0x2b8] sm:$0xff]
        %v599 = vld [vmem:[#allocation5 + $0x2c0] sm:$0xff]
        %v600 = vld [vmem:[#allocation5 + $0x2c8] sm:$0xff]
        %v601 = vld [vmem:[#allocation5 + $0x2d0] sm:$0xff]
        %v602 = vld [vmem:[#allocation5 + $0x2d8] sm:$0xff]
        %v603 = vld [vmem:[#allocation5 + $0x2e0] sm:$0xff]
        %v604 = vld [vmem:[#allocation5 + $0x2e8] sm:$0xff]
        %v605 = vld [vmem:[#allocation5 + $0x2f0] sm:$0xff]
        %v606 = vld [vmem:[#allocation5 + $0x2f8] sm:$0xff]
        %v607 = vld [vmem:[#allocation5 + $0x300] sm:$0xff]
        %v608 = vld [vmem:[#allocation5 + $0x308] sm:$0xff]
        %v609 = vld [vmem:[#allocation5 + $0x310] sm:$0xff]
        %v610 = vld [vmem:[#allocation5 + $0x318] sm:$0xff]
        %v611 = vld [vmem:[#allocation5 + $0x320] sm:$0xff]
        %v612 = vld [vmem:[#allocation5 + $0x328] sm:$0xff]
        %v613 = vld [vmem:[#allocation5 + $0x330] sm:$0xff]
        %v614 = vld [vmem:[#allocation5 + $0x338] sm:$0xff]
        %v615 = vld [vmem:[#allocation5 + $0x340] sm:$0xff]
        %v616 = vld [vmem:[#allocation5 + $0x348] sm:$0xff]
        %v617 = vld [vmem:[#allocation5 + $0x350] sm:$0xff]
        %v618 = vld [vmem:[#allocation5 + $0x358] sm:$0xff]
        %v619 = vld [vmem:[#allocation5 + $0x360] sm:$0xff]
        %v620 = vld [vmem:[#allocation5 + $0x368] sm:$0xff]
        %v621 = vld [vmem:[#allocation5 + $0x370] sm:$0xff]
        %v622 = vld [vmem:[#allocation5 + $0x378] sm:$0xff]
        %v623 = vld [vmem:[#allocation5 + $0x380] sm:$0xff]
        %v624 = vld [vmem:[#allocation5 + $0x388] sm:$0xff]
        %v625 = vld [vmem:[#allocation5 + $0x390] sm:$0xff]
        %v626 = vld [vmem:[#allocation5 + $0x398] sm:$0xff]
        %v627 = vld [vmem:[#allocation5 + $0x3a0] sm:$0xff]
        %v628 = vld [vmem:[#allocation5 + $0x3a8] sm:$0xff]
        %v629 = vld [vmem:[#allocation5 + $0x3b0] sm:$0xff]
        %v630 = vld [vmem:[#allocation5 + $0x3b8] sm:$0xff]
        %v631 = vld [vmem:[#allocation5 + $0x3c0] sm:$0xff]
        %v632 = vld [vmem:[#allocation5 + $0x3c8] sm:$0xff]
        %v633 = vld [vmem:[#allocation5 + $0x3d0] sm:$0xff]
        %v634 = vld [vmem:[#allocation5 + $0x3d8] sm:$0xff]
        %v635 = vld [vmem:[#allocation5 + $0x3e0] sm:$0xff]
        %v636 = vld [vmem:[#allocation5 + $0x3e8] sm:$0xff]
        %v637 = vld [vmem:[#allocation5 + $0x3f0] sm:$0xff]
        %v638 = vld [vmem:[#allocation5 + $0x3f8] sm:$0xff]
        %v639 = vld [vmem:[#allocation5 + $0x400] sm:$0xff]
        %v640 = vld [vmem:[#allocation5 + $0x408] sm:$0xff]
        %v641 = vld [vmem:[#allocation5 + $0x410] sm:$0xff]
        %v642 = vld [vmem:[#allocation5 + $0x418] sm:$0xff]
        %v643 = vld [vmem:[#allocation5 + $0x420] sm:$0xff]
        %v644 = vld [vmem:[#allocation5 + $0x428] sm:$0xff]
        %v645 = vld [vmem:[#allocation5 + $0x430] sm:$0xff]
        %v646 = vld [vmem:[#allocation5 + $0x438] sm:$0xff]
        %v647 = vld [vmem:[#allocation5 + $0x440] sm:$0xff]
        %v648 = vld [vmem:[#allocation5 + $0x448] sm:$0xff]
        %v649 = vld [vmem:[#allocation5 + $0x450] sm:$0xff]
        %v650 = vld [vmem:[#allocation5 + $0x458] sm:$0xff]
        %v651 = vld [vmem:[#allocation5 + $0x460] sm:$0xff]
        %v652 = vld [vmem:[#allocation5 + $0x468] sm:$0xff]
        %v653 = vld [vmem:[#allocation5 + $0x470] sm:$0xff]
        %v654 = vld [vmem:[#allocation5 + $0x478] sm:$0xff]
        %v655 = vld [vmem:[#allocation5 + $0x480] sm:$0xff]
        %v656 = vld [vmem:[#allocation5 + $0x488] sm:$0xff]
        %v657 = vld [vmem:[#allocation5 + $0x490] sm:$0xff]
        %v658 = vld [vmem:[#allocation5 + $0x498] sm:$0xff]
        %v659 = vld [vmem:[#allocation5 + $0x4a0] sm:$0xff]
        %v660 = vld [vmem:[#allocation5 + $0x4a8] sm:$0xff]
        %v661 = vld [vmem:[#allocation5 + $0x4b0] sm:$0xff]
        %v662 = vld [vmem:[#allocation5 + $0x4b8] sm:$0xff]
        %v663 = vld [vmem:[#allocation5 + $0x4c0] sm:$0xff]
        %v664 = vld [vmem:[#allocation5 + $0x4c8] sm:$0xff]
        %v665 = vld [vmem:[#allocation5 + $0x4d0] sm:$0xff]
        %v666 = vld [vmem:[#allocation5 + $0x4d8] sm:$0xff]
        %v667 = vld [vmem:[#allocation5 + $0x4e0] sm:$0xff]
        %v668 = vld [vmem:[#allocation5 + $0x4e8] sm:$0xff]
        %v669 = vld [vmem:[#allocation5 + $0x4f0] sm:$0xff]
        %v670 = vld [vmem:[#allocation5 + $0x4f8] sm:$0xff]
        %v671 = vld [vmem:[#allocation5 + $0x500] sm:$0xff]
        %v672 = vld [vmem:[#allocation5 + $0x508] sm:$0xff]
        %v673 = vld [vmem:[#allocation5 + $0x510] sm:$0xff]
        %v674 = vld [vmem:[#allocation5 + $0x518] sm:$0xff]
        %v675 = vld [vmem:[#allocation5 + $0x520] sm:$0xff]
        %v676 = vld [vmem:[#allocation5 + $0x528] sm:$0xff]
        %v677 = vld [vmem:[#allocation5 + $0x530] sm:$0xff]
        %v678 = vld [vmem:[#allocation5 + $0x538] sm:$0xff]
        %v679 = vld [vmem:[#allocation5 + $0x540] sm:$0xff]
        %v680 = vld [vmem:[#allocation5 + $0x548] sm:$0xff]
        %v681 = vld [vmem:[#allocation5 + $0x550] sm:$0xff]
        %v682 = vld [vmem:[#allocation5 + $0x558] sm:$0xff]
        %v683 = vld [vmem:[#allocation5 + $0x560] sm:$0xff]
        %v684 = vld [vmem:[#allocation5 + $0x568] sm:$0xff]
        %v685 = vld [vmem:[#allocation5 + $0x570] sm:$0xff]
        %v686 = vld [vmem:[#allocation5 + $0x578] sm:$0xff]
        %v687 = vld [vmem:[#allocation5 + $0x580] sm:$0xff]
        %v688 = vld [vmem:[#allocation5 + $0x588] sm:$0xff]
        %v689 = vld [vmem:[#allocation5 + $0x590] sm:$0xff]
        %v690 = vld [vmem:[#allocation5 + $0x598] sm:$0xff]
        %v691 = vld [vmem:[#allocation5 + $0x5a0] sm:$0xff]
        %v692 = vld [vmem:[#allocation5 + $0x5a8] sm:$0xff]
        %v693 = vld [vmem:[#allocation5 + $0x5b0] sm:$0xff]
        %v694 = vld [vmem:[#allocation5 + $0x5b8] sm:$0xff]
        %v695 = vld [vmem:[#allocation5 + $0x5c0] sm:$0xff]
        %v696 = vld [vmem:[#allocation5 + $0x5c8] sm:$0xff]
        %v697 = vld [vmem:[#allocation5 + $0x5d0] sm:$0xff]
        %v698 = vld [vmem:[#allocation5 + $0x5d8] sm:$0xff]
        %v699 = vld [vmem:[#allocation5 + $0x5e0] sm:$0xff]
        %v700 = vld [vmem:[#allocation5 + $0x5e8] sm:$0xff]
        %v701 = vld [vmem:[#allocation5 + $0x5f0] sm:$0xff]
        %v702 = vld [vmem:[#allocation5 + $0x5f8] sm:$0xff]
        %v703 = vld [vmem:[#allocation5 + $0x600] sm:$0xff]
        %v704 = vld [vmem:[#allocation5 + $0x608] sm:$0xff]
        %v705 = vld [vmem:[#allocation5 + $0x610] sm:$0xff]
        %v706 = vld [vmem:[#allocation5 + $0x618] sm:$0xff]
        %v707 = vld [vmem:[#allocation5 + $0x620] sm:$0xff]
        %v708 = vld [vmem:[#allocation5 + $0x628] sm:$0xff]
        %v709 = vld [vmem:[#allocation5 + $0x630] sm:$0xff]
        %v710 = vld [vmem:[#allocation5 + $0x638] sm:$0xff]
        %v711 = vld [vmem:[#allocation5 + $0x640] sm:$0xff]
        %v712 = vld [vmem:[#allocation5 + $0x648] sm:$0xff]
        %v713 = vld [vmem:[#allocation5 + $0x650] sm:$0xff]
        %v714 = vld [vmem:[#allocation5 + $0x658] sm:$0xff]
        %v715 = vld [vmem:[#allocation5 + $0x660] sm:$0xff]
        %v716 = vld [vmem:[#allocation5 + $0x668] sm:$0xff]
        %v717 = vld [vmem:[#allocation5 + $0x670] sm:$0xff]
        %v718 = vld [vmem:[#allocation5 + $0x678] sm:$0xff]
        %v719 = vld [vmem:[#allocation5 + $0x680] sm:$0xff]
        %v720 = vld [vmem:[#allocation5 + $0x688] sm:$0xff]
        %v721 = vld [vmem:[#allocation5 + $0x690] sm:$0xff]
        %v722 = vld [vmem:[#allocation5 + $0x698] sm:$0xff]
        %v723 = vld [vmem:[#allocation5 + $0x6a0] sm:$0xff]
        %v724 = vld [vmem:[#allocation5 + $0x6a8] sm:$0xff]
        %v725 = vld [vmem:[#allocation5 + $0x6b0] sm:$0xff]
        %v726 = vld [vmem:[#allocation5 + $0x6b8] sm:$0xff]
        %v727 = vld [vmem:[#allocation5 + $0x6c0] sm:$0xff]
        %v728 = vld [vmem:[#allocation5 + $0x6c8] sm:$0xff]
        %v729 = vld [vmem:[#allocation5 + $0x6d0] sm:$0xff]
        %v730 = vld [vmem:[#allocation5 + $0x6d8] sm:$0xff]
        %v731 = vld [vmem:[#allocation5 + $0x6e0] sm:$0xff]
        %v732 = vld [vmem:[#allocation5 + $0x6e8] sm:$0xff]
        %v733 = vld [vmem:[#allocation5 + $0x6f0] sm:$0xff]
        %v734 = vld [vmem:[#allocation5 + $0x6f8] sm:$0xff]
        %v735 = vld [vmem:[#allocation5 + $0x700] sm:$0xff]
        %v736 = vld [vmem:[#allocation5 + $0x708] sm:$0xff]
        %v737 = vld [vmem:[#allocation5 + $0x710] sm:$0xff]
        %v738 = vld [vmem:[#allocation5 + $0x718] sm:$0xff]
        %v739 = vld [vmem:[#allocation5 + $0x720] sm:$0xff]
        %v740 = vld [vmem:[#allocation5 + $0x728] sm:$0xff]
        %v741 = vld [vmem:[#allocation5 + $0x730] sm:$0xff]
        %v742 = vld [vmem:[#allocation5 + $0x738] sm:$0xff]
        %v743 = vld [vmem:[#allocation5 + $0x740] sm:$0xff]
        %v744 = vld [vmem:[#allocation5 + $0x748] sm:$0xff]
        %v745 = vld [vmem:[#allocation5 + $0x750] sm:$0xff]
        %v746 = vld [vmem:[#allocation5 + $0x758] sm:$0xff]
        %v747 = vld [vmem:[#allocation5 + $0x760] sm:$0xff]
        %v748 = vld [vmem:[#allocation5 + $0x768] sm:$0xff]
        %v749 = vld [vmem:[#allocation5 + $0x770] sm:$0xff]
        %v750 = vld [vmem:[#allocation5 + $0x778] sm:$0xff]
        %v751 = vld [vmem:[#allocation5 + $0x780] sm:$0xff]
        %v752 = vld [vmem:[#allocation5 + $0x788] sm:$0xff]
        %v753 = vld [vmem:[#allocation5 + $0x790] sm:$0xff]
        %v754 = vld [vmem:[#allocation5 + $0x798] sm:$0xff]
        %v755 = vld [vmem:[#allocation5 + $0x7a0] sm:$0xff]
        %v756 = vld [vmem:[#allocation5 + $0x7a8] sm:$0xff]
        %v757 = vld [vmem:[#allocation5 + $0x7b0] sm:$0xff]
        %v758 = vld [vmem:[#allocation5 + $0x7b8] sm:$0xff]
        %v759 = vld [vmem:[#allocation5 + $0x7c0] sm:$0xff]
        %v760 = vld [vmem:[#allocation5 + $0x7c8] sm:$0xff]
        %v761 = vld [vmem:[#allocation5 + $0x7d0] sm:$0xff]
        %v762 = vld [vmem:[#allocation5 + $0x7d8] sm:$0xff]
        %v763 = vld [vmem:[#allocation5 + $0x7e0] sm:$0xff]
        %v764 = vld [vmem:[#allocation5 + $0x7e8] sm:$0xff]
        %v765 = vld [vmem:[#allocation5 + $0x7f0] sm:$0xff]
        %v766 = vld [vmem:[#allocation5 + $0x7f8] sm:$0xff]
        %v767 = vld [vmem:[#allocation5 + $0x800] sm:$0xff]
        %v768 = vld [vmem:[#allocation5 + $0x808] sm:$0xff]
        %v769 = vld [vmem:[#allocation5 + $0x810] sm:$0xff]
        %v770 = vld [vmem:[#allocation5 + $0x818] sm:$0xff]
        %v771 = vld [vmem:[#allocation5 + $0x820] sm:$0xff]
        %v772 = vld [vmem:[#allocation5 + $0x828] sm:$0xff]
        %v773 = vld [vmem:[#allocation5 + $0x830] sm:$0xff]
        %v774 = vld [vmem:[#allocation5 + $0x838] sm:$0xff]
        %v775 = vld [vmem:[#allocation5 + $0x840] sm:$0xff]
        %v776 = vld [vmem:[#allocation5 + $0x848] sm:$0xff]
        %v777 = vld [vmem:[#allocation5 + $0x850] sm:$0xff]
        %v778 = vld [vmem:[#allocation5 + $0x858] sm:$0xff]
        %v779 = vld [vmem:[#allocation5 + $0x860] sm:$0xff]
        %v780 = vld [vmem:[#allocation5 + $0x868] sm:$0xff]
        %v781 = vld [vmem:[#allocation5 + $0x870] sm:$0xff]
        %v782 = vld [vmem:[#allocation5 + $0x878] sm:$0xff]
        %v783 = vld [vmem:[#allocation5 + $0x880] sm:$0xff]
        %v784 = vld [vmem:[#allocation5 + $0x888] sm:$0xff]
        %v785 = vld [vmem:[#allocation5 + $0x890] sm:$0xff]
        %v786 = vld [vmem:[#allocation5 + $0x898] sm:$0xff]
        %v787 = vld [vmem:[#allocation5 + $0x8a0] sm:$0xff]
        %v788 = vld [vmem:[#allocation5 + $0x8a8] sm:$0xff]
        %v789 = vld [vmem:[#allocation5 + $0x8b0] sm:$0xff]
        %v790 = vld [vmem:[#allocation5 + $0x8b8] sm:$0xff]
        %v791 = vld [vmem:[#allocation5 + $0x8c0] sm:$0xff]
        %v792 = vld [vmem:[#allocation5 + $0x8c8] sm:$0xff]
        %v793 = vld [vmem:[#allocation5 + $0x8d0] sm:$0xff]
        %v794 = vld [vmem:[#allocation5 + $0x8d8] sm:$0xff]
        %v795 = vld [vmem:[#allocation5 + $0x8e0] sm:$0xff]
        %v796 = vld [vmem:[#allocation5 + $0x8e8] sm:$0xff]
        %v797 = vld [vmem:[#allocation5 + $0x8f0] sm:$0xff]
        %v798 = vld [vmem:[#allocation5 + $0x8f8] sm:$0xff]
        %v799 = vld [vmem:[#allocation5 + $0x900] sm:$0xff]
        %v800 = vld [vmem:[#allocation5 + $0x908] sm:$0xff]
        %v801 = vld [vmem:[#allocation5 + $0x910] sm:$0xff]
        %v802 = vld [vmem:[#allocation5 + $0x918] sm:$0xff]
        %v803 = vld [vmem:[#allocation5 + $0x920] sm:$0xff]
        %v804 = vld [vmem:[#allocation5 + $0x928] sm:$0xff]
        %v805 = vld [vmem:[#allocation5 + $0x930] sm:$0xff]
        %v806 = vld [vmem:[#allocation5 + $0x938] sm:$0xff]
        %v807 = vld [vmem:[#allocation5 + $0x940] sm:$0xff]
        %v808 = vld [vmem:[#allocation5 + $0x948] sm:$0xff]
        %v809 = vld [vmem:[#allocation5 + $0x950] sm:$0xff]
        %v810 = vld [vmem:[#allocation5 + $0x958] sm:$0xff]
        %v811 = vld [vmem:[#allocation5 + $0x960] sm:$0xff]
        %v812 = vld [vmem:[#allocation5 + $0x968] sm:$0xff]
        %v813 = vld [vmem:[#allocation5 + $0x970] sm:$0xff]
        %v814 = vld [vmem:[#allocation5 + $0x978] sm:$0xff]
        %v815 = vld [vmem:[#allocation5 + $0x980] sm:$0xff]
        %v816 = vld [vmem:[#allocation5 + $0x988] sm:$0xff]
        %v817 = vld [vmem:[#allocation5 + $0x990] sm:$0xff]
        %v818 = vld [vmem:[#allocation5 + $0x998] sm:$0xff]
        %v819 = vld [vmem:[#allocation5 + $0x9a0] sm:$0xff]
        %v820 = vld [vmem:[#allocation5 + $0x9a8] sm:$0xff]
        %v821 = vld [vmem:[#allocation5 + $0x9b0] sm:$0xff]
        %v822 = vld [vmem:[#allocation5 + $0x9b8] sm:$0xff]
        %v823 = vld [vmem:[#allocation5 + $0x9c0] sm:$0xff]
        %v824 = vld [vmem:[#allocation5 + $0x9c8] sm:$0xff]
        %v825 = vld [vmem:[#allocation5 + $0x9d0] sm:$0xff]
        %v826 = vld [vmem:[#allocation5 + $0x9d8] sm:$0xff]
        %v827 = vld [vmem:[#allocation5 + $0x9e0] sm:$0xff]
        %v828 = vld [vmem:[#allocation5 + $0x9e8] sm:$0xff]
        %v829 = vld [vmem:[#allocation5 + $0x9f0] sm:$0xff]
        %v830 = vld [vmem:[#allocation5 + $0x9f8] sm:$0xff]
        %v831 = vld [vmem:[#allocation5 + $0xa00] sm:$0xff]
        %v832 = vld [vmem:[#allocation5 + $0xa08] sm:$0xff]
        %v833 = vld [vmem:[#allocation5 + $0xa10] sm:$0xff]
        %v834 = vld [vmem:[#allocation5 + $0xa18] sm:$0xff]
        %v835 = vld [vmem:[#allocation5 + $0xa20] sm:$0xff]
        %v836 = vld [vmem:[#allocation5 + $0xa28] sm:$0xff]
        %v837 = vld [vmem:[#allocation5 + $0xa30] sm:$0xff]
        %v838 = vld [vmem:[#allocation5 + $0xa38] sm:$0xff]
        %v839 = vld [vmem:[#allocation5 + $0xa40] sm:$0xff]
        %v840 = vld [vmem:[#allocation5 + $0xa48] sm:$0xff]
        %v841 = vld [vmem:[#allocation5 + $0xa50] sm:$0xff]
        %v842 = vld [vmem:[#allocation5 + $0xa58] sm:$0xff]
        %v843 = vld [vmem:[#allocation5 + $0xa60] sm:$0xff]
        %v844 = vld [vmem:[#allocation5 + $0xa68] sm:$0xff]
        %v845 = vld [vmem:[#allocation5 + $0xa70] sm:$0xff]
        %v846 = vld [vmem:[#allocation5 + $0xa78] sm:$0xff]
        %v847 = vld [vmem:[#allocation5 + $0xa80] sm:$0xff]
        %v848 = vld [vmem:[#allocation5 + $0xa88] sm:$0xff]
        %v849 = vld [vmem:[#allocation5 + $0xa90] sm:$0xff]
        %v850 = vld [vmem:[#allocation5 + $0xa98] sm:$0xff]
        %v851 = vld [vmem:[#allocation5 + $0xaa0] sm:$0xff]
        %v852 = vld [vmem:[#allocation5 + $0xaa8] sm:$0xff]
        %v853 = vld [vmem:[#allocation5 + $0xab0] sm:$0xff]
        %v854 = vld [vmem:[#allocation5 + $0xab8] sm:$0xff]
        %v855 = vld [vmem:[#allocation5 + $0xac0] sm:$0xff]
        %v856 = vld [vmem:[#allocation5 + $0xac8] sm:$0xff]
        %v857 = vld [vmem:[#allocation5 + $0xad0] sm:$0xff]
        %v858 = vld [vmem:[#allocation5 + $0xad8] sm:$0xff]
        %v859 = vld [vmem:[#allocation5 + $0xae0] sm:$0xff]
        %v860 = vld [vmem:[#allocation5 + $0xae8] sm:$0xff]
        %v861 = vld [vmem:[#allocation5 + $0xaf0] sm:$0xff]
        %v862 = vld [vmem:[#allocation5 + $0xaf8] sm:$0xff]
        %v863 = vld [vmem:[#allocation5 + $0xb00] sm:$0xff]
        %v864 = vld [vmem:[#allocation5 + $0xb08] sm:$0xff]
        %v865 = vld [vmem:[#allocation5 + $0xb10] sm:$0xff]
        %v866 = vld [vmem:[#allocation5 + $0xb18] sm:$0xff]
        %v867 = vld [vmem:[#allocation5 + $0xb20] sm:$0xff]
        %v868 = vld [vmem:[#allocation5 + $0xb28] sm:$0xff]
        %v869 = vld [vmem:[#allocation5 + $0xb30] sm:$0xff]
        %v870 = vld [vmem:[#allocation5 + $0xb38] sm:$0xff]
        %v871 = vld [vmem:[#allocation5 + $0xb40] sm:$0xff]
        %v872 = vld [vmem:[#allocation5 + $0xb48] sm:$0xff]
        %v873 = vld [vmem:[#allocation5 + $0xb50] sm:$0xff]
        %v874 = vld [vmem:[#allocation5 + $0xb58] sm:$0xff]
        %v875 = vld [vmem:[#allocation5 + $0xb60] sm:$0xff]
        %v876 = vld [vmem:[#allocation5 + $0xb68] sm:$0xff]
        %v877 = vld [vmem:[#allocation5 + $0xb70] sm:$0xff]
        %v878 = vld [vmem:[#allocation5 + $0xb78] sm:$0xff]
        %v879 = vld [vmem:[#allocation5 + $0xb80] sm:$0xff]
        %v880 = vld [vmem:[#allocation5 + $0xb88] sm:$0xff]
        %v881 = vld [vmem:[#allocation5 + $0xb90] sm:$0xff]
        %v882 = vld [vmem:[#allocation5 + $0xb98] sm:$0xff]
        %v883 = vld [vmem:[#allocation5 + $0xba0] sm:$0xff]
        %v884 = vld [vmem:[#allocation5 + $0xba8] sm:$0xff]
        %v885 = vld [vmem:[#allocation5 + $0xbb0] sm:$0xff]
        %v886 = vld [vmem:[#allocation5 + $0xbb8] sm:$0xff]
        %v887 = vld [vmem:[#allocation5 + $0xbc0] sm:$0xff]
        %v888 = vld [vmem:[#allocation5 + $0xbc8] sm:$0xff]
        %v889 = vld [vmem:[#allocation5 + $0xbd0] sm:$0xff]
        %v890 = vld [vmem:[#allocation5 + $0xbd8] sm:$0xff]
        %v891 = vld [vmem:[#allocation5 + $0xbe0] sm:$0xff]
        %v892 = vld [vmem:[#allocation5 + $0xbe8] sm:$0xff]
        %v893 = vld [vmem:[#allocation5 + $0xbf0] sm:$0xff]
        %v894 = vld [vmem:[#allocation5 + $0xbf8] sm:$0xff]
        %v895 = vld [vmem:[#allocation5 + $0xc00] sm:$0xff]
        %v896 = vld [vmem:[#allocation5 + $0xc08] sm:$0xff]
        %v897 = vld [vmem:[#allocation5 + $0xc10] sm:$0xff]
        %v898 = vld [vmem:[#allocation5 + $0xc18] sm:$0xff]
        %v899 = vld [vmem:[#allocation5 + $0xc20] sm:$0xff]
        %v900 = vld [vmem:[#allocation5 + $0xc28] sm:$0xff]
        %v901 = vld [vmem:[#allocation5 + $0xc30] sm:$0xff]
        %v902 = vld [vmem:[#allocation5 + $0xc38] sm:$0xff]
        %v903 = vld [vmem:[#allocation5 + $0xc40] sm:$0xff]
        %v904 = vld [vmem:[#allocation5 + $0xc48] sm:$0xff]
        %v905 = vld [vmem:[#allocation5 + $0xc50] sm:$0xff]
        %v906 = vld [vmem:[#allocation5 + $0xc58] sm:$0xff]
        %v907 = vld [vmem:[#allocation5 + $0xc60] sm:$0xff]
        %v908 = vld [vmem:[#allocation5 + $0xc68] sm:$0xff]
        %v909 = vld [vmem:[#allocation5 + $0xc70] sm:$0xff]
        %v910 = vld [vmem:[#allocation5 + $0xc78] sm:$0xff]
        %v911 = vld [vmem:[#allocation5 + $0xc80] sm:$0xff]
        %v912 = vld [vmem:[#allocation5 + $0xc88] sm:$0xff]
        %v913 = vld [vmem:[#allocation5 + $0xc90] sm:$0xff]
        %v914 = vld [vmem:[#allocation5 + $0xc98] sm:$0xff]
        %v915 = vld [vmem:[#allocation5 + $0xca0] sm:$0xff]
        %v916 = vld [vmem:[#allocation5 + $0xca8] sm:$0xff]
        %v917 = vld [vmem:[#allocation5 + $0xcb0] sm:$0xff]
        %v918 = vld [vmem:[#allocation5 + $0xcb8] sm:$0xff]
        %v919 = vld [vmem:[#allocation5 + $0xcc0] sm:$0xff]
        %v920 = vld [vmem:[#allocation5 + $0xcc8] sm:$0xff]
        %v921 = vld [vmem:[#allocation5 + $0xcd0] sm:$0xff]
        %v922 = vld [vmem:[#allocation5 + $0xcd8] sm:$0xff]
        %v923 = vld [vmem:[#allocation5 + $0xce0] sm:$0xff]
        %v924 = vld [vmem:[#allocation5 + $0xce8] sm:$0xff]
        %v925 = vld [vmem:[#allocation5 + $0xcf0] sm:$0xff]
        %v926 = vld [vmem:[#allocation5 + $0xcf8] sm:$0xff]
        %v927 = vld [vmem:[#allocation5 + $0xd00] sm:$0xff]
        %v928 = vld [vmem:[#allocation5 + $0xd08] sm:$0xff]
        %v929 = vld [vmem:[#allocation5 + $0xd10] sm:$0xff]
        %v930 = vld [vmem:[#allocation5 + $0xd18] sm:$0xff]
        %v931 = vld [vmem:[#allocation5 + $0xd20] sm:$0xff]
        %v932 = vld [vmem:[#allocation5 + $0xd28] sm:$0xff]
        %v933 = vld [vmem:[#allocation5 + $0xd30] sm:$0xff]
        %v934 = vld [vmem:[#allocation5 + $0xd38] sm:$0xff]
        %v935 = vld [vmem:[#allocation5 + $0xd40] sm:$0xff]
        %v936 = vld [vmem:[#allocation5 + $0xd48] sm:$0xff]
        %v937 = vld [vmem:[#allocation5 + $0xd50] sm:$0xff]
        %v938 = vld [vmem:[#allocation5 + $0xd58] sm:$0xff]
        %v939 = vld [vmem:[#allocation5 + $0xd60] sm:$0xff]
        %v940 = vld [vmem:[#allocation5 + $0xd68] sm:$0xff]
        %v941 = vld [vmem:[#allocation5 + $0xd70] sm:$0xff]
        %v942 = vld [vmem:[#allocation5 + $0xd78] sm:$0xff]
        %v943 = vld [vmem:[#allocation5 + $0xd80] sm:$0xff]
        %v944 = vld [vmem:[#allocation5 + $0xd88] sm:$0xff]
        %v945 = vld [vmem:[#allocation5 + $0xd90] sm:$0xff]
        %v946 = vld [vmem:[#allocation5 + $0xd98] sm:$0xff]
        %v947 = vld [vmem:[#allocation5 + $0xda0] sm:$0xff]
        %v948 = vld [vmem:[#allocation5 + $0xda8] sm:$0xff]
        %v949 = vld [vmem:[#allocation5 + $0xdb0] sm:$0xff]
        %v950 = vld [vmem:[#allocation5 + $0xdb8] sm:$0xff]
        %v951 = vld [vmem:[#allocation5 + $0xdc0] sm:$0xff]
        %v952 = vld [vmem:[#allocation5 + $0xdc8] sm:$0xff]
        %v953 = vld [vmem:[#allocation5 + $0xdd0] sm:$0xff]
        %v954 = vld [vmem:[#allocation5 + $0xdd8] sm:$0xff]
        %v955 = vld [vmem:[#allocation5 + $0xde0] sm:$0xff]
        %v956 = vld [vmem:[#allocation5 + $0xde8] sm:$0xff]
        %v957 = vld [vmem:[#allocation5 + $0xdf0] sm:$0xff]
        %v958 = vld [vmem:[#allocation5 + $0xdf8] sm:$0xff]
        %v959 = vld [vmem:[#allocation5 + $0xe00] sm:$0xff]
        %v960 = vld [vmem:[#allocation5 + $0xe08] sm:$0xff]
        %v961 = vld [vmem:[#allocation5 + $0xe10] sm:$0xff]
        %v962 = vld [vmem:[#allocation5 + $0xe18] sm:$0xff]
        %v963 = vld [vmem:[#allocation5 + $0xe20] sm:$0xff]
        %v964 = vld [vmem:[#allocation5 + $0xe28] sm:$0xff]
        %v965 = vld [vmem:[#allocation5 + $0xe30] sm:$0xff]
        %v966 = vld [vmem:[#allocation5 + $0xe38] sm:$0xff]
        %v967 = vld [vmem:[#allocation5 + $0xe40] sm:$0xff]
        %v968 = vld [vmem:[#allocation5 + $0xe48] sm:$0xff]
        %v969 = vld [vmem:[#allocation5 + $0xe50] sm:$0xff]
        %v970 = vld [vmem:[#allocation5 + $0xe58] sm:$0xff]
        %v971 = vld [vmem:[#allocation5 + $0xe60] sm:$0xff]
        %v972 = vld [vmem:[#allocation5 + $0xe68] sm:$0xff]
        %v973 = vld [vmem:[#allocation5 + $0xe70] sm:$0xff]
        %v974 = vld [vmem:[#allocation5 + $0xe78] sm:$0xff]
        %v975 = vld [vmem:[#allocation5 + $0xe80] sm:$0xff]
        %v976 = vld [vmem:[#allocation5 + $0xe88] sm:$0xff]
        %v977 = vld [vmem:[#allocation5 + $0xe90] sm:$0xff]
        %v978 = vld [vmem:[#allocation5 + $0xe98] sm:$0xff]
        %v979 = vld [vmem:[#allocation5 + $0xea0] sm:$0xff]
        %v980 = vld [vmem:[#allocation5 + $0xea8] sm:$0xff]
        %v981 = vld [vmem:[#allocation5 + $0xeb0] sm:$0xff]
        %v982 = vld [vmem:[#allocation5 + $0xeb8] sm:$0xff]
        %v983 = vld [vmem:[#allocation5 + $0xec0] sm:$0xff]
        %v984 = vld [vmem:[#allocation5 + $0xec8] sm:$0xff]
        %v985 = vld [vmem:[#allocation5 + $0xed0] sm:$0xff]
        %v986 = vld [vmem:[#allocation5 + $0xed8] sm:$0xff]
        %v987 = vld [vmem:[#allocation5 + $0xee0] sm:$0xff]
        %v988 = vld [vmem:[#allocation5 + $0xee8] sm:$0xff]
        %v989 = vld [vmem:[#allocation5 + $0xef0] sm:$0xff]
        %v990 = vld [vmem:[#allocation5 + $0xef8] sm:$0xff]
        %v991 = vld [vmem:[#allocation5 + $0xf00] sm:$0xff]
        %v992 = vld [vmem:[#allocation5 + $0xf08] sm:$0xff]
        %v993 = vld [vmem:[#allocation5 + $0xf10] sm:$0xff]
        %v994 = vld [vmem:[#allocation5 + $0xf18] sm:$0xff]
        %v995 = vld [vmem:[#allocation5 + $0xf20] sm:$0xff]
        %v996 = vld [vmem:[#allocation5 + $0xf28] sm:$0xff]
        %v997 = vld [vmem:[#allocation5 + $0xf30] sm:$0xff]
        %v998 = vld [vmem:[#allocation5 + $0xf38] sm:$0xff]
        %v999 = vld [vmem:[#allocation5 + $0xf40] sm:$0xff]
        %v1000 = vld [vmem:[#allocation5 + $0xf48] sm:$0xff]
        %v1001 = vld [vmem:[#allocation5 + $0xf50] sm:$0xff]
        %v1002 = vld [vmem:[#allocation5 + $0xf58] sm:$0xff]
        %v1003 = vld [vmem:[#allocation5 + $0xf60] sm:$0xff]
        %v1004 = vld [vmem:[#allocation5 + $0xf68] sm:$0xff]
        %v1005 = vld [vmem:[#allocation5 + $0xf70] sm:$0xff]
        %v1006 = vld [vmem:[#allocation5 + $0xf78] sm:$0xff]
        %v1007 = vld [vmem:[#allocation5 + $0xf80] sm:$0xff]
        %v1008 = vld [vmem:[#allocation5 + $0xf88] sm:$0xff]
        %v1009 = vld [vmem:[#allocation5 + $0xf90] sm:$0xff]
        %v1010 = vld [vmem:[#allocation5 + $0xf98] sm:$0xff]
        %v1011 = vld [vmem:[#allocation5 + $0xfa0] sm:$0xff]
        %v1012 = vld [vmem:[#allocation5 + $0xfa8] sm:$0xff]
        %v1013 = vld [vmem:[#allocation5 + $0xfb0] sm:$0xff]
        %v1014 = vld [vmem:[#allocation5 + $0xfb8] sm:$0xff]
        %v1015 = vld [vmem:[#allocation5 + $0xfc0] sm:$0xff]
        %v1016 = vld [vmem:[#allocation5 + $0xfc8] sm:$0xff]
        %v1017 = vld [vmem:[#allocation5 + $0xfd0] sm:$0xff]
        %v1018 = vld [vmem:[#allocation5 + $0xfd8] sm:$0xff]
        %v1019 = vld [vmem:[#allocation5 + $0xfe0] sm:$0xff]
        %v1020 = vld [vmem:[#allocation5 + $0xfe8] sm:$0xff]
        %v1021 = vld [vmem:[#allocation5 + $0xff0] sm:$0xff]
        %v1022 = vld [vmem:[#allocation5 + $0xff8] sm:$0xff]
        %v1023 = vld [vmem:[#allocation5 + $0x1000] sm:$0xff]
        %v1024 = vld [vmem:[#allocation5 + $0x1008] sm:$0xff]
        %v1025 = vld [vmem:[#allocation5 + $0x1010] sm:$0xff]
        %v1026 = vld [vmem:[#allocation5 + $0x1018] sm:$0xff]
        %v1027 = vld [vmem:[#allocation5 + $0x1020] sm:$0xff]
        %v1028 = vld [vmem:[#allocation5 + $0x1028] sm:$0xff]
        %v1029 = vld [vmem:[#allocation5 + $0x1030] sm:$0xff]
        %v1030 = vld [vmem:[#allocation5 + $0x1038] sm:$0xff]
        %v1031 = vld [vmem:[#allocation5 + $0x1040] sm:$0xff]
        %v1032 = vld [vmem:[#allocation5 + $0x1048] sm:$0xff]
        %v1033 = vld [vmem:[#allocation5 + $0x1050] sm:$0xff]
        %v1034 = vld [vmem:[#allocation5 + $0x1058] sm:$0xff]
        %v1035 = vld [vmem:[#allocation5 + $0x1060] sm:$0xff]
        %v1036 = vld [vmem:[#allocation5 + $0x1068] sm:$0xff]
        %v1037 = vld [vmem:[#allocation5 + $0x1070] sm:$0xff]
        %v1038 = vld [vmem:[#allocation5 + $0x1078] sm:$0xff]
        %v1039 = vld [vmem:[#allocation5 + $0x1080] sm:$0xff]
        %v1040 = vld [vmem:[#allocation5 + $0x1088] sm:$0xff]
        %v1041 = vld [vmem:[#allocation5 + $0x1090] sm:$0xff]
        %v1042 = vld [vmem:[#allocation5 + $0x1098] sm:$0xff]
        %v1043 = vld [vmem:[#allocation5 + $0x10a0] sm:$0xff]
        %v1044 = vld [vmem:[#allocation5 + $0x10a8] sm:$0xff]
        %v1045 = vld [vmem:[#allocation5 + $0x10b0] sm:$0xff]
        %v1046 = vld [vmem:[#allocation5 + $0x10b8] sm:$0xff]
        %v1047 = vld [vmem:[#allocation5 + $0x10c0] sm:$0xff]
        %v1048 = vld [vmem:[#allocation5 + $0x10c8] sm:$0xff]
        %v1049 = vld [vmem:[#allocation5 + $0x10d0] sm:$0xff]
        %v1050 = vld [vmem:[#allocation5 + $0x10d8] sm:$0xff]
        %v1051 = vld [vmem:[#allocation5 + $0x10e0] sm:$0xff]
        %v1052 = vld [vmem:[#allocation5 + $0x10e8] sm:$0xff]
        %v1053 = vld [vmem:[#allocation5 + $0x10f0] sm:$0xff]
        %v1054 = vld [vmem:[#allocation5 + $0x10f8] sm:$0xff]
        %v1055 = vld [vmem:[#allocation5 + $0x1100] sm:$0xff]
        %v1056 = vld [vmem:[#allocation5 + $0x1108] sm:$0xff]
        %v1057 = vld [vmem:[#allocation5 + $0x1110] sm:$0xff]
        %v1058 = vld [vmem:[#allocation5 + $0x1118] sm:$0xff]
        %v1059 = vld [vmem:[#allocation5 + $0x1120] sm:$0xff]
        %v1060 = vld [vmem:[#allocation5 + $0x1128] sm:$0xff]
        %v1061 = vld [vmem:[#allocation5 + $0x1130] sm:$0xff]
        %v1062 = vld [vmem:[#allocation5 + $0x1138] sm:$0xff]
        %v1063 = vld [vmem:[#allocation5 + $0x1140] sm:$0xff]
        %v1064 = vld [vmem:[#allocation5 + $0x1148] sm:$0xff]
        %v1065 = vld [vmem:[#allocation5 + $0x1150] sm:$0xff]
        %v1066 = vld [vmem:[#allocation5 + $0x1158] sm:$0xff]
        %v1067 = vld [vmem:[#allocation5 + $0x1160] sm:$0xff]
        %v1068 = vld [vmem:[#allocation5 + $0x1168] sm:$0xff]
        %v1069 = vld [vmem:[#allocation5 + $0x1170] sm:$0xff]
        %v1070 = vld [vmem:[#allocation5 + $0x1178] sm:$0xff]
        %v1071 = vld [vmem:[#allocation5 + $0x1180] sm:$0xff]
        %v1072 = vld [vmem:[#allocation5 + $0x1188] sm:$0xff]
        %v1073 = vld [vmem:[#allocation5 + $0x1190] sm:$0xff]
        %v1074 = vld [vmem:[#allocation5 + $0x1198] sm:$0xff]
        %v1075 = vld [vmem:[#allocation5 + $0x11a0] sm:$0xff]
        %v1076 = vld [vmem:[#allocation5 + $0x11a8] sm:$0xff]
        %v1077 = vld [vmem:[#allocation5 + $0x11b0] sm:$0xff]
        %v1078 = vld [vmem:[#allocation5 + $0x11b8] sm:$0xff]
        %v1079 = vld [vmem:[#allocation5 + $0x11c0] sm:$0xff]
        %v1080 = vld [vmem:[#allocation5 + $0x11c8] sm:$0xff]
        %v1081 = vld [vmem:[#allocation5 + $0x11d0] sm:$0xff]
        %v1082 = vld [vmem:[#allocation5 + $0x11d8] sm:$0xff]
        %v1083 = vld [vmem:[#allocation5 + $0x11e0] sm:$0xff]
        %v1084 = vld [vmem:[#allocation5 + $0x11e8] sm:$0xff]
        %v1085 = vld [vmem:[#allocation5 + $0x11f0] sm:$0xff]
        %v1086 = vld [vmem:[#allocation5 + $0x11f8] sm:$0xff]
        %v1087 = vld [vmem:[#allocation7] sm:$0x3f]
        %v1088 = vld [vmem:[#allocation10] sm:$0x3f]
        %v1089 = vld [vmem:[#allocation11] sm:$0x3f]
        %v1091 = vlaneseq
        %v1092 = vshrl.u32 %v1091, 7
        %v1093 = vsub.s32 0, %v1092
        %v1094 = vrot.slane %v1087, %v1093
        %v1095 = vlaneseq
        %v1096 = vshrl.u32 %v1095, 7
        %v1097 = vsub.s32 1, %v1096
        %v1098 = vrot.slane %v1087, %v1097
        %v1099 = vlaneseq
        %v1100 = vshrl.u32 %v1099, 7
        %v1101 = vsub.s32 2, %v1100
        %v1102 = vrot.slane %v1087, %v1101
        %v1103 = vlaneseq
        %v1104 = vshrl.u32 %v1103, 7
        %v1105 = vsub.s32 3, %v1104
        %v1106 = vrot.slane %v1087, %v1105
        %v1107 = vlaneseq
        %v1108 = vshrl.u32 %v1107, 7
        %v1109 = vsub.s32 4, %v1108
        %v1110 = vrot.slane %v1087, %v1109
        %v1111 = vlaneseq
        %v1112 = vshrl.u32 %v1111, 7
        %v1113 = vsub.s32 5, %v1112
        %v1114 = vrot.slane %v1087, %v1113
        %1121 = vmatprep.subr.mxu0 %v512
        %1122 = vmatpush1.msra.mxu0 %v511
        %1123 = vmatprep.subr.mxu0 %v518
        %1124 = vmatpush1.msra.mxu0 %v517
        %1125 = vmatprep.subr.mxu0 %v524
        %1126 = vmatpush1.msra.mxu0 %v523
        %1127 = vmatprep.subr.mxu0 %v530
        %1128 = vmatpush1.msra.mxu0 %v529
        %1129 = vmatprep.subr.mxu0 %v536
        %1130 = vmatpush1.msra.mxu0 %v535
        %1131 = vmatprep.subr.mxu0 %v542
        %1132 = vmatpush1.msra.mxu0 %v541
        %1133 = vmatprep.subr.mxu0 %v548
        %1134 = vmatpush1.msra.mxu0 %v547
        %1135 = vmatprep.subr.mxu0 %v554
        %1136 = vmatpush1.msra.mxu0 %v553
        %1137 = vmatprep.subr.mxu0 %v560
        %1138 = vmatpush1.msra.mxu0 %v559
        %1139 = vmatprep.subr.mxu0 %v566
        %1140 = vmatpush1.msra.mxu0 %v565
        %1141 = vmatprep.subr.mxu0 %v572
        %1142 = vmatpush1.msra.mxu0 %v571
        %1143 = vmatprep.subr.mxu0 %v578
        %1144 = vmatpush1.msra.mxu0 %v577
        %1145 = vmatprep.subr.mxu0 %v584
        %1146 = vmatpush1.msra.mxu0 %v583
        %1147 = vmatprep.subr.mxu0 %v590
        %1148 = vmatpush1.msra.mxu0 %v589
        %1149 = vmatprep.subr.mxu0 %v596
        %1150 = vmatpush1.msra.mxu0 %v595
        %1151 = vmatprep.subr.mxu0 %v602
        %1152 = vmatpush1.msra.mxu0 %v601
        %1153 = vmatprep.subr.mxu0 %v608
        %1154 = vmatpush1.msra.mxu0 %v607
        %1155 = vmatprep.subr.mxu0 %v614
        %1156 = vmatpush1.msra.mxu0 %v613
        %1157 = vmatprep.subr.mxu0 %v620
        %1158 = vmatpush1.msra.mxu0 %v619
        %1159 = vmatprep.subr.mxu0 %v626
        %1160 = vmatpush1.msra.mxu0 %v625
        %1161 = vmatprep.subr.mxu0 %v632
        %1162 = vmatpush1.msra.mxu0 %v631
        %1163 = vmatprep.subr.mxu0 %v638
        %1164 = vmatpush1.msra.mxu0 %v637
        %1165 = vmatprep.subr.mxu0 %v644
        %1166 = vmatpush1.msra.mxu0 %v643
        %1167 = vmatprep.subr.mxu0 %v650
        %1168 = vmatpush1.msra.mxu0 %v649
        %1169 = vmatprep.subr.mxu0 %v656
        %1170 = vmatpush1.msra.mxu0 %v655
        %1171 = vmatprep.subr.mxu0 %v662
        %1172 = vmatpush1.msra.mxu0 %v661
        %1173 = vmatprep.subr.mxu0 %v668
        %1174 = vmatpush1.msra.mxu0 %v667
        %1175 = vmatprep.subr.mxu0 %v674
        %1176 = vmatpush1.msra.mxu0 %v673
        %1177 = vmatprep.subr.mxu0 %v680
        %1178 = vmatpush1.msra.mxu0 %v679
        %1179 = vmatprep.subr.mxu0 %v686
        %1180 = vmatpush1.msra.mxu0 %v685
        %1181 = vmatprep.subr.mxu0 %v692
        %1182 = vmatpush1.msra.mxu0 %v691
        %1183 = vmatprep.subr.mxu0 %v698
        %1184 = vmatpush1.msra.mxu0 %v697
        %1185 = vmatprep.mubr.f32.mxu0 %v368
        %1186 = vmatmul.mubr.f32.gmra.mrb[0].mxu0 %v367
        %v1187 = vpop.f32.mrb[0].mxu0
        %v1188 = vadd.f32 %v1094, %v1187
        %v1189 = vpop.f32.mrb[0].mxu0
        %v1190 = vadd.f32 %v1098, %v1189
        %1191 = vmatprep.mubr.f32.mxu0 %v374
        %1192 = vmatmul.mubr.f32.gmra.mrb[0].mxu0 %v373
        %v1193 = vpop.f32.mrb[0].mxu0
        %v1194 = vadd.f32 %v1094, %v1193
        %v1195 = vpop.f32.mrb[0].mxu0
        %v1196 = vadd.f32 %v1098, %v1195
        %1197 = vmatprep.mubr.f32.mxu0 %v380
        %1198 = vmatmul.mubr.f32.gmra.mrb[0].mxu0 %v379
        %v1199 = vpop.f32.mrb[0].mxu0
        %v1200 = vadd.f32 %v1094, %v1199
        %v1201 = vpop.f32.mrb[0].mxu0
        %v1202 = vadd.f32 %v1098, %v1201
        %1203 = vmatprep.mubr.f32.mxu0 %v386
        %1204 = vmatmul.mubr.f32.gmra.mrb[0].mxu0 %v385
        %v1205 = vpop.f32.mrb[0].mxu0
        %v1206 = vadd.f32 %v1094, %v1205
        %v1207 = vpop.f32.mrb[0].mxu0
        %v1208 = vadd.f32 %v1098, %v1207
        %1209 = vmatprep.mubr.f32.mxu0 %v392
        %1210 = vmatmul.mubr.f32.gmra.mrb[0].mxu0 %v391
        %v1211 = vpop.f32.mrb[0].mxu0
        %v1212 = vadd.f32 %v1094, %v1211
        %v1213 = vpop.f32.mrb[0].mxu0
        %v1214 = vadd.f32 %v1098, %v1213
        %1215 = vmatprep.mubr.f32.mxu0 %v398
        %1216 = vmatmul.mubr.f32.gmra.mrb[0].mxu0 %v397
        %v1217 = vpop.f32.mrb[0].mxu0
        %v1218 = vadd.f32 %v1094, %v1217
        %v1219 = vpop.f32.mrb[0].mxu0
        %v1220 = vadd.f32 %v1098, %v1219
        %1221 = vmatprep.mubr.f32.mxu0 %v404
        %1222 = vmatmul.mubr.f32.gmra.mrb[0].mxu0 %v403
        %v1223 = vpop.f32.mrb[0].mxu0
        %v1224 = vadd.f32 %v1094, %v1223
        %v1225 = vpop.f32.mrb[0].mxu0
        %v1226 = vadd.f32 %v1098, %v1225
        %1227 = vmatprep.mubr.f32.mxu0 %v410
        %1228 = vmatmul.mubr.f32.gmra.mrb[0].mxu0 %v409
        %v1229 = vpop.f32.mrb[0].mxu0
        %v1230 = vadd.f32 %v1094, %v1229
        %v1231 = vpop.f32.mrb[0].mxu0
        %v1232 = vadd.f32 %v1098, %v1231
        %1233 = vmatprep.mubr.f32.mxu0 %v416
        %1234 = vmatmul.mubr.f32.gmra.mrb[0].mxu0 %v415
        %v1235 = vpop.f32.mrb[0].mxu0
        %v1236 = vadd.f32 %v1094, %v1235
        %v1237 = vpop.f32.mrb[0].mxu0
        %v1238 = vadd.f32 %v1098, %v1237
        %1239 = vmatprep.mubr.f32.mxu0 %v422
        %1240 = vmatmul.mubr.f32.gmra.mrb[0].mxu0 %v421
        %v1241 = vpop.f32.mrb[0].mxu0
        %v1242 = vadd.f32 %v1094, %v1241
        %v1243 = vpop.f32.mrb[0].mxu0
        %v1244 = vadd.f32 %v1098, %v1243
        %1245 = vmatprep.mubr.f32.mxu0 %v428
        %1246 = vmatmul.mubr.f32.gmra.mrb[0].mxu0 %v427
        %v1247 = vpop.f32.mrb[0].mxu0
        %v1248 = vadd.f32 %v1094, %v1247
        %v1249 = vpop.f32.mrb[0].mxu0
        %v1250 = vadd.f32 %v1098, %v1249
        %1251 = vmatprep.mubr.f32.mxu0 %v434
        %1252 = vmatmul.mubr.f32.gmra.mrb[0].mxu0 %v433
        %v1253 = vpop.f32.mrb[0].mxu0
        %v1254 = vadd.f32 %v1094, %v1253
        %v1255 = vpop.f32.mrb[0].mxu0
        %v1256 = vadd.f32 %v1098, %v1255
        %1257 = vmatprep.mubr.f32.mxu0 %v440
        %1258 = vmatmul.mubr.f32.gmra.mrb[0].mxu0 %v439
        %v1259 = vpop.f32.mrb[0].mxu0
        %v1260 = vadd.f32 %v1094, %v1259
        %v1261 = vpop.f32.mrb[0].mxu0
        %v1262 = vadd.f32 %v1098, %v1261
        %1263 = vmatprep.mubr.f32.mxu0 %v446
        %1264 = vmatmul.mubr.f32.gmra.mrb[0].mxu0 %v445
        %v1265 = vpop.f32.mrb[0].mxu0
        %v1266 = vadd.f32 %v1094, %v1265
        %v1267 = vpop.f32.mrb[0].mxu0
        %v1268 = vadd.f32 %v1098, %v1267
        %1269 = vmatprep.mubr.f32.mxu0 %v452
        %1270 = vmatmul.mubr.f32.gmra.mrb[0].mxu0 %v451
        %v1271 = vpop.f32.mrb[0].mxu0
        %v1272 = vadd.f32 %v1094, %v1271
        %v1273 = vpop.f32.mrb[0].mxu0
        %v1274 = vadd.f32 %v1098, %v1273
        %1275 = vmatprep.mubr.f32.mxu0 %v458
        %1276 = vmatmul.mubr.f32.gmra.mrb[0].mxu0 %v457
        %v1277 = vpop.f32.mrb[0].mxu0
        %v1278 = vadd.f32 %v1094, %v1277
        %v1279 = vpop.f32.mrb[0].mxu0
        %v1280 = vadd.f32 %v1098, %v1279
        %1281 = vmatprep.mubr.f32.mxu0 %v464
        %1282 = vmatmul.mubr.f32.gmra.mrb[0].mxu0 %v463
        %v1283 = vpop.f32.mrb[0].mxu0
        %v1284 = vadd.f32 %v1094, %v1283
        %v1285 = vpop.f32.mrb[0].mxu0
        %v1286 = vadd.f32 %v1098, %v1285
        %1287 = vmatprep.mubr.f32.mxu0 %v470
        %1288 = vmatmul.mubr.f32.gmra.mrb[0].mxu0 %v469
        %v1289 = vpop.f32.mrb[0].mxu0
        %v1290 = vadd.f32 %v1094, %v1289
        %v1291 = vpop.f32.mrb[0].mxu0
        %v1292 = vadd.f32 %v1098, %v1291
        %1293 = vmatprep.mubr.f32.mxu0 %v476
        %1294 = vmatmul.mubr.f32.gmra.mrb[0].mxu0 %v475
        %v1295 = vpop.f32.mrb[0].mxu0
        %v1296 = vadd.f32 %v1094, %v1295
        %v1297 = vpop.f32.mrb[0].mxu0
        %v1298 = vadd.f32 %v1098, %v1297
        %1299 = vmatprep.mubr.f32.mxu0 %v482
        %1300 = vmatmul.mubr.f32.gmra.mrb[0].mxu0 %v481
        %v1301 = vpop.f32.mrb[0].mxu0
        %v1302 = vadd.f32 %v1094, %v1301
        %v1303 = vpop.f32.mrb[0].mxu0
        %v1304 = vadd.f32 %v1098, %v1303
        %1305 = vmatprep.mubr.f32.mxu0 %v488
        %1306 = vmatmul.mubr.f32.gmra.mrb[0].mxu0 %v487
        %v1307 = vpop.f32.mrb[0].mxu0
        %v1308 = vadd.f32 %v1094, %v1307
        %v1309 = vpop.f32.mrb[0].mxu0
        %v1310 = vadd.f32 %v1098, %v1309
        %1311 = vmatprep.mubr.f32.mxu0 %v494
        %1312 = vmatmul.mubr.f32.gmra.mrb[0].mxu0 %v493
        %v1313 = vpop.f32.mrb[0].mxu0
        %v1314 = vadd.f32 %v1094, %v1313
        %v1315 = vpop.f32.mrb[0].mxu0
        %v1316 = vadd.f32 %v1098, %v1315
        %1317 = vmatprep.mubr.f32.mxu0 %v500
        %1318 = vmatmul.mubr.f32.gmra.mrb[0].mxu0 %v499
        %v1319 = vpop.f32.mrb[0].mxu0
        %v1320 = vadd.f32 %v1094, %v1319
        %v1321 = vpop.f32.mrb[0].mxu0
        %v1322 = vadd.f32 %v1098, %v1321
        %1323 = vmatprep.mubr.f32.mxu0 %v506
        %1324 = vmatmul.mubr.f32.gmra.mrb[0].mxu0 %v505
        %v1325 = vpop.f32.mrb[0].mxu0
        %v1326 = vadd.f32 %v1094, %v1325
        %v1327 = vpop.f32.mrb[0].mxu0
        %v1328 = vadd.f32 %v1098, %v1327
        %1329 = vdwg.mxu0
        %1330 = vmatprep.subr.mxu0 %v704
        %1331 = vmatpush1.msra.mxu0 %v703
        %1332 = vmatprep.subr.mxu0 %v710
        %1333 = vmatpush1.msra.mxu0 %v709
        %1334 = vmatprep.subr.mxu0 %v716
        %1335 = vmatpush1.msra.mxu0 %v715
        %1336 = vmatprep.subr.mxu0 %v722
        %1337 = vmatpush1.msra.mxu0 %v721
        %1338 = vmatprep.subr.mxu0 %v728
        %1339 = vmatpush1.msra.mxu0 %v727
        %1340 = vmatprep.subr.mxu0 %v734
        %1341 = vmatpush1.msra.mxu0 %v733
        %1342 = vmatprep.subr.mxu0 %v740
        %1343 = vmatpush1.msra.mxu0 %v739
        %1344 = vmatprep.subr.mxu0 %v746
        %1345 = vmatpush1.msra.mxu0 %v745
        %1346 = vmatprep.subr.mxu0 %v752
        %1347 = vmatpush1.msra.mxu0 %v751
        %1348 = vmatprep.subr.mxu0 %v758
        %1349 = vmatpush1.msra.mxu0 %v757
        %1350 = vmatprep.subr.mxu0 %v764
        %1351 = vmatpush1.msra.mxu0 %v763
        %1352 = vmatprep.subr.mxu0 %v770
        %1353 = vmatpush1.msra.mxu0 %v769
        %1354 = vmatprep.subr.mxu0 %v776
        %1355 = vmatpush1.msra.mxu0 %v775
        %1356 = vmatprep.subr.mxu0 %v782
        %1357 = vmatpush1.msra.mxu0 %v781
        %1358 = vmatprep.subr.mxu0 %v788
        %1359 = vmatpush1.msra.mxu0 %v787
        %1360 = vmatprep.subr.mxu0 %v794
        %1361 = vmatpush1.msra.mxu0 %v793
        %1362 = vmatprep.subr.mxu0 %v800
        %1363 = vmatpush1.msra.mxu0 %v799
        %1364 = vmatprep.subr.mxu0 %v806
        %1365 = vmatpush1.msra.mxu0 %v805
        %1366 = vmatprep.subr.mxu0 %v812
        %1367 = vmatpush1.msra.mxu0 %v811
        %1368 = vmatprep.subr.mxu0 %v818
        %1369 = vmatpush1.msra.mxu0 %v817
        %1370 = vmatprep.subr.mxu0 %v824
        %1371 = vmatpush1.msra.mxu0 %v823
        %1372 = vmatprep.subr.mxu0 %v830
        %1373 = vmatpush1.msra.mxu0 %v829
        %1374 = vmatprep.subr.mxu0 %v836
        %1375 = vmatpush1.msra.mxu0 %v835
        %1376 = vmatprep.subr.mxu0 %v842
        %1377 = vmatpush1.msra.mxu0 %v841
        %1378 = vmatprep.subr.mxu0 %v848
        %1379 = vmatpush1.msra.mxu0 %v847
        %1380 = vmatprep.subr.mxu0 %v854
        %1381 = vmatpush1.msra.mxu0 %v853
        %1382 = vmatprep.subr.mxu0 %v860
        %1383 = vmatpush1.msra.mxu0 %v859
        %1384 = vmatprep.subr.mxu0 %v866
        %1385 = vmatpush1.msra.mxu0 %v865
        %1386 = vmatprep.subr.mxu0 %v872
        %1387 = vmatpush1.msra.mxu0 %v871
        %1388 = vmatprep.subr.mxu0 %v878
        %1389 = vmatpush1.msra.mxu0 %v877
        %1390 = vmatprep.subr.mxu0 %v884
        %1391 = vmatpush1.msra.mxu0 %v883
        %1392 = vmatprep.subr.mxu0 %v890
        %1393 = vmatpush1.msra.mxu0 %v889
        %1394 = vmatprep.mubr.f32.mxu0 %v370
        %1395 = vmatmul.mubr.f32.gmra.mrb[0].mxu0 %v369
        %v1396 = vpop.f32.mrb[0].mxu0
        %v1397 = vadd.f32 %v1188, %v1396
        %v1398 = vpop.f32.mrb[0].mxu0
        %v1399 = vadd.f32 %v1190, %v1398
        %1400 = vmatprep.mubr.f32.mxu0 %v376
        %1401 = vmatmul.mubr.f32.gmra.mrb[0].mxu0 %v375
        %v1402 = vpop.f32.mrb[0].mxu0
        %v1403 = vadd.f32 %v1194, %v1402
        %v1404 = vpop.f32.mrb[0].mxu0
        %v1405 = vadd.f32 %v1196, %v1404
        %1406 = vmatprep.mubr.f32.mxu0 %v382
        %1407 = vmatmul.mubr.f32.gmra.mrb[0].mxu0 %v381
        %v1408 = vpop.f32.mrb[0].mxu0
        %v1409 = vadd.f32 %v1200, %v1408
        %v1410 = vpop.f32.mrb[0].mxu0
        %v1411 = vadd.f32 %v1202, %v1410
        %1412 = vmatprep.mubr.f32.mxu0 %v388
        %1413 = vmatmul.mubr.f32.gmra.mrb[0].mxu0 %v387
        %v1414 = vpop.f32.mrb[0].mxu0
        %v1415 = vadd.f32 %v1206, %v1414
        %v1416 = vpop.f32.mrb[0].mxu0
        %v1417 = vadd.f32 %v1208, %v1416
        %1418 = vmatprep.mubr.f32.mxu0 %v394
        %1419 = vmatmul.mubr.f32.gmra.mrb[0].mxu0 %v393
        %v1420 = vpop.f32.mrb[0].mxu0
        %v1421 = vadd.f32 %v1212, %v1420
        %v1422 = vpop.f32.mrb[0].mxu0
        %v1423 = vadd.f32 %v1214, %v1422
        %1424 = vmatprep.mubr.f32.mxu0 %v400
        %1425 = vmatmul.mubr.f32.gmra.mrb[0].mxu0 %v399
        %v1426 = vpop.f32.mrb[0].mxu0
        %v1427 = vadd.f32 %v1218, %v1426
        %v1428 = vpop.f32.mrb[0].mxu0
        %v1429 = vadd.f32 %v1220, %v1428
        %1430 = vmatprep.mubr.f32.mxu0 %v406
        %1431 = vmatmul.mubr.f32.gmra.mrb[0].mxu0 %v405
        %v1432 = vpop.f32.mrb[0].mxu0
        %v1433 = vadd.f32 %v1224, %v1432
        %v1434 = vpop.f32.mrb[0].mxu0
        %v1435 = vadd.f32 %v1226, %v1434
        %1436 = vmatprep.mubr.f32.mxu0 %v412
        %1437 = vmatmul.mubr.f32.gmra.mrb[0].mxu0 %v411
        %v1438 = vpop.f32.mrb[0].mxu0
        %v1439 = vadd.f32 %v1230, %v1438
        %v1440 = vpop.f32.mrb[0].mxu0
        %v1441 = vadd.f32 %v1232, %v1440
        %1442 = vmatprep.mubr.f32.mxu0 %v418
        %1443 = vmatmul.mubr.f32.gmra.mrb[0].mxu0 %v417
        %v1444 = vpop.f32.mrb[0].mxu0
        %v1445 = vadd.f32 %v1236, %v1444
        %v1446 = vpop.f32.mrb[0].mxu0
        %v1447 = vadd.f32 %v1238, %v1446
        %1448 = vmatprep.mubr.f32.mxu0 %v424
        %1449 = vmatmul.mubr.f32.gmra.mrb[0].mxu0 %v423
        %v1450 = vpop.f32.mrb[0].mxu0
        %v1451 = vadd.f32 %v1242, %v1450
        %v1452 = vpop.f32.mrb[0].mxu0
        %v1453 = vadd.f32 %v1244, %v1452
        %1454 = vmatprep.mubr.f32.mxu0 %v430
        %1455 = vmatmul.mubr.f32.gmra.mrb[0].mxu0 %v429
        %v1456 = vpop.f32.mrb[0].mxu0
        %v1457 = vadd.f32 %v1248, %v1456
        %v1458 = vpop.f32.mrb[0].mxu0
        %v1459 = vadd.f32 %v1250, %v1458
        %1460 = vmatprep.mubr.f32.mxu0 %v436
        %1461 = vmatmul.mubr.f32.gmra.mrb[0].mxu0 %v435
        %v1462 = vpop.f32.mrb[0].mxu0
        %v1463 = vadd.f32 %v1254, %v1462
        %v1464 = vpop.f32.mrb[0].mxu0
        %v1465 = vadd.f32 %v1256, %v1464
        %1466 = vmatprep.mubr.f32.mxu0 %v442
        %1467 = vmatmul.mubr.f32.gmra.mrb[0].mxu0 %v441
        %v1468 = vpop.f32.mrb[0].mxu0
        %v1469 = vadd.f32 %v1260, %v1468
        %v1470 = vpop.f32.mrb[0].mxu0
        %v1471 = vadd.f32 %v1262, %v1470
        %1472 = vmatprep.mubr.f32.mxu0 %v448
        %1473 = vmatmul.mubr.f32.gmra.mrb[0].mxu0 %v447
        %v1474 = vpop.f32.mrb[0].mxu0
        %v1475 = vadd.f32 %v1266, %v1474
        %v1476 = vpop.f32.mrb[0].mxu0
        %v1477 = vadd.f32 %v1268, %v1476
        %1478 = vmatprep.mubr.f32.mxu0 %v454
        %1479 = vmatmul.mubr.f32.gmra.mrb[0].mxu0 %v453
        %v1480 = vpop.f32.mrb[0].mxu0
        %v1481 = vadd.f32 %v1272, %v1480
        %v1482 = vpop.f32.mrb[0].mxu0
        %v1483 = vadd.f32 %v1274, %v1482
        %1484 = vmatprep.mubr.f32.mxu0 %v460
        %1485 = vmatmul.mubr.f32.gmra.mrb[0].mxu0 %v459
        %v1486 = vpop.f32.mrb[0].mxu0
        %v1487 = vadd.f32 %v1278, %v1486
        %v1488 = vpop.f32.mrb[0].mxu0
        %v1489 = vadd.f32 %v1280, %v1488
        %1490 = vmatprep.mubr.f32.mxu0 %v466
        %1491 = vmatmul.mubr.f32.gmra.mrb[0].mxu0 %v465
        %v1492 = vpop.f32.mrb[0].mxu0
        %v1493 = vadd.f32 %v1284, %v1492
        %v1494 = vpop.f32.mrb[0].mxu0
        %v1495 = vadd.f32 %v1286, %v1494
        %1496 = vmatprep.mubr.f32.mxu0 %v472
        %1497 = vmatmul.mubr.f32.gmra.mrb[0].mxu0 %v471
        %v1498 = vpop.f32.mrb[0].mxu0
        %v1499 = vadd.f32 %v1290, %v1498
        %v1500 = vpop.f32.mrb[0].mxu0
        %v1501 = vadd.f32 %v1292, %v1500
        %1502 = vmatprep.mubr.f32.mxu0 %v478
        %1503 = vmatmul.mubr.f32.gmra.mrb[0].mxu0 %v477
        %v1504 = vpop.f32.mrb[0].mxu0
        %v1505 = vadd.f32 %v1296, %v1504
        %v1506 = vpop.f32.mrb[0].mxu0
        %v1507 = vadd.f32 %v1298, %v1506
        %1508 = vmatprep.mubr.f32.mxu0 %v484
        %1509 = vmatmul.mubr.f32.gmra.mrb[0].mxu0 %v483
        %v1510 = vpop.f32.mrb[0].mxu0
        %v1511 = vadd.f32 %v1302, %v1510
        %v1512 = vpop.f32.mrb[0].mxu0
        %v1513 = vadd.f32 %v1304, %v1512
        %1514 = vmatprep.mubr.f32.mxu0 %v490
        %1515 = vmatmul.mubr.f32.gmra.mrb[0].mxu0 %v489
        %v1516 = vpop.f32.mrb[0].mxu0
        %v1517 = vadd.f32 %v1308, %v1516
        %v1518 = vpop.f32.mrb[0].mxu0
        %v1519 = vadd.f32 %v1310, %v1518
        %1520 = vmatprep.mubr.f32.mxu0 %v496
        %1521 = vmatmul.mubr.f32.gmra.mrb[0].mxu0 %v495
        %v1522 = vpop.f32.mrb[0].mxu0
        %v1523 = vadd.f32 %v1314, %v1522
        %v1524 = vpop.f32.mrb[0].mxu0
        %v1525 = vadd.f32 %v1316, %v1524
        %1526 = vmatprep.mubr.f32.mxu0 %v502
        %1527 = vmatmul.mubr.f32.gmra.mrb[0].mxu0 %v501
        %v1528 = vpop.f32.mrb[0].mxu0
        %v1529 = vadd.f32 %v1320, %v1528
        %v1530 = vpop.f32.mrb[0].mxu0
        %v1531 = vadd.f32 %v1322, %v1530
        %1532 = vmatprep.mubr.f32.mxu0 %v508
        %1533 = vmatmul.mubr.f32.gmra.mrb[0].mxu0 %v507
        %v1534 = vpop.f32.mrb[0].mxu0
        %v1535 = vadd.f32 %v1326, %v1534
        %v1536 = vpop.f32.mrb[0].mxu0
        %v1537 = vadd.f32 %v1328, %v1536
        %1538 = vdwg.mxu0
        %1539 = vmatprep.subr.mxu0 %v896
        %1540 = vmatpush1.msra.mxu0 %v895
        %1541 = vmatprep.subr.mxu0 %v902
        %1542 = vmatpush1.msra.mxu0 %v901
        %1543 = vmatprep.subr.mxu0 %v908
        %1544 = vmatpush1.msra.mxu0 %v907
        %1545 = vmatprep.subr.mxu0 %v914
        %1546 = vmatpush1.msra.mxu0 %v913
        %1547 = vmatprep.subr.mxu0 %v920
        %1548 = vmatpush1.msra.mxu0 %v919
        %1549 = vmatprep.subr.mxu0 %v926
        %1550 = vmatpush1.msra.mxu0 %v925
        %1551 = vmatprep.subr.mxu0 %v932
        %1552 = vmatpush1.msra.mxu0 %v931
        %1553 = vmatprep.subr.mxu0 %v938
        %1554 = vmatpush1.msra.mxu0 %v937
        %1555 = vmatprep.subr.mxu0 %v944
        %1556 = vmatpush1.msra.mxu0 %v943
        %1557 = vmatprep.subr.mxu0 %v950
        %1558 = vmatpush1.msra.mxu0 %v949
        %1559 = vmatprep.subr.mxu0 %v956
        %1560 = vmatpush1.msra.mxu0 %v955
        %1561 = vmatprep.subr.mxu0 %v962
        %1562 = vmatpush1.msra.mxu0 %v961
        %1563 = vmatprep.subr.mxu0 %v968
        %1564 = vmatpush1.msra.mxu0 %v967
        %1565 = vmatprep.subr.mxu0 %v974
        %1566 = vmatpush1.msra.mxu0 %v973
        %1567 = vmatprep.subr.mxu0 %v980
        %1568 = vmatpush1.msra.mxu0 %v979
        %1569 = vmatprep.subr.mxu0 %v986
        %1570 = vmatpush1.msra.mxu0 %v985
        %1571 = vmatprep.subr.mxu0 %v992
        %1572 = vmatpush1.msra.mxu0 %v991
        %1573 = vmatprep.subr.mxu0 %v998
        %1574 = vmatpush1.msra.mxu0 %v997
        %1575 = vmatprep.subr.mxu0 %v1004
        %1576 = vmatpush1.msra.mxu0 %v1003
        %1577 = vmatprep.subr.mxu0 %v1010
        %1578 = vmatpush1.msra.mxu0 %v1009
        %1579 = vmatprep.subr.mxu0 %v1016
        %1580 = vmatpush1.msra.mxu0 %v1015
        %1581 = vmatprep.subr.mxu0 %v1022
        %1582 = vmatpush1.msra.mxu0 %v1021
        %1583 = vmatprep.subr.mxu0 %v1028
        %1584 = vmatpush1.msra.mxu0 %v1027
        %1585 = vmatprep.subr.mxu0 %v1034
        %1586 = vmatpush1.msra.mxu0 %v1033
        %1587 = vmatprep.subr.mxu0 %v1040
        %1588 = vmatpush1.msra.mxu0 %v1039
        %1589 = vmatprep.subr.mxu0 %v1046
        %1590 = vmatpush1.msra.mxu0 %v1045
        %1591 = vmatprep.subr.mxu0 %v1052
        %1592 = vmatpush1.msra.mxu0 %v1051
        %1593 = vmatprep.subr.mxu0 %v1058
        %1594 = vmatpush1.msra.mxu0 %v1057
        %1595 = vmatprep.subr.mxu0 %v1064
        %1596 = vmatpush1.msra.mxu0 %v1063
        %1597 = vmatprep.subr.mxu0 %v1070
        %1598 = vmatpush1.msra.mxu0 %v1069
        %1599 = vmatprep.subr.mxu0 %v1076
        %1600 = vmatpush1.msra.mxu0 %v1075
        %1601 = vmatprep.subr.mxu0 %v1082
        %1602 = vmatpush1.msra.mxu0 %v1081
        %1603 = vmatprep.mubr.f32.mxu0 %v372
        %1604 = vmatmul.mubr.f32.gmra.mrb[0].mxu0 %v371
        %v1605 = vpop.f32.mrb[0].mxu0
        %v1606 = vadd.f32 %v1397, %v1605
        %v1607 = vpop.f32.mrb[0].mxu0
        %v1608 = vadd.f32 %v1399, %v1607
        %1609 = vmatprep.mubr.f32.mxu0 %v378
        %1610 = vmatmul.mubr.f32.gmra.mrb[0].mxu0 %v377
        %v1611 = vpop.f32.mrb[0].mxu0
        %v1612 = vadd.f32 %v1403, %v1611
        %v1613 = vpop.f32.mrb[0].mxu0
        %v1614 = vadd.f32 %v1405, %v1613
        %1615 = vmatprep.mubr.f32.mxu0 %v384
        %1616 = vmatmul.mubr.f32.gmra.mrb[0].mxu0 %v383
        %v1617 = vpop.f32.mrb[0].mxu0
        %v1618 = vadd.f32 %v1409, %v1617
        %v1619 = vpop.f32.mrb[0].mxu0
        %v1620 = vadd.f32 %v1411, %v1619
        %1621 = vmatprep.mubr.f32.mxu0 %v390
        %1622 = vmatmul.mubr.f32.gmra.mrb[0].mxu0 %v389
        %v1623 = vpop.f32.mrb[0].mxu0
        %v1624 = vadd.f32 %v1415, %v1623
        %v1625 = vpop.f32.mrb[0].mxu0
        %v1626 = vadd.f32 %v1417, %v1625
        %1627 = vmatprep.mubr.f32.mxu0 %v396
        %1628 = vmatmul.mubr.f32.gmra.mrb[0].mxu0 %v395
        %v1629 = vpop.f32.mrb[0].mxu0
        %v1630 = vadd.f32 %v1421, %v1629
        %v1631 = vpop.f32.mrb[0].mxu0
        %v1632 = vadd.f32 %v1423, %v1631
        %1633 = vmatprep.mubr.f32.mxu0 %v402
        %1634 = vmatmul.mubr.f32.gmra.mrb[0].mxu0 %v401
        %v1635 = vpop.f32.mrb[0].mxu0
        %v1636 = vadd.f32 %v1427, %v1635
        %v1637 = vpop.f32.mrb[0].mxu0
        %v1638 = vadd.f32 %v1429, %v1637
        %1639 = vmatprep.mubr.f32.mxu0 %v408
        %1640 = vmatmul.mubr.f32.gmra.mrb[0].mxu0 %v407
        %v1641 = vpop.f32.mrb[0].mxu0
        %v1642 = vadd.f32 %v1433, %v1641
        %v1643 = vpop.f32.mrb[0].mxu0
        %v1644 = vadd.f32 %v1435, %v1643
        %1645 = vmatprep.mubr.f32.mxu0 %v414
        %1646 = vmatmul.mubr.f32.gmra.mrb[0].mxu0 %v413
        %v1647 = vpop.f32.mrb[0].mxu0
        %v1648 = vadd.f32 %v1439, %v1647
        %v1649 = vpop.f32.mrb[0].mxu0
        %v1650 = vadd.f32 %v1441, %v1649
        %1651 = vmatprep.mubr.f32.mxu0 %v420
        %1652 = vmatmul.mubr.f32.gmra.mrb[0].mxu0 %v419
        %v1653 = vpop.f32.mrb[0].mxu0
        %v1654 = vadd.f32 %v1445, %v1653
        %v1655 = vpop.f32.mrb[0].mxu0
        %v1656 = vadd.f32 %v1447, %v1655
        %1657 = vmatprep.mubr.f32.mxu0 %v426
        %1658 = vmatmul.mubr.f32.gmra.mrb[0].mxu0 %v425
        %v1659 = vpop.f32.mrb[0].mxu0
        %v1660 = vadd.f32 %v1451, %v1659
        %v1661 = vpop.f32.mrb[0].mxu0
        %v1662 = vadd.f32 %v1453, %v1661
        %1663 = vmatprep.mubr.f32.mxu0 %v432
        %1664 = vmatmul.mubr.f32.gmra.mrb[0].mxu0 %v431
        %v1665 = vpop.f32.mrb[0].mxu0
        %v1666 = vadd.f32 %v1457, %v1665
        %v1667 = vpop.f32.mrb[0].mxu0
        %v1668 = vadd.f32 %v1459, %v1667
        %1669 = vmatprep.mubr.f32.mxu0 %v438
        %1670 = vmatmul.mubr.f32.gmra.mrb[0].mxu0 %v437
        %v1671 = vpop.f32.mrb[0].mxu0
        %v1672 = vadd.f32 %v1463, %v1671
        %v1673 = vpop.f32.mrb[0].mxu0
        %v1674 = vadd.f32 %v1465, %v1673
        %1675 = vmatprep.mubr.f32.mxu0 %v444
        %1676 = vmatmul.mubr.f32.gmra.mrb[0].mxu0 %v443
        %v1677 = vpop.f32.mrb[0].mxu0
        %v1678 = vadd.f32 %v1469, %v1677
        %v1679 = vpop.f32.mrb[0].mxu0
        %v1680 = vadd.f32 %v1471, %v1679
        %1681 = vmatprep.mubr.f32.mxu0 %v450
        %1682 = vmatmul.mubr.f32.gmra.mrb[0].mxu0 %v449
        %v1683 = vpop.f32.mrb[0].mxu0
        %v1684 = vadd.f32 %v1475, %v1683
        %v1685 = vpop.f32.mrb[0].mxu0
        %v1686 = vadd.f32 %v1477, %v1685
        %1687 = vmatprep.mubr.f32.mxu0 %v456
        %1688 = vmatmul.mubr.f32.gmra.mrb[0].mxu0 %v455
        %v1689 = vpop.f32.mrb[0].mxu0
        %v1690 = vadd.f32 %v1481, %v1689
        %v1691 = vpop.f32.mrb[0].mxu0
        %v1692 = vadd.f32 %v1483, %v1691
        %1693 = vmatprep.mubr.f32.mxu0 %v462
        %1694 = vmatmul.mubr.f32.gmra.mrb[0].mxu0 %v461
        %v1695 = vpop.f32.mrb[0].mxu0
        %v1696 = vadd.f32 %v1487, %v1695
        %v1697 = vpop.f32.mrb[0].mxu0
        %v1698 = vadd.f32 %v1489, %v1697
        %1699 = vmatprep.mubr.f32.mxu0 %v468
        %1700 = vmatmul.mubr.f32.gmra.mrb[0].mxu0 %v467
        %v1701 = vpop.f32.mrb[0].mxu0
        %v1702 = vadd.f32 %v1493, %v1701
        %v1703 = vpop.f32.mrb[0].mxu0
        %v1704 = vadd.f32 %v1495, %v1703
        %1705 = vmatprep.mubr.f32.mxu0 %v474
        %1706 = vmatmul.mubr.f32.gmra.mrb[0].mxu0 %v473
        %v1707 = vpop.f32.mrb[0].mxu0
        %v1708 = vadd.f32 %v1499, %v1707
        %v1709 = vpop.f32.mrb[0].mxu0
        %v1710 = vadd.f32 %v1501, %v1709
        %1711 = vmatprep.mubr.f32.mxu0 %v480
        %1712 = vmatmul.mubr.f32.gmra.mrb[0].mxu0 %v479
        %v1713 = vpop.f32.mrb[0].mxu0
        %v1714 = vadd.f32 %v1505, %v1713
        %v1715 = vpop.f32.mrb[0].mxu0
        %v1716 = vadd.f32 %v1507, %v1715
        %1717 = vmatprep.mubr.f32.mxu0 %v486
        %1718 = vmatmul.mubr.f32.gmra.mrb[0].mxu0 %v485
        %v1719 = vpop.f32.mrb[0].mxu0
        %v1720 = vadd.f32 %v1511, %v1719
        %v1721 = vpop.f32.mrb[0].mxu0
        %v1722 = vadd.f32 %v1513, %v1721
        %1723 = vmatprep.mubr.f32.mxu0 %v492
        %1724 = vmatmul.mubr.f32.gmra.mrb[0].mxu0 %v491
        %v1725 = vpop.f32.mrb[0].mxu0
        %v1726 = vadd.f32 %v1517, %v1725
        %v1727 = vpop.f32.mrb[0].mxu0
        %v1728 = vadd.f32 %v1519, %v1727
        %1729 = vmatprep.mubr.f32.mxu0 %v498
        %1730 = vmatmul.mubr.f32.gmra.mrb[0].mxu0 %v497
        %v1731 = vpop.f32.mrb[0].mxu0
        %v1732 = vadd.f32 %v1523, %v1731
        %v1733 = vpop.f32.mrb[0].mxu0
        %v1734 = vadd.f32 %v1525, %v1733
        %1735 = vmatprep.mubr.f32.mxu0 %v504
        %1736 = vmatmul.mubr.f32.gmra.mrb[0].mxu0 %v503
        %v1737 = vpop.f32.mrb[0].mxu0
        %v1738 = vadd.f32 %v1529, %v1737
        %v1739 = vpop.f32.mrb[0].mxu0
        %v1740 = vadd.f32 %v1531, %v1739
        %1741 = vmatprep.mubr.f32.mxu0 %v510
        %1742 = vmatmul.mubr.f32.gmra.mrb[0].mxu0 %v509
        %v1743 = vpop.f32.mrb[0].mxu0
        %v1744 = vadd.f32 %v1535, %v1743
        %v1745 = vpop.f32.mrb[0].mxu0
        %v1746 = vadd.f32 %v1537, %v1745
        %1747 = vdwg.mxu0
        %1748 = vmatprep.subr.mxu0 %v514
        %1749 = vmatpush1.msra.mxu0 %v513
        %1750 = vmatprep.subr.mxu0 %v520
        %1751 = vmatpush1.msra.mxu0 %v519
        %1752 = vmatprep.subr.mxu0 %v526
        %1753 = vmatpush1.msra.mxu0 %v525
        %1754 = vmatprep.subr.mxu0 %v532
        %1755 = vmatpush1.msra.mxu0 %v531
        %1756 = vmatprep.subr.mxu0 %v538
        %1757 = vmatpush1.msra.mxu0 %v537
        %1758 = vmatprep.subr.mxu0 %v544
        %1759 = vmatpush1.msra.mxu0 %v543
        %1760 = vmatprep.subr.mxu0 %v550
        %1761 = vmatpush1.msra.mxu0 %v549
        %1762 = vmatprep.subr.mxu0 %v556
        %1763 = vmatpush1.msra.mxu0 %v555
        %1764 = vmatprep.subr.mxu0 %v562
        %1765 = vmatpush1.msra.mxu0 %v561
        %1766 = vmatprep.subr.mxu0 %v568
        %1767 = vmatpush1.msra.mxu0 %v567
        %1768 = vmatprep.subr.mxu0 %v574
        %1769 = vmatpush1.msra.mxu0 %v573
        %1770 = vmatprep.subr.mxu0 %v580
        %1771 = vmatpush1.msra.mxu0 %v579
        %1772 = vmatprep.subr.mxu0 %v586
        %1773 = vmatpush1.msra.mxu0 %v585
        %1774 = vmatprep.subr.mxu0 %v592
        %1775 = vmatpush1.msra.mxu0 %v591
        %1776 = vmatprep.subr.mxu0 %v598
        %1777 = vmatpush1.msra.mxu0 %v597
        %1778 = vmatprep.subr.mxu0 %v604
        %1779 = vmatpush1.msra.mxu0 %v603
        %1780 = vmatprep.subr.mxu0 %v610
        %1781 = vmatpush1.msra.mxu0 %v609
        %1782 = vmatprep.subr.mxu0 %v616
        %1783 = vmatpush1.msra.mxu0 %v615
        %1784 = vmatprep.subr.mxu0 %v622
        %1785 = vmatpush1.msra.mxu0 %v621
        %1786 = vmatprep.subr.mxu0 %v628
        %1787 = vmatpush1.msra.mxu0 %v627
        %1788 = vmatprep.subr.mxu0 %v634
        %1789 = vmatpush1.msra.mxu0 %v633
        %1790 = vmatprep.subr.mxu0 %v640
        %1791 = vmatpush1.msra.mxu0 %v639
        %1792 = vmatprep.subr.mxu0 %v646
        %1793 = vmatpush1.msra.mxu0 %v645
        %1794 = vmatprep.subr.mxu0 %v652
        %1795 = vmatpush1.msra.mxu0 %v651
        %1796 = vmatprep.subr.mxu0 %v658
        %1797 = vmatpush1.msra.mxu0 %v657
        %1798 = vmatprep.subr.mxu0 %v664
        %1799 = vmatpush1.msra.mxu0 %v663
        %1800 = vmatprep.subr.mxu0 %v670
        %1801 = vmatpush1.msra.mxu0 %v669
        %1802 = vmatprep.subr.mxu0 %v676
        %1803 = vmatpush1.msra.mxu0 %v675
        %1804 = vmatprep.subr.mxu0 %v682
        %1805 = vmatpush1.msra.mxu0 %v681
        %1806 = vmatprep.subr.mxu0 %v688
        %1807 = vmatpush1.msra.mxu0 %v687
        %1808 = vmatprep.subr.mxu0 %v694
        %1809 = vmatpush1.msra.mxu0 %v693
        %1810 = vmatprep.subr.mxu0 %v700
        %1811 = vmatpush1.msra.mxu0 %v699
        %1812 = vmatprep.mubr.f32.mxu0 %v368
        %1813 = vmatmul.mubr.f32.gmra.mrb[0].mxu0 %v367
        %v1814 = vpop.f32.mrb[0].mxu0
        %v1815 = vadd.f32 %v1102, %v1814
        %v1816 = vpop.f32.mrb[0].mxu0
        %v1817 = vadd.f32 %v1106, %v1816
        %1818 = vmatprep.mubr.f32.mxu0 %v374
        %1819 = vmatmul.mubr.f32.gmra.mrb[0].mxu0 %v373
        %v1820 = vpop.f32.mrb[0].mxu0
        %v1821 = vadd.f32 %v1102, %v1820
        %v1822 = vpop.f32.mrb[0].mxu0
        %v1823 = vadd.f32 %v1106, %v1822
        %1824 = vmatprep.mubr.f32.mxu0 %v380
        %1825 = vmatmul.mubr.f32.gmra.mrb[0].mxu0 %v379
        %v1826 = vpop.f32.mrb[0].mxu0
        %v1827 = vadd.f32 %v1102, %v1826
        %v1828 = vpop.f32.mrb[0].mxu0
        %v1829 = vadd.f32 %v1106, %v1828
        %1830 = vmatprep.mubr.f32.mxu0 %v386
        %1831 = vmatmul.mubr.f32.gmra.mrb[0].mxu0 %v385
        %v1832 = vpop.f32.mrb[0].mxu0
        %v1833 = vadd.f32 %v1102, %v1832
        %v1834 = vpop.f32.mrb[0].mxu0
        %v1835 = vadd.f32 %v1106, %v1834
        %1836 = vmatprep.mubr.f32.mxu0 %v392
        %1837 = vmatmul.mubr.f32.gmra.mrb[0].mxu0 %v391
        %v1838 = vpop.f32.mrb[0].mxu0
        %v1839 = vadd.f32 %v1102, %v1838
        %v1840 = vpop.f32.mrb[0].mxu0
        %v1841 = vadd.f32 %v1106, %v1840
        %1842 = vmatprep.mubr.f32.mxu0 %v398
        %1843 = vmatmul.mubr.f32.gmra.mrb[0].mxu0 %v397
        %v1844 = vpop.f32.mrb[0].mxu0
        %v1845 = vadd.f32 %v1102, %v1844
        %v1846 = vpop.f32.mrb[0].mxu0
        %v1847 = vadd.f32 %v1106, %v1846
        %1848 = vmatprep.mubr.f32.mxu0 %v404
        %1849 = vmatmul.mubr.f32.gmra.mrb[0].mxu0 %v403
        %v1850 = vpop.f32.mrb[0].mxu0
        %v1851 = vadd.f32 %v1102, %v1850
        %v1852 = vpop.f32.mrb[0].mxu0
        %v1853 = vadd.f32 %v1106, %v1852
        %1854 = vmatprep.mubr.f32.mxu0 %v410
        %1855 = vmatmul.mubr.f32.gmra.mrb[0].mxu0 %v409
        %v1856 = vpop.f32.mrb[0].mxu0
        %v1857 = vadd.f32 %v1102, %v1856
        %v1858 = vpop.f32.mrb[0].mxu0
        %v1859 = vadd.f32 %v1106, %v1858
        %1860 = vmatprep.mubr.f32.mxu0 %v416
        %1861 = vmatmul.mubr.f32.gmra.mrb[0].mxu0 %v415
        %v1862 = vpop.f32.mrb[0].mxu0
        %v1863 = vadd.f32 %v1102, %v1862
        %v1864 = vpop.f32.mrb[0].mxu0
        %v1865 = vadd.f32 %v1106, %v1864
        %1866 = vmatprep.mubr.f32.mxu0 %v422
        %1867 = vmatmul.mubr.f32.gmra.mrb[0].mxu0 %v421
        %v1868 = vpop.f32.mrb[0].mxu0
        %v1869 = vadd.f32 %v1102, %v1868
        %v1870 = vpop.f32.mrb[0].mxu0
        %v1871 = vadd.f32 %v1106, %v1870
        %1872 = vmatprep.mubr.f32.mxu0 %v428
        %1873 = vmatmul.mubr.f32.gmra.mrb[0].mxu0 %v427
        %v1874 = vpop.f32.mrb[0].mxu0
        %v1875 = vadd.f32 %v1102, %v1874
        %v1876 = vpop.f32.mrb[0].mxu0
        %v1877 = vadd.f32 %v1106, %v1876
        %1878 = vmatprep.mubr.f32.mxu0 %v434
        %1879 = vmatmul.mubr.f32.gmra.mrb[0].mxu0 %v433
        %v1880 = vpop.f32.mrb[0].mxu0
        %v1881 = vadd.f32 %v1102, %v1880
        %v1882 = vpop.f32.mrb[0].mxu0
        %v1883 = vadd.f32 %v1106, %v1882
        %1884 = vmatprep.mubr.f32.mxu0 %v440
        %1885 = vmatmul.mubr.f32.gmra.mrb[0].mxu0 %v439
        %v1886 = vpop.f32.mrb[0].mxu0
        %v1887 = vadd.f32 %v1102, %v1886
        %v1888 = vpop.f32.mrb[0].mxu0
        %v1889 = vadd.f32 %v1106, %v1888
        %1890 = vmatprep.mubr.f32.mxu0 %v446
        %1891 = vmatmul.mubr.f32.gmra.mrb[0].mxu0 %v445
        %v1892 = vpop.f32.mrb[0].mxu0
        %v1893 = vadd.f32 %v1102, %v1892
        %v1894 = vpop.f32.mrb[0].mxu0
        %v1895 = vadd.f32 %v1106, %v1894
        %1896 = vmatprep.mubr.f32.mxu0 %v452
        %1897 = vmatmul.mubr.f32.gmra.mrb[0].mxu0 %v451
        %v1898 = vpop.f32.mrb[0].mxu0
        %v1899 = vadd.f32 %v1102, %v1898
        %v1900 = vpop.f32.mrb[0].mxu0
        %v1901 = vadd.f32 %v1106, %v1900
        %1902 = vmatprep.mubr.f32.mxu0 %v458
        %1903 = vmatmul.mubr.f32.gmra.mrb[0].mxu0 %v457
        %v1904 = vpop.f32.mrb[0].mxu0
        %v1905 = vadd.f32 %v1102, %v1904
        %v1906 = vpop.f32.mrb[0].mxu0
        %v1907 = vadd.f32 %v1106, %v1906
        %1908 = vmatprep.mubr.f32.mxu0 %v464
        %1909 = vmatmul.mubr.f32.gmra.mrb[0].mxu0 %v463
        %v1910 = vpop.f32.mrb[0].mxu0
        %v1911 = vadd.f32 %v1102, %v1910
        %v1912 = vpop.f32.mrb[0].mxu0
        %v1913 = vadd.f32 %v1106, %v1912
        %1914 = vmatprep.mubr.f32.mxu0 %v470
        %1915 = vmatmul.mubr.f32.gmra.mrb[0].mxu0 %v469
        %v1916 = vpop.f32.mrb[0].mxu0
        %v1917 = vadd.f32 %v1102, %v1916
        %v1918 = vpop.f32.mrb[0].mxu0
        %v1919 = vadd.f32 %v1106, %v1918
        %1920 = vmatprep.mubr.f32.mxu0 %v476
        %1921 = vmatmul.mubr.f32.gmra.mrb[0].mxu0 %v475
        %v1922 = vpop.f32.mrb[0].mxu0
        %v1923 = vadd.f32 %v1102, %v1922
        %v1924 = vpop.f32.mrb[0].mxu0
        %v1925 = vadd.f32 %v1106, %v1924
        %1926 = vmatprep.mubr.f32.mxu0 %v482
        %1927 = vmatmul.mubr.f32.gmra.mrb[0].mxu0 %v481
        %v1928 = vpop.f32.mrb[0].mxu0
        %v1929 = vadd.f32 %v1102, %v1928
        %v1930 = vpop.f32.mrb[0].mxu0
        %v1931 = vadd.f32 %v1106, %v1930
        %1932 = vmatprep.mubr.f32.mxu0 %v488
        %1933 = vmatmul.mubr.f32.gmra.mrb[0].mxu0 %v487
        %v1934 = vpop.f32.mrb[0].mxu0
        %v1935 = vadd.f32 %v1102, %v1934
        %v1936 = vpop.f32.mrb[0].mxu0
        %v1937 = vadd.f32 %v1106, %v1936
        %1938 = vmatprep.mubr.f32.mxu0 %v494
        %1939 = vmatmul.mubr.f32.gmra.mrb[0].mxu0 %v493
        %v1940 = vpop.f32.mrb[0].mxu0
        %v1941 = vadd.f32 %v1102, %v1940
        %v1942 = vpop.f32.mrb[0].mxu0
        %v1943 = vadd.f32 %v1106, %v1942
        %1944 = vmatprep.mubr.f32.mxu0 %v500
        %1945 = vmatmul.mubr.f32.gmra.mrb[0].mxu0 %v499
        %v1946 = vpop.f32.mrb[0].mxu0
        %v1947 = vadd.f32 %v1102, %v1946
        %v1948 = vpop.f32.mrb[0].mxu0
        %v1949 = vadd.f32 %v1106, %v1948
        %1950 = vmatprep.mubr.f32.mxu0 %v506
        %1951 = vmatmul.mubr.f32.gmra.mrb[0].mxu0 %v505
        %v1952 = vpop.f32.mrb[0].mxu0
        %v1953 = vadd.f32 %v1102, %v1952
        %v1954 = vpop.f32.mrb[0].mxu0
        %v1955 = vadd.f32 %v1106, %v1954
        %1956 = vdwg.mxu0
        %1957 = vmatprep.subr.mxu0 %v706
        %1958 = vmatpush1.msra.mxu0 %v705
        %1959 = vmatprep.subr.mxu0 %v712
        %1960 = vmatpush1.msra.mxu0 %v711
        %1961 = vmatprep.subr.mxu0 %v718
        %1962 = vmatpush1.msra.mxu0 %v717
        %1963 = vmatprep.subr.mxu0 %v724
        %1964 = vmatpush1.msra.mxu0 %v723
        %1965 = vmatprep.subr.mxu0 %v730
        %1966 = vmatpush1.msra.mxu0 %v729
        %1967 = vmatprep.subr.mxu0 %v736
        %1968 = vmatpush1.msra.mxu0 %v735
        %1969 = vmatprep.subr.mxu0 %v742
        %1970 = vmatpush1.msra.mxu0 %v741
        %1971 = vmatprep.subr.mxu0 %v748
        %1972 = vmatpush1.msra.mxu0 %v747
        %1973 = vmatprep.subr.mxu0 %v754
        %1974 = vmatpush1.msra.mxu0 %v753
        %1975 = vmatprep.subr.mxu0 %v760
        %1976 = vmatpush1.msra.mxu0 %v759
        %1977 = vmatprep.subr.mxu0 %v766
        %1978 = vmatpush1.msra.mxu0 %v765
        %1979 = vmatprep.subr.mxu0 %v772
        %1980 = vmatpush1.msra.mxu0 %v771
        %1981 = vmatprep.subr.mxu0 %v778
        %1982 = vmatpush1.msra.mxu0 %v777
        %1983 = vmatprep.subr.mxu0 %v784
        %1984 = vmatpush1.msra.mxu0 %v783
        %1985 = vmatprep.subr.mxu0 %v790
        %1986 = vmatpush1.msra.mxu0 %v789
        %1987 = vmatprep.subr.mxu0 %v796
        %1988 = vmatpush1.msra.mxu0 %v795
        %1989 = vmatprep.subr.mxu0 %v802
        %1990 = vmatpush1.msra.mxu0 %v801
        %1991 = vmatprep.subr.mxu0 %v808
        %1992 = vmatpush1.msra.mxu0 %v807
        %1993 = vmatprep.subr.mxu0 %v814
        %1994 = vmatpush1.msra.mxu0 %v813
        %1995 = vmatprep.subr.mxu0 %v820
        %1996 = vmatpush1.msra.mxu0 %v819
        %1997 = vmatprep.subr.mxu0 %v826
        %1998 = vmatpush1.msra.mxu0 %v825
        %1999 = vmatprep.subr.mxu0 %v832
        %2000 = vmatpush1.msra.mxu0 %v831
        %2001 = vmatprep.subr.mxu0 %v838
        %2002 = vmatpush1.msra.mxu0 %v837
        %2003 = vmatprep.subr.mxu0 %v844
        %2004 = vmatpush1.msra.mxu0 %v843
        %2005 = vmatprep.subr.mxu0 %v850
        %2006 = vmatpush1.msra.mxu0 %v849
        %2007 = vmatprep.subr.mxu0 %v856
        %2008 = vmatpush1.msra.mxu0 %v855
        %2009 = vmatprep.subr.mxu0 %v862
        %2010 = vmatpush1.msra.mxu0 %v861
        %2011 = vmatprep.subr.mxu0 %v868
        %2012 = vmatpush1.msra.mxu0 %v867
        %2013 = vmatprep.subr.mxu0 %v874
        %2014 = vmatpush1.msra.mxu0 %v873
        %2015 = vmatprep.subr.mxu0 %v880
        %2016 = vmatpush1.msra.mxu0 %v879
        %2017 = vmatprep.subr.mxu0 %v886
        %2018 = vmatpush1.msra.mxu0 %v885
        %2019 = vmatprep.subr.mxu0 %v892
        %2020 = vmatpush1.msra.mxu0 %v891
        %2021 = vmatprep.mubr.f32.mxu0 %v370
        %2022 = vmatmul.mubr.f32.gmra.mrb[0].mxu0 %v369
        %v2023 = vpop.f32.mrb[0].mxu0
        %v2024 = vadd.f32 %v1815, %v2023
        %v2025 = vpop.f32.mrb[0].mxu0
        %v2026 = vadd.f32 %v1817, %v2025
        %2027 = vmatprep.mubr.f32.mxu0 %v376
        %2028 = vmatmul.mubr.f32.gmra.mrb[0].mxu0 %v375
        %v2029 = vpop.f32.mrb[0].mxu0
        %v2030 = vadd.f32 %v1821, %v2029
        %v2031 = vpop.f32.mrb[0].mxu0
        %v2032 = vadd.f32 %v1823, %v2031
        %2033 = vmatprep.mubr.f32.mxu0 %v382
        %2034 = vmatmul.mubr.f32.gmra.mrb[0].mxu0 %v381
        %v2035 = vpop.f32.mrb[0].mxu0
        %v2036 = vadd.f32 %v1827, %v2035
        %v2037 = vpop.f32.mrb[0].mxu0
        %v2038 = vadd.f32 %v1829, %v2037
        %2039 = vmatprep.mubr.f32.mxu0 %v388
        %2040 = vmatmul.mubr.f32.gmra.mrb[0].mxu0 %v387
        %v2041 = vpop.f32.mrb[0].mxu0
        %v2042 = vadd.f32 %v1833, %v2041
        %v2043 = vpop.f32.mrb[0].mxu0
        %v2044 = vadd.f32 %v1835, %v2043
        %2045 = vmatprep.mubr.f32.mxu0 %v394
        %2046 = vmatmul.mubr.f32.gmra.mrb[0].mxu0 %v393
        %v2047 = vpop.f32.mrb[0].mxu0
        %v2048 = vadd.f32 %v1839, %v2047
        %v2049 = vpop.f32.mrb[0].mxu0
        %v2050 = vadd.f32 %v1841, %v2049
        %2051 = vmatprep.mubr.f32.mxu0 %v400
        %2052 = vmatmul.mubr.f32.gmra.mrb[0].mxu0 %v399
        %v2053 = vpop.f32.mrb[0].mxu0
        %v2054 = vadd.f32 %v1845, %v2053
        %v2055 = vpop.f32.mrb[0].mxu0
        %v2056 = vadd.f32 %v1847, %v2055
        %2057 = vmatprep.mubr.f32.mxu0 %v406
        %2058 = vmatmul.mubr.f32.gmra.mrb[0].mxu0 %v405
        %v2059 = vpop.f32.mrb[0].mxu0
        %v2060 = vadd.f32 %v1851, %v2059
        %v2061 = vpop.f32.mrb[0].mxu0
        %v2062 = vadd.f32 %v1853, %v2061
        %2063 = vmatprep.mubr.f32.mxu0 %v412
        %2064 = vmatmul.mubr.f32.gmra.mrb[0].mxu0 %v411
        %v2065 = vpop.f32.mrb[0].mxu0
        %v2066 = vadd.f32 %v1857, %v2065
        %v2067 = vpop.f32.mrb[0].mxu0
        %v2068 = vadd.f32 %v1859, %v2067
        %2069 = vmatprep.mubr.f32.mxu0 %v418
        %2070 = vmatmul.mubr.f32.gmra.mrb[0].mxu0 %v417
        %v2071 = vpop.f32.mrb[0].mxu0
        %v2072 = vadd.f32 %v1863, %v2071
        %v2073 = vpop.f32.mrb[0].mxu0
        %v2074 = vadd.f32 %v1865, %v2073
        %2075 = vmatprep.mubr.f32.mxu0 %v424
        %2076 = vmatmul.mubr.f32.gmra.mrb[0].mxu0 %v423
        %v2077 = vpop.f32.mrb[0].mxu0
        %v2078 = vadd.f32 %v1869, %v2077
        %v2079 = vpop.f32.mrb[0].mxu0
        %v2080 = vadd.f32 %v1871, %v2079
        %2081 = vmatprep.mubr.f32.mxu0 %v430
        %2082 = vmatmul.mubr.f32.gmra.mrb[0].mxu0 %v429
        %v2083 = vpop.f32.mrb[0].mxu0
        %v2084 = vadd.f32 %v1875, %v2083
        %v2085 = vpop.f32.mrb[0].mxu0
        %v2086 = vadd.f32 %v1877, %v2085
        %2087 = vmatprep.mubr.f32.mxu0 %v436
        %2088 = vmatmul.mubr.f32.gmra.mrb[0].mxu0 %v435
        %v2089 = vpop.f32.mrb[0].mxu0
        %v2090 = vadd.f32 %v1881, %v2089
        %v2091 = vpop.f32.mrb[0].mxu0
        %v2092 = vadd.f32 %v1883, %v2091
        %2093 = vmatprep.mubr.f32.mxu0 %v442
        %2094 = vmatmul.mubr.f32.gmra.mrb[0].mxu0 %v441
        %v2095 = vpop.f32.mrb[0].mxu0
        %v2096 = vadd.f32 %v1887, %v2095
        %v2097 = vpop.f32.mrb[0].mxu0
        %v2098 = vadd.f32 %v1889, %v2097
        %2099 = vmatprep.mubr.f32.mxu0 %v448
        %2100 = vmatmul.mubr.f32.gmra.mrb[0].mxu0 %v447
        %v2101 = vpop.f32.mrb[0].mxu0
        %v2102 = vadd.f32 %v1893, %v2101
        %v2103 = vpop.f32.mrb[0].mxu0
        %v2104 = vadd.f32 %v1895, %v2103
        %2105 = vmatprep.mubr.f32.mxu0 %v454
        %2106 = vmatmul.mubr.f32.gmra.mrb[0].mxu0 %v453
        %v2107 = vpop.f32.mrb[0].mxu0
        %v2108 = vadd.f32 %v1899, %v2107
        %v2109 = vpop.f32.mrb[0].mxu0
        %v2110 = vadd.f32 %v1901, %v2109
        %2111 = vmatprep.mubr.f32.mxu0 %v460
        %2112 = vmatmul.mubr.f32.gmra.mrb[0].mxu0 %v459
        %v2113 = vpop.f32.mrb[0].mxu0
        %v2114 = vadd.f32 %v1905, %v2113
        %v2115 = vpop.f32.mrb[0].mxu0
        %v2116 = vadd.f32 %v1907, %v2115
        %2117 = vmatprep.mubr.f32.mxu0 %v466
        %2118 = vmatmul.mubr.f32.gmra.mrb[0].mxu0 %v465
        %v2119 = vpop.f32.mrb[0].mxu0
        %v2120 = vadd.f32 %v1911, %v2119
        %v2121 = vpop.f32.mrb[0].mxu0
        %v2122 = vadd.f32 %v1913, %v2121
        %2123 = vmatprep.mubr.f32.mxu0 %v472
        %2124 = vmatmul.mubr.f32.gmra.mrb[0].mxu0 %v471
        %v2125 = vpop.f32.mrb[0].mxu0
        %v2126 = vadd.f32 %v1917, %v2125
        %v2127 = vpop.f32.mrb[0].mxu0
        %v2128 = vadd.f32 %v1919, %v2127
        %2129 = vmatprep.mubr.f32.mxu0 %v478
        %2130 = vmatmul.mubr.f32.gmra.mrb[0].mxu0 %v477
        %v2131 = vpop.f32.mrb[0].mxu0
        %v2132 = vadd.f32 %v1923, %v2131
        %v2133 = vpop.f32.mrb[0].mxu0
        %v2134 = vadd.f32 %v1925, %v2133
        %2135 = vmatprep.mubr.f32.mxu0 %v484
        %2136 = vmatmul.mubr.f32.gmra.mrb[0].mxu0 %v483
        %v2137 = vpop.f32.mrb[0].mxu0
        %v2138 = vadd.f32 %v1929, %v2137
        %v2139 = vpop.f32.mrb[0].mxu0
        %v2140 = vadd.f32 %v1931, %v2139
        %2141 = vmatprep.mubr.f32.mxu0 %v490
        %2142 = vmatmul.mubr.f32.gmra.mrb[0].mxu0 %v489
        %v2143 = vpop.f32.mrb[0].mxu0
        %v2144 = vadd.f32 %v1935, %v2143
        %v2145 = vpop.f32.mrb[0].mxu0
        %v2146 = vadd.f32 %v1937, %v2145
        %2147 = vmatprep.mubr.f32.mxu0 %v496
        %2148 = vmatmul.mubr.f32.gmra.mrb[0].mxu0 %v495
        %v2149 = vpop.f32.mrb[0].mxu0
        %v2150 = vadd.f32 %v1941, %v2149
        %v2151 = vpop.f32.mrb[0].mxu0
        %v2152 = vadd.f32 %v1943, %v2151
        %2153 = vmatprep.mubr.f32.mxu0 %v502
        %2154 = vmatmul.mubr.f32.gmra.mrb[0].mxu0 %v501
        %v2155 = vpop.f32.mrb[0].mxu0
        %v2156 = vadd.f32 %v1947, %v2155
        %v2157 = vpop.f32.mrb[0].mxu0
        %v2158 = vadd.f32 %v1949, %v2157
        %2159 = vmatprep.mubr.f32.mxu0 %v508
        %2160 = vmatmul.mubr.f32.gmra.mrb[0].mxu0 %v507
        %v2161 = vpop.f32.mrb[0].mxu0
        %v2162 = vadd.f32 %v1953, %v2161
        %v2163 = vpop.f32.mrb[0].mxu0
        %v2164 = vadd.f32 %v1955, %v2163
        %2165 = vdwg.mxu0
        %2166 = vmatprep.subr.mxu0 %v898
        %2167 = vmatpush1.msra.mxu0 %v897
        %2168 = vmatprep.subr.mxu0 %v904
        %2169 = vmatpush1.msra.mxu0 %v903
        %2170 = vmatprep.subr.mxu0 %v910
        %2171 = vmatpush1.msra.mxu0 %v909
        %2172 = vmatprep.subr.mxu0 %v916
        %2173 = vmatpush1.msra.mxu0 %v915
        %2174 = vmatprep.subr.mxu0 %v922
        %2175 = vmatpush1.msra.mxu0 %v921
        %2176 = vmatprep.subr.mxu0 %v928
        %2177 = vmatpush1.msra.mxu0 %v927
        %2178 = vmatprep.subr.mxu0 %v934
        %2179 = vmatpush1.msra.mxu0 %v933
        %2180 = vmatprep.subr.mxu0 %v940
        %2181 = vmatpush1.msra.mxu0 %v939
        %2182 = vmatprep.subr.mxu0 %v946
        %2183 = vmatpush1.msra.mxu0 %v945
        %2184 = vmatprep.subr.mxu0 %v952
        %2185 = vmatpush1.msra.mxu0 %v951
        %2186 = vmatprep.subr.mxu0 %v958
        %2187 = vmatpush1.msra.mxu0 %v957
        %2188 = vmatprep.subr.mxu0 %v964
        %2189 = vmatpush1.msra.mxu0 %v963
        %2190 = vmatprep.subr.mxu0 %v970
        %2191 = vmatpush1.msra.mxu0 %v969
        %2192 = vmatprep.subr.mxu0 %v976
        %2193 = vmatpush1.msra.mxu0 %v975
        %2194 = vmatprep.subr.mxu0 %v982
        %2195 = vmatpush1.msra.mxu0 %v981
        %2196 = vmatprep.subr.mxu0 %v988
        %2197 = vmatpush1.msra.mxu0 %v987
        %2198 = vmatprep.subr.mxu0 %v994
        %2199 = vmatpush1.msra.mxu0 %v993
        %2200 = vmatprep.subr.mxu0 %v1000
        %2201 = vmatpush1.msra.mxu0 %v999
        %2202 = vmatprep.subr.mxu0 %v1006
        %2203 = vmatpush1.msra.mxu0 %v1005
        %2204 = vmatprep.subr.mxu0 %v1012
        %2205 = vmatpush1.msra.mxu0 %v1011
        %2206 = vmatprep.subr.mxu0 %v1018
        %2207 = vmatpush1.msra.mxu0 %v1017
        %2208 = vmatprep.subr.mxu0 %v1024
        %2209 = vmatpush1.msra.mxu0 %v1023
        %2210 = vmatprep.subr.mxu0 %v1030
        %2211 = vmatpush1.msra.mxu0 %v1029
        %2212 = vmatprep.subr.mxu0 %v1036
        %2213 = vmatpush1.msra.mxu0 %v1035
        %2214 = vmatprep.subr.mxu0 %v1042
        %2215 = vmatpush1.msra.mxu0 %v1041
        %2216 = vmatprep.subr.mxu0 %v1048
        %2217 = vmatpush1.msra.mxu0 %v1047
        %2218 = vmatprep.subr.mxu0 %v1054
        %2219 = vmatpush1.msra.mxu0 %v1053
        %2220 = vmatprep.subr.mxu0 %v1060
        %2221 = vmatpush1.msra.mxu0 %v1059
        %2222 = vmatprep.subr.mxu0 %v1066
        %2223 = vmatpush1.msra.mxu0 %v1065
        %2224 = vmatprep.subr.mxu0 %v1072
        %2225 = vmatpush1.msra.mxu0 %v1071
        %2226 = vmatprep.subr.mxu0 %v1078
        %2227 = vmatpush1.msra.mxu0 %v1077
        %2228 = vmatprep.subr.mxu0 %v1084
        %2229 = vmatpush1.msra.mxu0 %v1083
        %2230 = vmatprep.mubr.f32.mxu0 %v372
        %2231 = vmatmul.mubr.f32.gmra.mrb[0].mxu0 %v371
        %v2232 = vpop.f32.mrb[0].mxu0
        %v2233 = vadd.f32 %v2024, %v2232
        %v2234 = vpop.f32.mrb[0].mxu0
        %v2235 = vadd.f32 %v2026, %v2234
        %2236 = vmatprep.mubr.f32.mxu0 %v378
        %2237 = vmatmul.mubr.f32.gmra.mrb[0].mxu0 %v377
        %v2238 = vpop.f32.mrb[0].mxu0
        %v2239 = vadd.f32 %v2030, %v2238
        %v2240 = vpop.f32.mrb[0].mxu0
        %v2241 = vadd.f32 %v2032, %v2240
        %2242 = vmatprep.mubr.f32.mxu0 %v384
        %2243 = vmatmul.mubr.f32.gmra.mrb[0].mxu0 %v383
        %v2244 = vpop.f32.mrb[0].mxu0
        %v2245 = vadd.f32 %v2036, %v2244
        %v2246 = vpop.f32.mrb[0].mxu0
        %v2247 = vadd.f32 %v2038, %v2246
        %2248 = vmatprep.mubr.f32.mxu0 %v390
        %2249 = vmatmul.mubr.f32.gmra.mrb[0].mxu0 %v389
        %v2250 = vpop.f32.mrb[0].mxu0
        %v2251 = vadd.f32 %v2042, %v2250
        %v2252 = vpop.f32.mrb[0].mxu0
        %v2253 = vadd.f32 %v2044, %v2252
        %2254 = vmatprep.mubr.f32.mxu0 %v396
        %2255 = vmatmul.mubr.f32.gmra.mrb[0].mxu0 %v395
        %v2256 = vpop.f32.mrb[0].mxu0
        %v2257 = vadd.f32 %v2048, %v2256
        %v2258 = vpop.f32.mrb[0].mxu0
        %v2259 = vadd.f32 %v2050, %v2258
        %2260 = vmatprep.mubr.f32.mxu0 %v402
        %2261 = vmatmul.mubr.f32.gmra.mrb[0].mxu0 %v401
        %v2262 = vpop.f32.mrb[0].mxu0
        %v2263 = vadd.f32 %v2054, %v2262
        %v2264 = vpop.f32.mrb[0].mxu0
        %v2265 = vadd.f32 %v2056, %v2264
        %2266 = vmatprep.mubr.f32.mxu0 %v408
        %2267 = vmatmul.mubr.f32.gmra.mrb[0].mxu0 %v407
        %v2268 = vpop.f32.mrb[0].mxu0
        %v2269 = vadd.f32 %v2060, %v2268
        %v2270 = vpop.f32.mrb[0].mxu0
        %v2271 = vadd.f32 %v2062, %v2270
        %2272 = vmatprep.mubr.f32.mxu0 %v414
        %2273 = vmatmul.mubr.f32.gmra.mrb[0].mxu0 %v413
        %v2274 = vpop.f32.mrb[0].mxu0
        %v2275 = vadd.f32 %v2066, %v2274
        %v2276 = vpop.f32.mrb[0].mxu0
        %v2277 = vadd.f32 %v2068, %v2276
        %2278 = vmatprep.mubr.f32.mxu0 %v420
        %2279 = vmatmul.mubr.f32.gmra.mrb[0].mxu0 %v419
        %v2280 = vpop.f32.mrb[0].mxu0
        %v2281 = vadd.f32 %v2072, %v2280
        %v2282 = vpop.f32.mrb[0].mxu0
        %v2283 = vadd.f32 %v2074, %v2282
        %2284 = vmatprep.mubr.f32.mxu0 %v426
        %2285 = vmatmul.mubr.f32.gmra.mrb[0].mxu0 %v425
        %v2286 = vpop.f32.mrb[0].mxu0
        %v2287 = vadd.f32 %v2078, %v2286
        %v2288 = vpop.f32.mrb[0].mxu0
        %v2289 = vadd.f32 %v2080, %v2288
        %2290 = vmatprep.mubr.f32.mxu0 %v432
        %2291 = vmatmul.mubr.f32.gmra.mrb[0].mxu0 %v431
        %v2292 = vpop.f32.mrb[0].mxu0
        %v2293 = vadd.f32 %v2084, %v2292
        %v2294 = vpop.f32.mrb[0].mxu0
        %v2295 = vadd.f32 %v2086, %v2294
        %2296 = vmatprep.mubr.f32.mxu0 %v438
        %2297 = vmatmul.mubr.f32.gmra.mrb[0].mxu0 %v437
        %v2298 = vpop.f32.mrb[0].mxu0
        %v2299 = vadd.f32 %v2090, %v2298
        %v2300 = vpop.f32.mrb[0].mxu0
        %v2301 = vadd.f32 %v2092, %v2300
        %2302 = vmatprep.mubr.f32.mxu0 %v444
        %2303 = vmatmul.mubr.f32.gmra.mrb[0].mxu0 %v443
        %v2304 = vpop.f32.mrb[0].mxu0
        %v2305 = vadd.f32 %v2096, %v2304
        %v2306 = vpop.f32.mrb[0].mxu0
        %v2307 = vadd.f32 %v2098, %v2306
        %2308 = vmatprep.mubr.f32.mxu0 %v450
        %2309 = vmatmul.mubr.f32.gmra.mrb[0].mxu0 %v449
        %v2310 = vpop.f32.mrb[0].mxu0
        %v2311 = vadd.f32 %v2102, %v2310
        %v2312 = vpop.f32.mrb[0].mxu0
        %v2313 = vadd.f32 %v2104, %v2312
        %2314 = vmatprep.mubr.f32.mxu0 %v456
        %2315 = vmatmul.mubr.f32.gmra.mrb[0].mxu0 %v455
        %v2316 = vpop.f32.mrb[0].mxu0
        %v2317 = vadd.f32 %v2108, %v2316
        %v2318 = vpop.f32.mrb[0].mxu0
        %v2319 = vadd.f32 %v2110, %v2318
        %2320 = vmatprep.mubr.f32.mxu0 %v462
        %2321 = vmatmul.mubr.f32.gmra.mrb[0].mxu0 %v461
        %v2322 = vpop.f32.mrb[0].mxu0
        %v2323 = vadd.f32 %v2114, %v2322
        %v2324 = vpop.f32.mrb[0].mxu0
        %v2325 = vadd.f32 %v2116, %v2324
        %2326 = vmatprep.mubr.f32.mxu0 %v468
        %2327 = vmatmul.mubr.f32.gmra.mrb[0].mxu0 %v467
        %v2328 = vpop.f32.mrb[0].mxu0
        %v2329 = vadd.f32 %v2120, %v2328
        %v2330 = vpop.f32.mrb[0].mxu0
        %v2331 = vadd.f32 %v2122, %v2330
        %2332 = vmatprep.mubr.f32.mxu0 %v474
        %2333 = vmatmul.mubr.f32.gmra.mrb[0].mxu0 %v473
        %v2334 = vpop.f32.mrb[0].mxu0
        %v2335 = vadd.f32 %v2126, %v2334
        %v2336 = vpop.f32.mrb[0].mxu0
        %v2337 = vadd.f32 %v2128, %v2336
        %2338 = vmatprep.mubr.f32.mxu0 %v480
        %2339 = vmatmul.mubr.f32.gmra.mrb[0].mxu0 %v479
        %v2340 = vpop.f32.mrb[0].mxu0
        %v2341 = vadd.f32 %v2132, %v2340
        %v2342 = vpop.f32.mrb[0].mxu0
        %v2343 = vadd.f32 %v2134, %v2342
        %2344 = vmatprep.mubr.f32.mxu0 %v486
        %2345 = vmatmul.mubr.f32.gmra.mrb[0].mxu0 %v485
        %v2346 = vpop.f32.mrb[0].mxu0
        %v2347 = vadd.f32 %v2138, %v2346
        %v2348 = vpop.f32.mrb[0].mxu0
        %v2349 = vadd.f32 %v2140, %v2348
        %2350 = vmatprep.mubr.f32.mxu0 %v492
        %2351 = vmatmul.mubr.f32.gmra.mrb[0].mxu0 %v491
        %v2352 = vpop.f32.mrb[0].mxu0
        %v2353 = vadd.f32 %v2144, %v2352
        %v2354 = vpop.f32.mrb[0].mxu0
        %v2355 = vadd.f32 %v2146, %v2354
        %2356 = vmatprep.mubr.f32.mxu0 %v498
        %2357 = vmatmul.mubr.f32.gmra.mrb[0].mxu0 %v497
        %v2358 = vpop.f32.mrb[0].mxu0
        %v2359 = vadd.f32 %v2150, %v2358
        %v2360 = vpop.f32.mrb[0].mxu0
        %v2361 = vadd.f32 %v2152, %v2360
        %2362 = vmatprep.mubr.f32.mxu0 %v504
        %2363 = vmatmul.mubr.f32.gmra.mrb[0].mxu0 %v503
        %v2364 = vpop.f32.mrb[0].mxu0
        %v2365 = vadd.f32 %v2156, %v2364
        %v2366 = vpop.f32.mrb[0].mxu0
        %v2367 = vadd.f32 %v2158, %v2366
        %2368 = vmatprep.mubr.f32.mxu0 %v510
        %2369 = vmatmul.mubr.f32.gmra.mrb[0].mxu0 %v509
        %v2370 = vpop.f32.mrb[0].mxu0
        %v2371 = vadd.f32 %v2162, %v2370
        %v2372 = vpop.f32.mrb[0].mxu0
        %v2373 = vadd.f32 %v2164, %v2372
        %2374 = vdwg.mxu0
        %2375 = vmatprep.subr.mxu0 %v516
        %2376 = vmatpush1.msra.mxu0 %v515
        %2377 = vmatprep.subr.mxu0 %v522
        %2378 = vmatpush1.msra.mxu0 %v521
        %2379 = vmatprep.subr.mxu0 %v528
        %2380 = vmatpush1.msra.mxu0 %v527
        %2381 = vmatprep.subr.mxu0 %v534
        %2382 = vmatpush1.msra.mxu0 %v533
        %2383 = vmatprep.subr.mxu0 %v540
        %2384 = vmatpush1.msra.mxu0 %v539
        %2385 = vmatprep.subr.mxu0 %v546
        %2386 = vmatpush1.msra.mxu0 %v545
        %2387 = vmatprep.subr.mxu0 %v552
        %2388 = vmatpush1.msra.mxu0 %v551
        %2389 = vmatprep.subr.mxu0 %v558
        %2390 = vmatpush1.msra.mxu0 %v557
        %2391 = vmatprep.subr.mxu0 %v564
        %2392 = vmatpush1.msra.mxu0 %v563
        %2393 = vmatprep.subr.mxu0 %v570
        %2394 = vmatpush1.msra.mxu0 %v569
        %2395 = vmatprep.subr.mxu0 %v576
        %2396 = vmatpush1.msra.mxu0 %v575
        %2397 = vmatprep.subr.mxu0 %v582
        %2398 = vmatpush1.msra.mxu0 %v581
        %2399 = vmatprep.subr.mxu0 %v588
        %2400 = vmatpush1.msra.mxu0 %v587
        %2401 = vmatprep.subr.mxu0 %v594
        %2402 = vmatpush1.msra.mxu0 %v593
        %2403 = vmatprep.subr.mxu0 %v600
        %2404 = vmatpush1.msra.mxu0 %v599
        %2405 = vmatprep.subr.mxu0 %v606
        %2406 = vmatpush1.msra.mxu0 %v605
        %2407 = vmatprep.subr.mxu0 %v612
        %2408 = vmatpush1.msra.mxu0 %v611
        %2409 = vmatprep.subr.mxu0 %v618
        %2410 = vmatpush1.msra.mxu0 %v617
        %2411 = vmatprep.subr.mxu0 %v624
        %2412 = vmatpush1.msra.mxu0 %v623
        %2413 = vmatprep.subr.mxu0 %v630
        %2414 = vmatpush1.msra.mxu0 %v629
        %2415 = vmatprep.subr.mxu0 %v636
        %2416 = vmatpush1.msra.mxu0 %v635
        %2417 = vmatprep.subr.mxu0 %v642
        %2418 = vmatpush1.msra.mxu0 %v641
        %2419 = vmatprep.subr.mxu0 %v648
        %2420 = vmatpush1.msra.mxu0 %v647
        %2421 = vmatprep.subr.mxu0 %v654
        %2422 = vmatpush1.msra.mxu0 %v653
        %2423 = vmatprep.subr.mxu0 %v660
        %2424 = vmatpush1.msra.mxu0 %v659
        %2425 = vmatprep.subr.mxu0 %v666
        %2426 = vmatpush1.msra.mxu0 %v665
        %2427 = vmatprep.subr.mxu0 %v672
        %2428 = vmatpush1.msra.mxu0 %v671
        %2429 = vmatprep.subr.mxu0 %v678
        %2430 = vmatpush1.msra.mxu0 %v677
        %2431 = vmatprep.subr.mxu0 %v684
        %2432 = vmatpush1.msra.mxu0 %v683
        %2433 = vmatprep.subr.mxu0 %v690
        %2434 = vmatpush1.msra.mxu0 %v689
        %2435 = vmatprep.subr.mxu0 %v696
        %2436 = vmatpush1.msra.mxu0 %v695
        %2437 = vmatprep.subr.mxu0 %v702
        %2438 = vmatpush1.msra.mxu0 %v701
        %2439 = vmatprep.mubr.f32.mxu0 %v368
        %2440 = vmatmul.mubr.f32.gmra.mrb[0].mxu0 %v367
        %v2441 = vpop.f32.mrb[0].mxu0
        %v2442 = vadd.f32 %v1110, %v2441
        %v2443 = vpop.f32.mrb[0].mxu0
        %v2444 = vadd.f32 %v1114, %v2443
        %2445 = vmatprep.mubr.f32.mxu0 %v374
        %2446 = vmatmul.mubr.f32.gmra.mrb[0].mxu0 %v373
        %v2447 = vpop.f32.mrb[0].mxu0
        %v2448 = vadd.f32 %v1110, %v2447
        %v2449 = vpop.f32.mrb[0].mxu0
        %v2450 = vadd.f32 %v1114, %v2449
        %2451 = vmatprep.mubr.f32.mxu0 %v380
        %2452 = vmatmul.mubr.f32.gmra.mrb[0].mxu0 %v379
        %v2453 = vpop.f32.mrb[0].mxu0
        %v2454 = vadd.f32 %v1110, %v2453
        %v2455 = vpop.f32.mrb[0].mxu0
        %v2456 = vadd.f32 %v1114, %v2455
        %2457 = vmatprep.mubr.f32.mxu0 %v386
        %2458 = vmatmul.mubr.f32.gmra.mrb[0].mxu0 %v385
        %v2459 = vpop.f32.mrb[0].mxu0
        %v2460 = vadd.f32 %v1110, %v2459
        %v2461 = vpop.f32.mrb[0].mxu0
        %v2462 = vadd.f32 %v1114, %v2461
        %2463 = vmatprep.mubr.f32.mxu0 %v392
        %2464 = vmatmul.mubr.f32.gmra.mrb[0].mxu0 %v391
        %v2465 = vpop.f32.mrb[0].mxu0
        %v2466 = vadd.f32 %v1110, %v2465
        %v2467 = vpop.f32.mrb[0].mxu0
        %v2468 = vadd.f32 %v1114, %v2467
        %2469 = vmatprep.mubr.f32.mxu0 %v398
        %2470 = vmatmul.mubr.f32.gmra.mrb[0].mxu0 %v397
        %v2471 = vpop.f32.mrb[0].mxu0
        %v2472 = vadd.f32 %v1110, %v2471
        %v2473 = vpop.f32.mrb[0].mxu0
        %v2474 = vadd.f32 %v1114, %v2473
        %2475 = vmatprep.mubr.f32.mxu0 %v404
        %2476 = vmatmul.mubr.f32.gmra.mrb[0].mxu0 %v403
        %v2477 = vpop.f32.mrb[0].mxu0
        %v2478 = vadd.f32 %v1110, %v2477
        %v2479 = vpop.f32.mrb[0].mxu0
        %v2480 = vadd.f32 %v1114, %v2479
        %2481 = vmatprep.mubr.f32.mxu0 %v410
        %2482 = vmatmul.mubr.f32.gmra.mrb[0].mxu0 %v409
        %v2483 = vpop.f32.mrb[0].mxu0
        %v2484 = vadd.f32 %v1110, %v2483
        %v2485 = vpop.f32.mrb[0].mxu0
        %v2486 = vadd.f32 %v1114, %v2485
        %2487 = vmatprep.mubr.f32.mxu0 %v416
        %2488 = vmatmul.mubr.f32.gmra.mrb[0].mxu0 %v415
        %v2489 = vpop.f32.mrb[0].mxu0
        %v2490 = vadd.f32 %v1110, %v2489
        %v2491 = vpop.f32.mrb[0].mxu0
        %v2492 = vadd.f32 %v1114, %v2491
        %2493 = vmatprep.mubr.f32.mxu0 %v422
        %2494 = vmatmul.mubr.f32.gmra.mrb[0].mxu0 %v421
        %v2495 = vpop.f32.mrb[0].mxu0
        %v2496 = vadd.f32 %v1110, %v2495
        %v2497 = vpop.f32.mrb[0].mxu0
        %v2498 = vadd.f32 %v1114, %v2497
        %2499 = vmatprep.mubr.f32.mxu0 %v428
        %2500 = vmatmul.mubr.f32.gmra.mrb[0].mxu0 %v427
        %v2501 = vpop.f32.mrb[0].mxu0
        %v2502 = vadd.f32 %v1110, %v2501
        %v2503 = vpop.f32.mrb[0].mxu0
        %v2504 = vadd.f32 %v1114, %v2503
        %2505 = vmatprep.mubr.f32.mxu0 %v434
        %2506 = vmatmul.mubr.f32.gmra.mrb[0].mxu0 %v433
        %v2507 = vpop.f32.mrb[0].mxu0
        %v2508 = vadd.f32 %v1110, %v2507
        %v2509 = vpop.f32.mrb[0].mxu0
        %v2510 = vadd.f32 %v1114, %v2509
        %2511 = vmatprep.mubr.f32.mxu0 %v440
        %2512 = vmatmul.mubr.f32.gmra.mrb[0].mxu0 %v439
        %v2513 = vpop.f32.mrb[0].mxu0
        %v2514 = vadd.f32 %v1110, %v2513
        %v2515 = vpop.f32.mrb[0].mxu0
        %v2516 = vadd.f32 %v1114, %v2515
        %2517 = vmatprep.mubr.f32.mxu0 %v446
        %2518 = vmatmul.mubr.f32.gmra.mrb[0].mxu0 %v445
        %v2519 = vpop.f32.mrb[0].mxu0
        %v2520 = vadd.f32 %v1110, %v2519
        %v2521 = vpop.f32.mrb[0].mxu0
        %v2522 = vadd.f32 %v1114, %v2521
        %2523 = vmatprep.mubr.f32.mxu0 %v452
        %2524 = vmatmul.mubr.f32.gmra.mrb[0].mxu0 %v451
        %v2525 = vpop.f32.mrb[0].mxu0
        %v2526 = vadd.f32 %v1110, %v2525
        %v2527 = vpop.f32.mrb[0].mxu0
        %v2528 = vadd.f32 %v1114, %v2527
        %2529 = vmatprep.mubr.f32.mxu0 %v458
        %2530 = vmatmul.mubr.f32.gmra.mrb[0].mxu0 %v457
        %v2531 = vpop.f32.mrb[0].mxu0
        %v2532 = vadd.f32 %v1110, %v2531
        %v2533 = vpop.f32.mrb[0].mxu0
        %v2534 = vadd.f32 %v1114, %v2533
        %2535 = vmatprep.mubr.f32.mxu0 %v464
        %2536 = vmatmul.mubr.f32.gmra.mrb[0].mxu0 %v463
        %v2537 = vpop.f32.mrb[0].mxu0
        %v2538 = vadd.f32 %v1110, %v2537
        %v2539 = vpop.f32.mrb[0].mxu0
        %v2540 = vadd.f32 %v1114, %v2539
        %2541 = vmatprep.mubr.f32.mxu0 %v470
        %2542 = vmatmul.mubr.f32.gmra.mrb[0].mxu0 %v469
        %v2543 = vpop.f32.mrb[0].mxu0
        %v2544 = vadd.f32 %v1110, %v2543
        %v2545 = vpop.f32.mrb[0].mxu0
        %v2546 = vadd.f32 %v1114, %v2545
        %2547 = vmatprep.mubr.f32.mxu0 %v476
        %2548 = vmatmul.mubr.f32.gmra.mrb[0].mxu0 %v475
        %v2549 = vpop.f32.mrb[0].mxu0
        %v2550 = vadd.f32 %v1110, %v2549
        %v2551 = vpop.f32.mrb[0].mxu0
        %v2552 = vadd.f32 %v1114, %v2551
        %2553 = vmatprep.mubr.f32.mxu0 %v482
        %2554 = vmatmul.mubr.f32.gmra.mrb[0].mxu0 %v481
        %v2555 = vpop.f32.mrb[0].mxu0
        %v2556 = vadd.f32 %v1110, %v2555
        %v2557 = vpop.f32.mrb[0].mxu0
        %v2558 = vadd.f32 %v1114, %v2557
        %2559 = vmatprep.mubr.f32.mxu0 %v488
        %2560 = vmatmul.mubr.f32.gmra.mrb[0].mxu0 %v487
        %v2561 = vpop.f32.mrb[0].mxu0
        %v2562 = vadd.f32 %v1110, %v2561
        %v2563 = vpop.f32.mrb[0].mxu0
        %v2564 = vadd.f32 %v1114, %v2563
        %2565 = vmatprep.mubr.f32.mxu0 %v494
        %2566 = vmatmul.mubr.f32.gmra.mrb[0].mxu0 %v493
        %v2567 = vpop.f32.mrb[0].mxu0
        %v2568 = vadd.f32 %v1110, %v2567
        %v2569 = vpop.f32.mrb[0].mxu0
        %v2570 = vadd.f32 %v1114, %v2569
        %2571 = vmatprep.mubr.f32.mxu0 %v500
        %2572 = vmatmul.mubr.f32.gmra.mrb[0].mxu0 %v499
        %v2573 = vpop.f32.mrb[0].mxu0
        %v2574 = vadd.f32 %v1110, %v2573
        %v2575 = vpop.f32.mrb[0].mxu0
        %v2576 = vadd.f32 %v1114, %v2575
        %2577 = vmatprep.mubr.f32.mxu0 %v506
        %2578 = vmatmul.mubr.f32.gmra.mrb[0].mxu0 %v505
        %v2579 = vpop.f32.mrb[0].mxu0
        %v2580 = vadd.f32 %v1110, %v2579
        %v2581 = vpop.f32.mrb[0].mxu0
        %v2582 = vadd.f32 %v1114, %v2581
        %2583 = vdwg.mxu0
        %2584 = vmatprep.subr.mxu0 %v708
        %2585 = vmatpush1.msra.mxu0 %v707
        %2586 = vmatprep.subr.mxu0 %v714
        %2587 = vmatpush1.msra.mxu0 %v713
        %2588 = vmatprep.subr.mxu0 %v720
        %2589 = vmatpush1.msra.mxu0 %v719
        %2590 = vmatprep.subr.mxu0 %v726
        %2591 = vmatpush1.msra.mxu0 %v725
        %2592 = vmatprep.subr.mxu0 %v732
        %2593 = vmatpush1.msra.mxu0 %v731
        %2594 = vmatprep.subr.mxu0 %v738
        %2595 = vmatpush1.msra.mxu0 %v737
        %2596 = vmatprep.subr.mxu0 %v744
        %2597 = vmatpush1.msra.mxu0 %v743
        %2598 = vmatprep.subr.mxu0 %v750
        %2599 = vmatpush1.msra.mxu0 %v749
        %2600 = vmatprep.subr.mxu0 %v756
        %2601 = vmatpush1.msra.mxu0 %v755
        %2602 = vmatprep.subr.mxu0 %v762
        %2603 = vmatpush1.msra.mxu0 %v761
        %2604 = vmatprep.subr.mxu0 %v768
        %2605 = vmatpush1.msra.mxu0 %v767
        %2606 = vmatprep.subr.mxu0 %v774
        %2607 = vmatpush1.msra.mxu0 %v773
        %2608 = vmatprep.subr.mxu0 %v780
        %2609 = vmatpush1.msra.mxu0 %v779
        %2610 = vmatprep.subr.mxu0 %v786
        %2611 = vmatpush1.msra.mxu0 %v785
        %2612 = vmatprep.subr.mxu0 %v792
        %2613 = vmatpush1.msra.mxu0 %v791
        %2614 = vmatprep.subr.mxu0 %v798
        %2615 = vmatpush1.msra.mxu0 %v797
        %2616 = vmatprep.subr.mxu0 %v804
        %2617 = vmatpush1.msra.mxu0 %v803
        %2618 = vmatprep.subr.mxu0 %v810
        %2619 = vmatpush1.msra.mxu0 %v809
        %2620 = vmatprep.subr.mxu0 %v816
        %2621 = vmatpush1.msra.mxu0 %v815
        %2622 = vmatprep.subr.mxu0 %v822
        %2623 = vmatpush1.msra.mxu0 %v821
        %2624 = vmatprep.subr.mxu0 %v828
        %2625 = vmatpush1.msra.mxu0 %v827
        %2626 = vmatprep.subr.mxu0 %v834
        %2627 = vmatpush1.msra.mxu0 %v833
        %2628 = vmatprep.subr.mxu0 %v840
        %2629 = vmatpush1.msra.mxu0 %v839
        %2630 = vmatprep.subr.mxu0 %v846
        %2631 = vmatpush1.msra.mxu0 %v845
        %2632 = vmatprep.subr.mxu0 %v852
        %2633 = vmatpush1.msra.mxu0 %v851
        %2634 = vmatprep.subr.mxu0 %v858
        %2635 = vmatpush1.msra.mxu0 %v857
        %2636 = vmatprep.subr.mxu0 %v864
        %2637 = vmatpush1.msra.mxu0 %v863
        %2638 = vmatprep.subr.mxu0 %v870
        %2639 = vmatpush1.msra.mxu0 %v869
        %2640 = vmatprep.subr.mxu0 %v876
        %2641 = vmatpush1.msra.mxu0 %v875
        %2642 = vmatprep.subr.mxu0 %v882
        %2643 = vmatpush1.msra.mxu0 %v881
        %2644 = vmatprep.subr.mxu0 %v888
        %2645 = vmatpush1.msra.mxu0 %v887
        %2646 = vmatprep.subr.mxu0 %v894
        %2647 = vmatpush1.msra.mxu0 %v893
        %2648 = vmatprep.mubr.f32.mxu0 %v370
        %2649 = vmatmul.mubr.f32.gmra.mrb[0].mxu0 %v369
        %v2650 = vpop.f32.mrb[0].mxu0
        %v2651 = vadd.f32 %v2442, %v2650
        %v2652 = vpop.f32.mrb[0].mxu0
        %v2653 = vadd.f32 %v2444, %v2652
        %2654 = vmatprep.mubr.f32.mxu0 %v376
        %2655 = vmatmul.mubr.f32.gmra.mrb[0].mxu0 %v375
        %v2656 = vpop.f32.mrb[0].mxu0
        %v2657 = vadd.f32 %v2448, %v2656
        %v2658 = vpop.f32.mrb[0].mxu0
        %v2659 = vadd.f32 %v2450, %v2658
        %2660 = vmatprep.mubr.f32.mxu0 %v382
        %2661 = vmatmul.mubr.f32.gmra.mrb[0].mxu0 %v381
        %v2662 = vpop.f32.mrb[0].mxu0
        %v2663 = vadd.f32 %v2454, %v2662
        %v2664 = vpop.f32.mrb[0].mxu0
        %v2665 = vadd.f32 %v2456, %v2664
        %2666 = vmatprep.mubr.f32.mxu0 %v388
        %2667 = vmatmul.mubr.f32.gmra.mrb[0].mxu0 %v387
        %v2668 = vpop.f32.mrb[0].mxu0
        %v2669 = vadd.f32 %v2460, %v2668
        %v2670 = vpop.f32.mrb[0].mxu0
        %v2671 = vadd.f32 %v2462, %v2670
        %2672 = vmatprep.mubr.f32.mxu0 %v394
        %2673 = vmatmul.mubr.f32.gmra.mrb[0].mxu0 %v393
        %v2674 = vpop.f32.mrb[0].mxu0
        %v2675 = vadd.f32 %v2466, %v2674
        %v2676 = vpop.f32.mrb[0].mxu0
        %v2677 = vadd.f32 %v2468, %v2676
        %2678 = vmatprep.mubr.f32.mxu0 %v400
        %2679 = vmatmul.mubr.f32.gmra.mrb[0].mxu0 %v399
        %v2680 = vpop.f32.mrb[0].mxu0
        %v2681 = vadd.f32 %v2472, %v2680
        %v2682 = vpop.f32.mrb[0].mxu0
        %v2683 = vadd.f32 %v2474, %v2682
        %2684 = vmatprep.mubr.f32.mxu0 %v406
        %2685 = vmatmul.mubr.f32.gmra.mrb[0].mxu0 %v405
        %v2686 = vpop.f32.mrb[0].mxu0
        %v2687 = vadd.f32 %v2478, %v2686
        %v2688 = vpop.f32.mrb[0].mxu0
        %v2689 = vadd.f32 %v2480, %v2688
        %2690 = vmatprep.mubr.f32.mxu0 %v412
        %2691 = vmatmul.mubr.f32.gmra.mrb[0].mxu0 %v411
        %v2692 = vpop.f32.mrb[0].mxu0
        %v2693 = vadd.f32 %v2484, %v2692
        %v2694 = vpop.f32.mrb[0].mxu0
        %v2695 = vadd.f32 %v2486, %v2694
        %2696 = vmatprep.mubr.f32.mxu0 %v418
        %2697 = vmatmul.mubr.f32.gmra.mrb[0].mxu0 %v417
        %v2698 = vpop.f32.mrb[0].mxu0
        %v2699 = vadd.f32 %v2490, %v2698
        %v2700 = vpop.f32.mrb[0].mxu0
        %v2701 = vadd.f32 %v2492, %v2700
        %2702 = vmatprep.mubr.f32.mxu0 %v424
        %2703 = vmatmul.mubr.f32.gmra.mrb[0].mxu0 %v423
        %v2704 = vpop.f32.mrb[0].mxu0
        %v2705 = vadd.f32 %v2496, %v2704
        %v2706 = vpop.f32.mrb[0].mxu0
        %v2707 = vadd.f32 %v2498, %v2706
        %2708 = vmatprep.mubr.f32.mxu0 %v430
        %2709 = vmatmul.mubr.f32.gmra.mrb[0].mxu0 %v429
        %v2710 = vpop.f32.mrb[0].mxu0
        %v2711 = vadd.f32 %v2502, %v2710
        %v2712 = vpop.f32.mrb[0].mxu0
        %v2713 = vadd.f32 %v2504, %v2712
        %2714 = vmatprep.mubr.f32.mxu0 %v436
        %2715 = vmatmul.mubr.f32.gmra.mrb[0].mxu0 %v435
        %v2716 = vpop.f32.mrb[0].mxu0
        %v2717 = vadd.f32 %v2508, %v2716
        %v2718 = vpop.f32.mrb[0].mxu0
        %v2719 = vadd.f32 %v2510, %v2718
        %2720 = vmatprep.mubr.f32.mxu0 %v442
        %2721 = vmatmul.mubr.f32.gmra.mrb[0].mxu0 %v441
        %v2722 = vpop.f32.mrb[0].mxu0
        %v2723 = vadd.f32 %v2514, %v2722
        %v2724 = vpop.f32.mrb[0].mxu0
        %v2725 = vadd.f32 %v2516, %v2724
        %2726 = vmatprep.mubr.f32.mxu0 %v448
        %2727 = vmatmul.mubr.f32.gmra.mrb[0].mxu0 %v447
        %v2728 = vpop.f32.mrb[0].mxu0
        %v2729 = vadd.f32 %v2520, %v2728
        %v2730 = vpop.f32.mrb[0].mxu0
        %v2731 = vadd.f32 %v2522, %v2730
        %2732 = vmatprep.mubr.f32.mxu0 %v454
        %2733 = vmatmul.mubr.f32.gmra.mrb[0].mxu0 %v453
        %v2734 = vpop.f32.mrb[0].mxu0
        %v2735 = vadd.f32 %v2526, %v2734
        %v2736 = vpop.f32.mrb[0].mxu0
        %v2737 = vadd.f32 %v2528, %v2736
        %2738 = vmatprep.mubr.f32.mxu0 %v460
        %2739 = vmatmul.mubr.f32.gmra.mrb[0].mxu0 %v459
        %v2740 = vpop.f32.mrb[0].mxu0
        %v2741 = vadd.f32 %v2532, %v2740
        %v2742 = vpop.f32.mrb[0].mxu0
        %v2743 = vadd.f32 %v2534, %v2742
        %2744 = vmatprep.mubr.f32.mxu0 %v466
        %2745 = vmatmul.mubr.f32.gmra.mrb[0].mxu0 %v465
        %v2746 = vpop.f32.mrb[0].mxu0
        %v2747 = vadd.f32 %v2538, %v2746
        %v2748 = vpop.f32.mrb[0].mxu0
        %v2749 = vadd.f32 %v2540, %v2748
        %2750 = vmatprep.mubr.f32.mxu0 %v472
        %2751 = vmatmul.mubr.f32.gmra.mrb[0].mxu0 %v471
        %v2752 = vpop.f32.mrb[0].mxu0
        %v2753 = vadd.f32 %v2544, %v2752
        %v2754 = vpop.f32.mrb[0].mxu0
        %v2755 = vadd.f32 %v2546, %v2754
        %2756 = vmatprep.mubr.f32.mxu0 %v478
        %2757 = vmatmul.mubr.f32.gmra.mrb[0].mxu0 %v477
        %v2758 = vpop.f32.mrb[0].mxu0
        %v2759 = vadd.f32 %v2550, %v2758
        %v2760 = vpop.f32.mrb[0].mxu0
        %v2761 = vadd.f32 %v2552, %v2760
        %2762 = vmatprep.mubr.f32.mxu0 %v484
        %2763 = vmatmul.mubr.f32.gmra.mrb[0].mxu0 %v483
        %v2764 = vpop.f32.mrb[0].mxu0
        %v2765 = vadd.f32 %v2556, %v2764
        %v2766 = vpop.f32.mrb[0].mxu0
        %v2767 = vadd.f32 %v2558, %v2766
        %2768 = vmatprep.mubr.f32.mxu0 %v490
        %2769 = vmatmul.mubr.f32.gmra.mrb[0].mxu0 %v489
        %v2770 = vpop.f32.mrb[0].mxu0
        %v2771 = vadd.f32 %v2562, %v2770
        %v2772 = vpop.f32.mrb[0].mxu0
        %v2773 = vadd.f32 %v2564, %v2772
        %2774 = vmatprep.mubr.f32.mxu0 %v496
        %2775 = vmatmul.mubr.f32.gmra.mrb[0].mxu0 %v495
        %v2776 = vpop.f32.mrb[0].mxu0
        %v2777 = vadd.f32 %v2568, %v2776
        %v2778 = vpop.f32.mrb[0].mxu0
        %v2779 = vadd.f32 %v2570, %v2778
        %2780 = vmatprep.mubr.f32.mxu0 %v502
        %2781 = vmatmul.mubr.f32.gmra.mrb[0].mxu0 %v501
        %v2782 = vpop.f32.mrb[0].mxu0
        %v2783 = vadd.f32 %v2574, %v2782
        %v2784 = vpop.f32.mrb[0].mxu0
        %v2785 = vadd.f32 %v2576, %v2784
        %2786 = vmatprep.mubr.f32.mxu0 %v508
        %2787 = vmatmul.mubr.f32.gmra.mrb[0].mxu0 %v507
        %v2788 = vpop.f32.mrb[0].mxu0
        %v2789 = vadd.f32 %v2580, %v2788
        %v2790 = vpop.f32.mrb[0].mxu0
        %v2791 = vadd.f32 %v2582, %v2790
        %2792 = vdwg.mxu0
        %2793 = vmatprep.subr.mxu0 %v900
        %2794 = vmatpush1.msra.mxu0 %v899
        %2795 = vmatprep.subr.mxu0 %v906
        %2796 = vmatpush1.msra.mxu0 %v905
        %2797 = vmatprep.subr.mxu0 %v912
        %2798 = vmatpush1.msra.mxu0 %v911
        %2799 = vmatprep.subr.mxu0 %v918
        %2800 = vmatpush1.msra.mxu0 %v917
        %2801 = vmatprep.subr.mxu0 %v924
        %2802 = vmatpush1.msra.mxu0 %v923
        %2803 = vmatprep.subr.mxu0 %v930
        %2804 = vmatpush1.msra.mxu0 %v929
        %2805 = vmatprep.subr.mxu0 %v936
        %2806 = vmatpush1.msra.mxu0 %v935
        %2807 = vmatprep.subr.mxu0 %v942
        %2808 = vmatpush1.msra.mxu0 %v941
        %2809 = vmatprep.subr.mxu0 %v948
        %2810 = vmatpush1.msra.mxu0 %v947
        %2811 = vmatprep.subr.mxu0 %v954
        %2812 = vmatpush1.msra.mxu0 %v953
        %2813 = vmatprep.subr.mxu0 %v960
        %2814 = vmatpush1.msra.mxu0 %v959
        %2815 = vmatprep.subr.mxu0 %v966
        %2816 = vmatpush1.msra.mxu0 %v965
        %2817 = vmatprep.subr.mxu0 %v972
        %2818 = vmatpush1.msra.mxu0 %v971
        %2819 = vmatprep.subr.mxu0 %v978
        %2820 = vmatpush1.msra.mxu0 %v977
        %2821 = vmatprep.subr.mxu0 %v984
        %2822 = vmatpush1.msra.mxu0 %v983
        %2823 = vmatprep.subr.mxu0 %v990
        %2824 = vmatpush1.msra.mxu0 %v989
        %2825 = vmatprep.subr.mxu0 %v996
        %2826 = vmatpush1.msra.mxu0 %v995
        %2827 = vmatprep.subr.mxu0 %v1002
        %2828 = vmatpush1.msra.mxu0 %v1001
        %2829 = vmatprep.subr.mxu0 %v1008
        %2830 = vmatpush1.msra.mxu0 %v1007
        %2831 = vmatprep.subr.mxu0 %v1014
        %2832 = vmatpush1.msra.mxu0 %v1013
        %2833 = vmatprep.subr.mxu0 %v1020
        %2834 = vmatpush1.msra.mxu0 %v1019
        %2835 = vmatprep.subr.mxu0 %v1026
        %2836 = vmatpush1.msra.mxu0 %v1025
        %2837 = vmatprep.subr.mxu0 %v1032
        %2838 = vmatpush1.msra.mxu0 %v1031
        %2839 = vmatprep.subr.mxu0 %v1038
        %2840 = vmatpush1.msra.mxu0 %v1037
        %2841 = vmatprep.subr.mxu0 %v1044
        %2842 = vmatpush1.msra.mxu0 %v1043
        %2843 = vmatprep.subr.mxu0 %v1050
        %2844 = vmatpush1.msra.mxu0 %v1049
        %2845 = vmatprep.subr.mxu0 %v1056
        %2846 = vmatpush1.msra.mxu0 %v1055
        %2847 = vmatprep.subr.mxu0 %v1062
        %2848 = vmatpush1.msra.mxu0 %v1061
        %2849 = vmatprep.subr.mxu0 %v1068
        %2850 = vmatpush1.msra.mxu0 %v1067
        %2851 = vmatprep.subr.mxu0 %v1074
        %2852 = vmatpush1.msra.mxu0 %v1073
        %2853 = vmatprep.subr.mxu0 %v1080
        %2854 = vmatpush1.msra.mxu0 %v1079
        %2855 = vmatprep.subr.mxu0 %v1086
        %2856 = vmatpush1.msra.mxu0 %v1085
        %2857 = vmatprep.mubr.f32.mxu0 %v372
        %2858 = vmatmul.mubr.f32.gmra.mrb[0].mxu0 %v371
        %v2859 = vpop.f32.mrb[0].mxu0
        %v2860 = vadd.f32 %v2651, %v2859
        %v2861 = vpop.f32.mrb[0].mxu0
        %v2862 = vadd.f32 %v2653, %v2861
        %2863 = vmatprep.mubr.f32.mxu0 %v378
        %2864 = vmatmul.mubr.f32.gmra.mrb[0].mxu0 %v377
        %v2865 = vpop.f32.mrb[0].mxu0
        %v2866 = vadd.f32 %v2657, %v2865
        %v2867 = vpop.f32.mrb[0].mxu0
        %v2868 = vadd.f32 %v2659, %v2867
        %2869 = vmatprep.mubr.f32.mxu0 %v384
        %2870 = vmatmul.mubr.f32.gmra.mrb[0].mxu0 %v383
        %v2871 = vpop.f32.mrb[0].mxu0
        %v2872 = vadd.f32 %v2663, %v2871
        %v2873 = vpop.f32.mrb[0].mxu0
        %v2874 = vadd.f32 %v2665, %v2873
        %2875 = vmatprep.mubr.f32.mxu0 %v390
        %2876 = vmatmul.mubr.f32.gmra.mrb[0].mxu0 %v389
        %v2877 = vpop.f32.mrb[0].mxu0
        %v2878 = vadd.f32 %v2669, %v2877
        %v2879 = vpop.f32.mrb[0].mxu0
        %v2880 = vadd.f32 %v2671, %v2879
        %2881 = vmatprep.mubr.f32.mxu0 %v396
        %2882 = vmatmul.mubr.f32.gmra.mrb[0].mxu0 %v395
        %v2883 = vpop.f32.mrb[0].mxu0
        %v2884 = vadd.f32 %v2675, %v2883
        %v2885 = vpop.f32.mrb[0].mxu0
        %v2886 = vadd.f32 %v2677, %v2885
        %2887 = vmatprep.mubr.f32.mxu0 %v402
        %2888 = vmatmul.mubr.f32.gmra.mrb[0].mxu0 %v401
        %v2889 = vpop.f32.mrb[0].mxu0
        %v2890 = vadd.f32 %v2681, %v2889
        %v2891 = vpop.f32.mrb[0].mxu0
        %v2892 = vadd.f32 %v2683, %v2891
        %2893 = vmatprep.mubr.f32.mxu0 %v408
        %2894 = vmatmul.mubr.f32.gmra.mrb[0].mxu0 %v407
        %v2895 = vpop.f32.mrb[0].mxu0
        %v2896 = vadd.f32 %v2687, %v2895
        %v2897 = vpop.f32.mrb[0].mxu0
        %v2898 = vadd.f32 %v2689, %v2897
        %2899 = vmatprep.mubr.f32.mxu0 %v414
        %2900 = vmatmul.mubr.f32.gmra.mrb[0].mxu0 %v413
        %v2901 = vpop.f32.mrb[0].mxu0
        %v2902 = vadd.f32 %v2693, %v2901
        %v2903 = vpop.f32.mrb[0].mxu0
        %v2904 = vadd.f32 %v2695, %v2903
        %2905 = vmatprep.mubr.f32.mxu0 %v420
        %2906 = vmatmul.mubr.f32.gmra.mrb[0].mxu0 %v419
        %v2907 = vpop.f32.mrb[0].mxu0
        %v2908 = vadd.f32 %v2699, %v2907
        %v2909 = vpop.f32.mrb[0].mxu0
        %v2910 = vadd.f32 %v2701, %v2909
        %2911 = vmatprep.mubr.f32.mxu0 %v426
        %2912 = vmatmul.mubr.f32.gmra.mrb[0].mxu0 %v425
        %v2913 = vpop.f32.mrb[0].mxu0
        %v2914 = vadd.f32 %v2705, %v2913
        %v2915 = vpop.f32.mrb[0].mxu0
        %v2916 = vadd.f32 %v2707, %v2915
        %2917 = vmatprep.mubr.f32.mxu0 %v432
        %2918 = vmatmul.mubr.f32.gmra.mrb[0].mxu0 %v431
        %v2919 = vpop.f32.mrb[0].mxu0
        %v2920 = vadd.f32 %v2711, %v2919
        %v2921 = vpop.f32.mrb[0].mxu0
        %v2922 = vadd.f32 %v2713, %v2921
        %2923 = vmatprep.mubr.f32.mxu0 %v438
        %2924 = vmatmul.mubr.f32.gmra.mrb[0].mxu0 %v437
        %v2925 = vpop.f32.mrb[0].mxu0
        %v2926 = vadd.f32 %v2717, %v2925
        %v2927 = vpop.f32.mrb[0].mxu0
        %v2928 = vadd.f32 %v2719, %v2927
        %2929 = vmatprep.mubr.f32.mxu0 %v444
        %2930 = vmatmul.mubr.f32.gmra.mrb[0].mxu0 %v443
        %v2931 = vpop.f32.mrb[0].mxu0
        %v2932 = vadd.f32 %v2723, %v2931
        %v2933 = vpop.f32.mrb[0].mxu0
        %v2934 = vadd.f32 %v2725, %v2933
        %2935 = vmatprep.mubr.f32.mxu0 %v450
        %2936 = vmatmul.mubr.f32.gmra.mrb[0].mxu0 %v449
        %v2937 = vpop.f32.mrb[0].mxu0
        %v2938 = vadd.f32 %v2729, %v2937
        %v2939 = vpop.f32.mrb[0].mxu0
        %v2940 = vadd.f32 %v2731, %v2939
        %2941 = vmatprep.mubr.f32.mxu0 %v456
        %2942 = vmatmul.mubr.f32.gmra.mrb[0].mxu0 %v455
        %v2943 = vpop.f32.mrb[0].mxu0
        %v2944 = vadd.f32 %v2735, %v2943
        %v2945 = vpop.f32.mrb[0].mxu0
        %v2946 = vadd.f32 %v2737, %v2945
        %2947 = vmatprep.mubr.f32.mxu0 %v462
        %2948 = vmatmul.mubr.f32.gmra.mrb[0].mxu0 %v461
        %v2949 = vpop.f32.mrb[0].mxu0
        %v2950 = vadd.f32 %v2741, %v2949
        %v2951 = vpop.f32.mrb[0].mxu0
        %v2952 = vadd.f32 %v2743, %v2951
        %2953 = vmatprep.mubr.f32.mxu0 %v468
        %2954 = vmatmul.mubr.f32.gmra.mrb[0].mxu0 %v467
        %v2955 = vpop.f32.mrb[0].mxu0
        %v2956 = vadd.f32 %v2747, %v2955
        %v2957 = vpop.f32.mrb[0].mxu0
        %v2958 = vadd.f32 %v2749, %v2957
        %2959 = vmatprep.mubr.f32.mxu0 %v474
        %2960 = vmatmul.mubr.f32.gmra.mrb[0].mxu0 %v473
        %v2961 = vpop.f32.mrb[0].mxu0
        %v2962 = vadd.f32 %v2753, %v2961
        %v2963 = vpop.f32.mrb[0].mxu0
        %v2964 = vadd.f32 %v2755, %v2963
        %2965 = vmatprep.mubr.f32.mxu0 %v480
        %2966 = vmatmul.mubr.f32.gmra.mrb[0].mxu0 %v479
        %v2967 = vpop.f32.mrb[0].mxu0
        %v2968 = vadd.f32 %v2759, %v2967
        %v2969 = vpop.f32.mrb[0].mxu0
        %v2970 = vadd.f32 %v2761, %v2969
        %2971 = vmatprep.mubr.f32.mxu0 %v486
        %2972 = vmatmul.mubr.f32.gmra.mrb[0].mxu0 %v485
        %v2973 = vpop.f32.mrb[0].mxu0
        %v2974 = vadd.f32 %v2765, %v2973
        %v2975 = vpop.f32.mrb[0].mxu0
        %v2976 = vadd.f32 %v2767, %v2975
        %2977 = vmatprep.mubr.f32.mxu0 %v492
        %2978 = vmatmul.mubr.f32.gmra.mrb[0].mxu0 %v491
        %v2979 = vpop.f32.mrb[0].mxu0
        %v2980 = vadd.f32 %v2771, %v2979
        %v2981 = vpop.f32.mrb[0].mxu0
        %v2982 = vadd.f32 %v2773, %v2981
        %2983 = vmatprep.mubr.f32.mxu0 %v498
        %2984 = vmatmul.mubr.f32.gmra.mrb[0].mxu0 %v497
        %v2985 = vpop.f32.mrb[0].mxu0
        %v2986 = vadd.f32 %v2777, %v2985
        %v2987 = vpop.f32.mrb[0].mxu0
        %v2988 = vadd.f32 %v2779, %v2987
        %2989 = vmatprep.mubr.f32.mxu0 %v504
        %2990 = vmatmul.mubr.f32.gmra.mrb[0].mxu0 %v503
        %v2991 = vpop.f32.mrb[0].mxu0
        %v2992 = vadd.f32 %v2783, %v2991
        %v2993 = vpop.f32.mrb[0].mxu0
        %v2994 = vadd.f32 %v2785, %v2993
        %2995 = vmatprep.mubr.f32.mxu0 %v510
        %2996 = vmatmul.mubr.f32.gmra.mrb[0].mxu0 %v509
        %v2997 = vpop.f32.mrb[0].mxu0
        %v2998 = vadd.f32 %v2789, %v2997
        %v2999 = vpop.f32.mrb[0].mxu0
        %v3000 = vadd.f32 %v2791, %v2999
        %3001 = vdwg.mxu0
        %v3002 = vld [vmem:[%s322] sm:$0xff]
        %v3003 = vld [vmem:[%s322 + $0x8] sm:$0xff]
        %v3004 = vld [vmem:[%s322 + $0x10] sm:$0xff]
        %v3005 = vld [vmem:[%s322 + $0x18] sm:$0xff]
        %v3006 = vld [vmem:[%s322 + $0x20] sm:$0xff]
        %v3007 = vld [vmem:[%s322 + $0x28] sm:$0xff]
        %v3008 = vld [vmem:[%s322 + $0x30] sm:$0xff]
        %v3009 = vld [vmem:[%s322 + $0x38] sm:$0xff]
        %v3010 = vld [vmem:[%s322 + $0x40] sm:$0xff]
        %v3011 = vld [vmem:[%s322 + $0x48] sm:$0xff]
        %v3012 = vld [vmem:[%s322 + $0x50] sm:$0xff]
        %v3013 = vld [vmem:[%s322 + $0x58] sm:$0xff]
        %v3014 = vld [vmem:[%s322 + $0x60] sm:$0xff]
        %v3015 = vld [vmem:[%s322 + $0x68] sm:$0xff]
        %v3016 = vld [vmem:[%s322 + $0x70] sm:$0xff]
        %v3017 = vld [vmem:[%s322 + $0x78] sm:$0xff]
        %v3018 = vld [vmem:[%s322 + $0x80] sm:$0xff]
        %v3019 = vld [vmem:[%s322 + $0x88] sm:$0xff]
        %v3020 = vld [vmem:[%s322 + $0x90] sm:$0xff]
        %v3021 = vld [vmem:[%s322 + $0x98] sm:$0xff]
        %v3022 = vld [vmem:[%s322 + $0xa0] sm:$0xff]
        %v3023 = vld [vmem:[%s322 + $0xa8] sm:$0xff]
        %v3024 = vld [vmem:[%s322 + $0xb0] sm:$0xff]
        %v3025 = vld [vmem:[%s322 + $0xb8] sm:$0xff]
        %v3026 = vld [vmem:[%s322 + $0xc0] sm:$0xff]
        %v3027 = vld [vmem:[%s322 + $0xc8] sm:$0xff]
        %v3028 = vld [vmem:[%s322 + $0xd0] sm:$0xff]
        %v3029 = vld [vmem:[%s322 + $0xd8] sm:$0xff]
        %v3030 = vld [vmem:[%s322 + $0xe0] sm:$0xff]
        %v3031 = vld [vmem:[%s322 + $0xe8] sm:$0xff]
        %v3032 = vld [vmem:[%s322 + $0xf0] sm:$0xff]
        %v3033 = vld [vmem:[%s322 + $0xf8] sm:$0xff]
        %v3034 = vld [vmem:[%s322 + $0x100] sm:$0xff]
        %v3035 = vld [vmem:[%s322 + $0x108] sm:$0xff]
        %v3036 = vld [vmem:[%s322 + $0x110] sm:$0xff]
        %v3037 = vld [vmem:[%s322 + $0x118] sm:$0xff]
        %v3038 = vld [vmem:[%s322 + $0x120] sm:$0xff]
        %v3039 = vld [vmem:[%s322 + $0x128] sm:$0xff]
        %v3040 = vld [vmem:[%s322 + $0x130] sm:$0xff]
        %v3041 = vld [vmem:[%s322 + $0x138] sm:$0xff]
        %v3042 = vld [vmem:[%s322 + $0x140] sm:$0xff]
        %v3043 = vld [vmem:[%s322 + $0x148] sm:$0xff]
        %v3044 = vld [vmem:[%s322 + $0x150] sm:$0xff]
        %v3045 = vld [vmem:[%s322 + $0x158] sm:$0xff]
        %v3046 = vld [vmem:[%s322 + $0x160] sm:$0xff]
        %v3047 = vld [vmem:[%s322 + $0x168] sm:$0xff]
        %v3048 = vld [vmem:[%s322 + $0x170] sm:$0xff]
        %v3049 = vld [vmem:[%s322 + $0x178] sm:$0xff]
        %v3050 = vld [vmem:[%s322 + $0x180] sm:$0xff]
        %v3051 = vld [vmem:[%s322 + $0x188] sm:$0xff]
        %v3052 = vld [vmem:[%s322 + $0x190] sm:$0xff]
        %v3053 = vld [vmem:[%s322 + $0x198] sm:$0xff]
        %v3054 = vld [vmem:[%s322 + $0x1a0] sm:$0xff]
        %v3055 = vld [vmem:[%s322 + $0x1a8] sm:$0xff]
        %v3056 = vld [vmem:[%s322 + $0x1b0] sm:$0xff]
        %v3057 = vld [vmem:[%s322 + $0x1b8] sm:$0xff]
        %v3058 = vld [vmem:[%s322 + $0x1c0] sm:$0xff]
        %v3059 = vld [vmem:[%s322 + $0x1c8] sm:$0xff]
        %v3060 = vld [vmem:[%s322 + $0x1d0] sm:$0xff]
        %v3061 = vld [vmem:[%s322 + $0x1d8] sm:$0xff]
        %v3062 = vld [vmem:[%s322 + $0x1e0] sm:$0xff]
        %v3063 = vld [vmem:[%s322 + $0x1e8] sm:$0xff]
        %v3064 = vld [vmem:[%s322 + $0x1f0] sm:$0xff]
        %v3065 = vld [vmem:[%s322 + $0x1f8] sm:$0xff]
        %v3066 = vld [vmem:[%s322 + $0x200] sm:$0xff]
        %v3067 = vld [vmem:[%s322 + $0x208] sm:$0xff]
        %v3068 = vld [vmem:[%s322 + $0x210] sm:$0xff]
        %v3069 = vld [vmem:[%s322 + $0x218] sm:$0xff]
        %v3070 = vld [vmem:[%s322 + $0x220] sm:$0xff]
        %v3071 = vld [vmem:[%s322 + $0x228] sm:$0xff]
        %v3072 = vld [vmem:[%s322 + $0x230] sm:$0xff]
        %v3073 = vld [vmem:[%s322 + $0x238] sm:$0xff]
        %v3074 = vld [vmem:[%s322 + $0x240] sm:$0xff]
        %v3075 = vld [vmem:[%s322 + $0x248] sm:$0xff]
        %v3076 = vld [vmem:[%s322 + $0x250] sm:$0xff]
        %v3077 = vld [vmem:[%s322 + $0x258] sm:$0xff]
        %v3078 = vld [vmem:[%s322 + $0x260] sm:$0xff]
        %v3079 = vld [vmem:[%s322 + $0x268] sm:$0xff]
        %v3080 = vld [vmem:[%s322 + $0x270] sm:$0xff]
        %v3081 = vld [vmem:[%s322 + $0x278] sm:$0xff]
        %v3082 = vld [vmem:[%s322 + $0x280] sm:$0xff]
        %v3083 = vld [vmem:[%s322 + $0x288] sm:$0xff]
        %v3084 = vld [vmem:[%s322 + $0x290] sm:$0xff]
        %v3085 = vld [vmem:[%s322 + $0x298] sm:$0xff]
        %v3086 = vld [vmem:[%s322 + $0x2a0] sm:$0xff]
        %v3087 = vld [vmem:[%s322 + $0x2a8] sm:$0xff]
        %v3088 = vld [vmem:[%s322 + $0x2b0] sm:$0xff]
        %v3089 = vld [vmem:[%s322 + $0x2b8] sm:$0xff]
        %v3090 = vld [vmem:[%s322 + $0x2c0] sm:$0xff]
        %v3091 = vld [vmem:[%s322 + $0x2c8] sm:$0xff]
        %v3092 = vld [vmem:[%s322 + $0x2d0] sm:$0xff]
        %v3093 = vld [vmem:[%s322 + $0x2d8] sm:$0xff]
        %v3094 = vld [vmem:[%s322 + $0x2e0] sm:$0xff]
        %v3095 = vld [vmem:[%s322 + $0x2e8] sm:$0xff]
        %v3096 = vld [vmem:[%s322 + $0x2f0] sm:$0xff]
        %v3097 = vld [vmem:[%s322 + $0x2f8] sm:$0xff]
        %v3098 = vld [vmem:[%s322 + $0x300] sm:$0xff]
        %v3099 = vld [vmem:[%s322 + $0x308] sm:$0xff]
        %v3100 = vld [vmem:[%s322 + $0x310] sm:$0xff]
        %v3101 = vld [vmem:[%s322 + $0x318] sm:$0xff]
        %v3102 = vld [vmem:[%s322 + $0x320] sm:$0xff]
        %v3103 = vld [vmem:[%s322 + $0x328] sm:$0xff]
        %v3104 = vld [vmem:[%s322 + $0x330] sm:$0xff]
        %v3105 = vld [vmem:[%s322 + $0x338] sm:$0xff]
        %v3106 = vld [vmem:[%s322 + $0x340] sm:$0xff]
        %v3107 = vld [vmem:[%s322 + $0x348] sm:$0xff]
        %v3108 = vld [vmem:[%s322 + $0x350] sm:$0xff]
        %v3109 = vld [vmem:[%s322 + $0x358] sm:$0xff]
        %v3110 = vld [vmem:[%s322 + $0x360] sm:$0xff]
        %v3111 = vld [vmem:[%s322 + $0x368] sm:$0xff]
        %v3112 = vld [vmem:[%s322 + $0x370] sm:$0xff]
        %v3113 = vld [vmem:[%s322 + $0x378] sm:$0xff]
        %v3114 = vld [vmem:[%s322 + $0x380] sm:$0xff]
        %v3115 = vld [vmem:[%s322 + $0x388] sm:$0xff]
        %v3116 = vld [vmem:[%s322 + $0x390] sm:$0xff]
        %v3117 = vld [vmem:[%s322 + $0x398] sm:$0xff]
        %v3118 = vld [vmem:[%s322 + $0x3a0] sm:$0xff]
        %v3119 = vld [vmem:[%s322 + $0x3a8] sm:$0xff]
        %v3120 = vld [vmem:[%s322 + $0x3b0] sm:$0xff]
        %v3121 = vld [vmem:[%s322 + $0x3b8] sm:$0xff]
        %v3122 = vld [vmem:[%s322 + $0x3c0] sm:$0xff]
        %v3123 = vld [vmem:[%s322 + $0x3c8] sm:$0xff]
        %v3124 = vld [vmem:[%s322 + $0x3d0] sm:$0xff]
        %v3125 = vld [vmem:[%s322 + $0x3d8] sm:$0xff]
        %v3126 = vld [vmem:[%s322 + $0x3e0] sm:$0xff]
        %v3127 = vld [vmem:[%s322 + $0x3e8] sm:$0xff]
        %v3128 = vld [vmem:[%s322 + $0x3f0] sm:$0xff]
        %v3129 = vld [vmem:[%s322 + $0x3f8] sm:$0xff]
        %v3130 = vld [vmem:[%s322 + $0x400] sm:$0xff]
        %v3131 = vld [vmem:[%s322 + $0x408] sm:$0xff]
        %v3132 = vld [vmem:[%s322 + $0x410] sm:$0xff]
        %v3133 = vld [vmem:[%s322 + $0x418] sm:$0xff]
        %v3134 = vld [vmem:[%s322 + $0x420] sm:$0xff]
        %v3135 = vld [vmem:[%s322 + $0x428] sm:$0xff]
        %v3136 = vld [vmem:[%s322 + $0x430] sm:$0xff]
        %v3137 = vld [vmem:[%s322 + $0x438] sm:$0xff]
        %v3138 = vld [vmem:[%s322 + $0x440] sm:$0xff]
        %v3139 = vld [vmem:[%s322 + $0x448] sm:$0xff]
        %v3140 = vld [vmem:[%s322 + $0x450] sm:$0xff]
        %v3141 = vld [vmem:[%s322 + $0x458] sm:$0xff]
        %v3142 = vld [vmem:[%s322 + $0x460] sm:$0xff]
        %v3143 = vld [vmem:[%s322 + $0x468] sm:$0xff]
        %v3144 = vld [vmem:[%s322 + $0x470] sm:$0xff]
        %v3145 = vld [vmem:[%s322 + $0x478] sm:$0xff]
        %v3146 = vadd.f32 %v1606, %v3002
        %v3147 = vadd.f32 %v1608, %v3003
        %v3148 = vadd.f32 %v2233, %v3004
        %v3149 = vadd.f32 %v2235, %v3005
        %v3150 = vadd.f32 %v2860, %v3006
        %v3151 = vadd.f32 %v2862, %v3007
        %v3152 = vadd.f32 %v1612, %v3008
        %v3153 = vadd.f32 %v1614, %v3009
        %v3154 = vadd.f32 %v2239, %v3010
        %v3155 = vadd.f32 %v2241, %v3011
        %v3156 = vadd.f32 %v2866, %v3012
        %v3157 = vadd.f32 %v2868, %v3013
        %v3158 = vadd.f32 %v1618, %v3014
        %v3159 = vadd.f32 %v1620, %v3015
        %v3160 = vadd.f32 %v2245, %v3016
        %v3161 = vadd.f32 %v2247, %v3017
        %v3162 = vadd.f32 %v2872, %v3018
        %v3163 = vadd.f32 %v2874, %v3019
        %v3164 = vadd.f32 %v1624, %v3020
        %v3165 = vadd.f32 %v1626, %v3021
        %v3166 = vadd.f32 %v2251, %v3022
        %v3167 = vadd.f32 %v2253, %v3023
        %v3168 = vadd.f32 %v2878, %v3024
        %v3169 = vadd.f32 %v2880, %v3025
        %v3170 = vadd.f32 %v1630, %v3026
        %v3171 = vadd.f32 %v1632, %v3027
        %v3172 = vadd.f32 %v2257, %v3028
        %v3173 = vadd.f32 %v2259, %v3029
        %v3174 = vadd.f32 %v2884, %v3030
        %v3175 = vadd.f32 %v2886, %v3031
        %v3176 = vadd.f32 %v1636, %v3032
        %v3177 = vadd.f32 %v1638, %v3033
        %v3178 = vadd.f32 %v2263, %v3034
        %v3179 = vadd.f32 %v2265, %v3035
        %v3180 = vadd.f32 %v2890, %v3036
        %v3181 = vadd.f32 %v2892, %v3037
        %v3182 = vadd.f32 %v1642, %v3038
        %v3183 = vadd.f32 %v1644, %v3039
        %v3184 = vadd.f32 %v2269, %v3040
        %v3185 = vadd.f32 %v2271, %v3041
        %v3186 = vadd.f32 %v2896, %v3042
        %v3187 = vadd.f32 %v2898, %v3043
        %v3188 = vadd.f32 %v1648, %v3044
        %v3189 = vadd.f32 %v1650, %v3045
        %v3190 = vadd.f32 %v2275, %v3046
        %v3191 = vadd.f32 %v2277, %v3047
        %v3192 = vadd.f32 %v2902, %v3048
        %v3193 = vadd.f32 %v2904, %v3049
        %v3194 = vadd.f32 %v1654, %v3050
        %v3195 = vadd.f32 %v1656, %v3051
        %v3196 = vadd.f32 %v2281, %v3052
        %v3197 = vadd.f32 %v2283, %v3053
        %v3198 = vadd.f32 %v2908, %v3054
        %v3199 = vadd.f32 %v2910, %v3055
        %v3200 = vadd.f32 %v1660, %v3056
        %v3201 = vadd.f32 %v1662, %v3057
        %v3202 = vadd.f32 %v2287, %v3058
        %v3203 = vadd.f32 %v2289, %v3059
        %v3204 = vadd.f32 %v2914, %v3060
        %v3205 = vadd.f32 %v2916, %v3061
        %v3206 = vadd.f32 %v1666, %v3062
        %v3207 = vadd.f32 %v1668, %v3063
        %v3208 = vadd.f32 %v2293, %v3064
        %v3209 = vadd.f32 %v2295, %v3065
        %v3210 = vadd.f32 %v2920, %v3066
        %v3211 = vadd.f32 %v2922, %v3067
        %v3212 = vadd.f32 %v1672, %v3068
        %v3213 = vadd.f32 %v1674, %v3069
        %v3214 = vadd.f32 %v2299, %v3070
        %v3215 = vadd.f32 %v2301, %v3071
        %v3216 = vadd.f32 %v2926, %v3072
        %v3217 = vadd.f32 %v2928, %v3073
        %v3218 = vadd.f32 %v1678, %v3074
        %v3219 = vadd.f32 %v1680, %v3075
        %v3220 = vadd.f32 %v2305, %v3076
        %v3221 = vadd.f32 %v2307, %v3077
        %v3222 = vadd.f32 %v2932, %v3078
        %v3223 = vadd.f32 %v2934, %v3079
        %v3224 = vadd.f32 %v1684, %v3080
        %v3225 = vadd.f32 %v1686, %v3081
        %v3226 = vadd.f32 %v2311, %v3082
        %v3227 = vadd.f32 %v2313, %v3083
        %v3228 = vadd.f32 %v2938, %v3084
        %v3229 = vadd.f32 %v2940, %v3085
        %v3230 = vadd.f32 %v1690, %v3086
        %v3231 = vadd.f32 %v1692, %v3087
        %v3232 = vadd.f32 %v2317, %v3088
        %v3233 = vadd.f32 %v2319, %v3089
        %v3234 = vadd.f32 %v2944, %v3090
        %v3235 = vadd.f32 %v2946, %v3091
        %v3236 = vadd.f32 %v1696, %v3092
        %v3237 = vadd.f32 %v1698, %v3093
        %v3238 = vadd.f32 %v2323, %v3094
        %v3239 = vadd.f32 %v2325, %v3095
        %v3240 = vadd.f32 %v2950, %v3096
        %v3241 = vadd.f32 %v2952, %v3097
        %v3242 = vadd.f32 %v1702, %v3098
        %v3243 = vadd.f32 %v1704, %v3099
        %v3244 = vadd.f32 %v2329, %v3100
        %v3245 = vadd.f32 %v2331, %v3101
        %v3246 = vadd.f32 %v2956, %v3102
        %v3247 = vadd.f32 %v2958, %v3103
        %v3248 = vadd.f32 %v1708, %v3104
        %v3249 = vadd.f32 %v1710, %v3105
        %v3250 = vadd.f32 %v2335, %v3106
        %v3251 = vadd.f32 %v2337, %v3107
        %v3252 = vadd.f32 %v2962, %v3108
        %v3253 = vadd.f32 %v2964, %v3109
        %v3254 = vadd.f32 %v1714, %v3110
        %v3255 = vadd.f32 %v1716, %v3111
        %v3256 = vadd.f32 %v2341, %v3112
        %v3257 = vadd.f32 %v2343, %v3113
        %v3258 = vadd.f32 %v2968, %v3114
        %v3259 = vadd.f32 %v2970, %v3115
        %v3260 = vadd.f32 %v1720, %v3116
        %v3261 = vadd.f32 %v1722, %v3117
        %v3262 = vadd.f32 %v2347, %v3118
        %v3263 = vadd.f32 %v2349, %v3119
        %v3264 = vadd.f32 %v2974, %v3120
        %v3265 = vadd.f32 %v2976, %v3121
        %v3266 = vadd.f32 %v1726, %v3122
        %v3267 = vadd.f32 %v1728, %v3123
        %v3268 = vadd.f32 %v2353, %v3124
        %v3269 = vadd.f32 %v2355, %v3125
        %v3270 = vadd.f32 %v2980, %v3126
        %v3271 = vadd.f32 %v2982, %v3127
        %v3272 = vadd.f32 %v1732, %v3128
        %v3273 = vadd.f32 %v1734, %v3129
        %v3274 = vadd.f32 %v2359, %v3130
        %v3275 = vadd.f32 %v2361, %v3131
        %v3276 = vadd.f32 %v2986, %v3132
        %v3277 = vadd.f32 %v2988, %v3133
        %v3278 = vadd.f32 %v1738, %v3134
        %v3279 = vadd.f32 %v1740, %v3135
        %v3280 = vadd.f32 %v2365, %v3136
        %v3281 = vadd.f32 %v2367, %v3137
        %v3282 = vadd.f32 %v2992, %v3138
        %v3283 = vadd.f32 %v2994, %v3139
        %v3284 = vadd.f32 %v1744, %v3140
        %v3285 = vadd.f32 %v1746, %v3141
        %v3286 = vadd.f32 %v2371, %v3142
        %v3287 = vadd.f32 %v2373, %v3143
        %v3288 = vadd.f32 %v2998, %v3144
        %v3289 = vadd.f32 %v3000, %v3145
        %v3290 = vadd.f32 %v3146, %v3147
        %v3291 = vadd.f32 %v3290, %v3148
        %v3292 = vadd.f32 %v3291, %v3149
        %v3293 = vadd.f32 %v3292, %v3150
        %v3294 = vadd.f32 %v3293, %v3151
        %3295 = vadd.xlane.f32.xlu0 %v3294
        %v3296 = vpop.xlane.xlu0 %3295
        %v3297 = vadd.f32 %v3152, %v3153
        %v3298 = vadd.f32 %v3297, %v3154
        %v3299 = vadd.f32 %v3298, %v3155
        %v3300 = vadd.f32 %v3299, %v3156
        %v3301 = vadd.f32 %v3300, %v3157
        %3302 = vadd.xlane.f32.xlu0 %v3301
        %v3303 = vpop.xlane.xlu0 %3302
        %v3304 = vadd.f32 %v3158, %v3159
        %v3305 = vadd.f32 %v3304, %v3160
        %v3306 = vadd.f32 %v3305, %v3161
        %v3307 = vadd.f32 %v3306, %v3162
        %v3308 = vadd.f32 %v3307, %v3163
        %3309 = vadd.xlane.f32.xlu0 %v3308
        %v3310 = vpop.xlane.xlu0 %3309
        %v3311 = vadd.f32 %v3164, %v3165
        %v3312 = vadd.f32 %v3311, %v3166
        %v3313 = vadd.f32 %v3312, %v3167
        %v3314 = vadd.f32 %v3313, %v3168
        %v3315 = vadd.f32 %v3314, %v3169
        %3316 = vadd.xlane.f32.xlu0 %v3315
        %v3317 = vpop.xlane.xlu0 %3316
        %v3318 = vadd.f32 %v3170, %v3171
        %v3319 = vadd.f32 %v3318, %v3172
        %v3320 = vadd.f32 %v3319, %v3173
        %v3321 = vadd.f32 %v3320, %v3174
        %v3322 = vadd.f32 %v3321, %v3175
        %3323 = vadd.xlane.f32.xlu0 %v3322
        %v3324 = vpop.xlane.xlu0 %3323
        %v3325 = vadd.f32 %v3176, %v3177
        %v3326 = vadd.f32 %v3325, %v3178
        %v3327 = vadd.f32 %v3326, %v3179
        %v3328 = vadd.f32 %v3327, %v3180
        %v3329 = vadd.f32 %v3328, %v3181
        %3330 = vadd.xlane.f32.xlu0 %v3329
        %v3331 = vpop.xlane.xlu0 %3330
        %v3332 = vadd.f32 %v3182, %v3183
        %v3333 = vadd.f32 %v3332, %v3184
        %v3334 = vadd.f32 %v3333, %v3185
        %v3335 = vadd.f32 %v3334, %v3186
        %v3336 = vadd.f32 %v3335, %v3187
        %3337 = vadd.xlane.f32.xlu0 %v3336
        %v3338 = vpop.xlane.xlu0 %3337
        %v3339 = vadd.f32 %v3188, %v3189
        %v3340 = vadd.f32 %v3339, %v3190
        %v3341 = vadd.f32 %v3340, %v3191
        %v3342 = vadd.f32 %v3341, %v3192
        %v3343 = vadd.f32 %v3342, %v3193
        %3344 = vadd.xlane.f32.xlu0 %v3343
        %v3345 = vpop.xlane.xlu0 %3344
        %v3346 = vadd.f32 %v3194, %v3195
        %v3347 = vadd.f32 %v3346, %v3196
        %v3348 = vadd.f32 %v3347, %v3197
        %v3349 = vadd.f32 %v3348, %v3198
        %v3350 = vadd.f32 %v3349, %v3199
        %3351 = vadd.xlane.f32.xlu0 %v3350
        %v3352 = vpop.xlane.xlu0 %3351
        %v3353 = vadd.f32 %v3200, %v3201
        %v3354 = vadd.f32 %v3353, %v3202
        %v3355 = vadd.f32 %v3354, %v3203
        %v3356 = vadd.f32 %v3355, %v3204
        %v3357 = vadd.f32 %v3356, %v3205
        %3358 = vadd.xlane.f32.xlu0 %v3357
        %v3359 = vpop.xlane.xlu0 %3358
        %v3360 = vadd.f32 %v3206, %v3207
        %v3361 = vadd.f32 %v3360, %v3208
        %v3362 = vadd.f32 %v3361, %v3209
        %v3363 = vadd.f32 %v3362, %v3210
        %v3364 = vadd.f32 %v3363, %v3211
        %3365 = vadd.xlane.f32.xlu0 %v3364
        %v3366 = vpop.xlane.xlu0 %3365
        %v3367 = vadd.f32 %v3212, %v3213
        %v3368 = vadd.f32 %v3367, %v3214
        %v3369 = vadd.f32 %v3368, %v3215
        %v3370 = vadd.f32 %v3369, %v3216
        %v3371 = vadd.f32 %v3370, %v3217
        %3372 = vadd.xlane.f32.xlu0 %v3371
        %v3373 = vpop.xlane.xlu0 %3372
        %v3374 = vadd.f32 %v3218, %v3219
        %v3375 = vadd.f32 %v3374, %v3220
        %v3376 = vadd.f32 %v3375, %v3221
        %v3377 = vadd.f32 %v3376, %v3222
        %v3378 = vadd.f32 %v3377, %v3223
        %3379 = vadd.xlane.f32.xlu0 %v3378
        %v3380 = vpop.xlane.xlu0 %3379
        %v3381 = vadd.f32 %v3224, %v3225
        %v3382 = vadd.f32 %v3381, %v3226
        %v3383 = vadd.f32 %v3382, %v3227
        %v3384 = vadd.f32 %v3383, %v3228
        %v3385 = vadd.f32 %v3384, %v3229
        %3386 = vadd.xlane.f32.xlu0 %v3385
        %v3387 = vpop.xlane.xlu0 %3386
        %v3388 = vadd.f32 %v3230, %v3231
        %v3389 = vadd.f32 %v3388, %v3232
        %v3390 = vadd.f32 %v3389, %v3233
        %v3391 = vadd.f32 %v3390, %v3234
        %v3392 = vadd.f32 %v3391, %v3235
        %3393 = vadd.xlane.f32.xlu0 %v3392
        %v3394 = vpop.xlane.xlu0 %3393
        %v3395 = vadd.f32 %v3236, %v3237
        %v3396 = vadd.f32 %v3395, %v3238
        %v3397 = vadd.f32 %v3396, %v3239
        %v3398 = vadd.f32 %v3397, %v3240
        %v3399 = vadd.f32 %v3398, %v3241
        %3400 = vadd.xlane.f32.xlu0 %v3399
        %v3401 = vpop.xlane.xlu0 %3400
        %v3402 = vadd.f32 %v3242, %v3243
        %v3403 = vadd.f32 %v3402, %v3244
        %v3404 = vadd.f32 %v3403, %v3245
        %v3405 = vadd.f32 %v3404, %v3246
        %v3406 = vadd.f32 %v3405, %v3247
        %3407 = vadd.xlane.f32.xlu0 %v3406
        %v3408 = vpop.xlane.xlu0 %3407
        %v3409 = vadd.f32 %v3248, %v3249
        %v3410 = vadd.f32 %v3409, %v3250
        %v3411 = vadd.f32 %v3410, %v3251
        %v3412 = vadd.f32 %v3411, %v3252
        %v3413 = vadd.f32 %v3412, %v3253
        %3414 = vadd.xlane.f32.xlu0 %v3413
        %v3415 = vpop.xlane.xlu0 %3414
        %v3416 = vadd.f32 %v3254, %v3255
        %v3417 = vadd.f32 %v3416, %v3256
        %v3418 = vadd.f32 %v3417, %v3257
        %v3419 = vadd.f32 %v3418, %v3258
        %v3420 = vadd.f32 %v3419, %v3259
        %3421 = vadd.xlane.f32.xlu0 %v3420
        %v3422 = vpop.xlane.xlu0 %3421
        %v3423 = vadd.f32 %v3260, %v3261
        %v3424 = vadd.f32 %v3423, %v3262
        %v3425 = vadd.f32 %v3424, %v3263
        %v3426 = vadd.f32 %v3425, %v3264
        %v3427 = vadd.f32 %v3426, %v3265
        %3428 = vadd.xlane.f32.xlu0 %v3427
        %v3429 = vpop.xlane.xlu0 %3428
        %v3430 = vadd.f32 %v3266, %v3267
        %v3431 = vadd.f32 %v3430, %v3268
        %v3432 = vadd.f32 %v3431, %v3269
        %v3433 = vadd.f32 %v3432, %v3270
        %v3434 = vadd.f32 %v3433, %v3271
        %3435 = vadd.xlane.f32.xlu0 %v3434
        %v3436 = vpop.xlane.xlu0 %3435
        %v3437 = vadd.f32 %v3272, %v3273
        %v3438 = vadd.f32 %v3437, %v3274
        %v3439 = vadd.f32 %v3438, %v3275
        %v3440 = vadd.f32 %v3439, %v3276
        %v3441 = vadd.f32 %v3440, %v3277
        %3442 = vadd.xlane.f32.xlu0 %v3441
        %v3443 = vpop.xlane.xlu0 %3442
        %v3444 = vadd.f32 %v3278, %v3279
        %v3445 = vadd.f32 %v3444, %v3280
        %v3446 = vadd.f32 %v3445, %v3281
        %v3447 = vadd.f32 %v3446, %v3282
        %v3448 = vadd.f32 %v3447, %v3283
        %3449 = vadd.xlane.f32.xlu0 %v3448
        %v3450 = vpop.xlane.xlu0 %3449
        %v3451 = vadd.f32 %v3284, %v3285
        %v3452 = vadd.f32 %v3451, %v3286
        %v3453 = vadd.f32 %v3452, %v3287
        %v3454 = vadd.f32 %v3453, %v3288
        %v3455 = vadd.f32 %v3454, %v3289
        %3456 = vadd.xlane.f32.xlu0 %v3455
        %v3457 = vpop.xlane.xlu0 %3456
        %v3458 = vmul.f32 %v3296, 0.0013020834
        %v3459 = vmul.f32 %v3303, 0.0013020834
        %v3460 = vmul.f32 %v3310, 0.0013020834
        %v3461 = vmul.f32 %v3317, 0.0013020834
        %v3462 = vmul.f32 %v3324, 0.0013020834
        %v3463 = vmul.f32 %v3331, 0.0013020834
        %v3464 = vmul.f32 %v3338, 0.0013020834
        %v3465 = vmul.f32 %v3345, 0.0013020834
        %v3466 = vmul.f32 %v3352, 0.0013020834
        %v3467 = vmul.f32 %v3359, 0.0013020834
        %v3468 = vmul.f32 %v3366, 0.0013020834
        %v3469 = vmul.f32 %v3373, 0.0013020834
        %v3470 = vmul.f32 %v3380, 0.0013020834
        %v3471 = vmul.f32 %v3387, 0.0013020834
        %v3472 = vmul.f32 %v3394, 0.0013020834
        %v3473 = vmul.f32 %v3401, 0.0013020834
        %v3474 = vmul.f32 %v3408, 0.0013020834
        %v3475 = vmul.f32 %v3415, 0.0013020834
        %v3476 = vmul.f32 %v3422, 0.0013020834
        %v3477 = vmul.f32 %v3429, 0.0013020834
        %v3478 = vmul.f32 %v3436, 0.0013020834
        %v3479 = vmul.f32 %v3443, 0.0013020834
        %v3480 = vmul.f32 %v3450, 0.0013020834
        %v3481 = vmul.f32 %v3457, 0.0013020834
        %v3482 = vsub.f32 %v3146, %v3458
        %v3483 = vsub.f32 %v3147, %v3458
        %v3484 = vsub.f32 %v3148, %v3458
        %v3485 = vsub.f32 %v3149, %v3458
        %v3486 = vsub.f32 %v3150, %v3458
        %v3487 = vsub.f32 %v3151, %v3458
        %v3488 = vsub.f32 %v3152, %v3459
        %v3489 = vsub.f32 %v3153, %v3459
        %v3490 = vsub.f32 %v3154, %v3459
        %v3491 = vsub.f32 %v3155, %v3459
        %v3492 = vsub.f32 %v3156, %v3459
        %v3493 = vsub.f32 %v3157, %v3459
        %v3494 = vsub.f32 %v3158, %v3460
        %v3495 = vsub.f32 %v3159, %v3460
        %v3496 = vsub.f32 %v3160, %v3460
        %v3497 = vsub.f32 %v3161, %v3460
        %v3498 = vsub.f32 %v3162, %v3460
        %v3499 = vsub.f32 %v3163, %v3460
        %v3500 = vsub.f32 %v3164, %v3461
        %v3501 = vsub.f32 %v3165, %v3461
        %v3502 = vsub.f32 %v3166, %v3461
        %v3503 = vsub.f32 %v3167, %v3461
        %v3504 = vsub.f32 %v3168, %v3461
        %v3505 = vsub.f32 %v3169, %v3461
        %v3506 = vsub.f32 %v3170, %v3462
        %v3507 = vsub.f32 %v3171, %v3462
        %v3508 = vsub.f32 %v3172, %v3462
        %v3509 = vsub.f32 %v3173, %v3462
        %v3510 = vsub.f32 %v3174, %v3462
        %v3511 = vsub.f32 %v3175, %v3462
        %v3512 = vsub.f32 %v3176, %v3463
        %v3513 = vsub.f32 %v3177, %v3463
        %v3514 = vsub.f32 %v3178, %v3463
        %v3515 = vsub.f32 %v3179, %v3463
        %v3516 = vsub.f32 %v3180, %v3463
        %v3517 = vsub.f32 %v3181, %v3463
        %v3518 = vsub.f32 %v3182, %v3464
        %v3519 = vsub.f32 %v3183, %v3464
        %v3520 = vsub.f32 %v3184, %v3464
        %v3521 = vsub.f32 %v3185, %v3464
        %v3522 = vsub.f32 %v3186, %v3464
        %v3523 = vsub.f32 %v3187, %v3464
        %v3524 = vsub.f32 %v3188, %v3465
        %v3525 = vsub.f32 %v3189, %v3465
        %v3526 = vsub.f32 %v3190, %v3465
        %v3527 = vsub.f32 %v3191, %v3465
        %v3528 = vsub.f32 %v3192, %v3465
        %v3529 = vsub.f32 %v3193, %v3465
        %v3530 = vsub.f32 %v3194, %v3466
        %v3531 = vsub.f32 %v3195, %v3466
        %v3532 = vsub.f32 %v3196, %v3466
        %v3533 = vsub.f32 %v3197, %v3466
        %v3534 = vsub.f32 %v3198, %v3466
        %v3535 = vsub.f32 %v3199, %v3466
        %v3536 = vsub.f32 %v3200, %v3467
        %v3537 = vsub.f32 %v3201, %v3467
        %v3538 = vsub.f32 %v3202, %v3467
        %v3539 = vsub.f32 %v3203, %v3467
        %v3540 = vsub.f32 %v3204, %v3467
        %v3541 = vsub.f32 %v3205, %v3467
        %v3542 = vsub.f32 %v3206, %v3468
        %v3543 = vsub.f32 %v3207, %v3468
        %v3544 = vsub.f32 %v3208, %v3468
        %v3545 = vsub.f32 %v3209, %v3468
        %v3546 = vsub.f32 %v3210, %v3468
        %v3547 = vsub.f32 %v3211, %v3468
        %v3548 = vsub.f32 %v3212, %v3469
        %v3549 = vsub.f32 %v3213, %v3469
        %v3550 = vsub.f32 %v3214, %v3469
        %v3551 = vsub.f32 %v3215, %v3469
        %v3552 = vsub.f32 %v3216, %v3469
        %v3553 = vsub.f32 %v3217, %v3469
        %v3554 = vsub.f32 %v3218, %v3470
        %v3555 = vsub.f32 %v3219, %v3470
        %v3556 = vsub.f32 %v3220, %v3470
        %v3557 = vsub.f32 %v3221, %v3470
        %v3558 = vsub.f32 %v3222, %v3470
        %v3559 = vsub.f32 %v3223, %v3470
        %v3560 = vsub.f32 %v3224, %v3471
        %v3561 = vsub.f32 %v3225, %v3471
        %v3562 = vsub.f32 %v3226, %v3471
        %v3563 = vsub.f32 %v3227, %v3471
        %v3564 = vsub.f32 %v3228, %v3471
        %v3565 = vsub.f32 %v3229, %v3471
        %v3566 = vsub.f32 %v3230, %v3472
        %v3567 = vsub.f32 %v3231, %v3472
        %v3568 = vsub.f32 %v3232, %v3472
        %v3569 = vsub.f32 %v3233, %v3472
        %v3570 = vsub.f32 %v3234, %v3472
        %v3571 = vsub.f32 %v3235, %v3472
        %v3572 = vsub.f32 %v3236, %v3473
        %v3573 = vsub.f32 %v3237, %v3473
        %v3574 = vsub.f32 %v3238, %v3473
        %v3575 = vsub.f32 %v3239, %v3473
        %v3576 = vsub.f32 %v3240, %v3473
        %v3577 = vsub.f32 %v3241, %v3473
        %v3578 = vsub.f32 %v3242, %v3474
        %v3579 = vsub.f32 %v3243, %v3474
        %v3580 = vsub.f32 %v3244, %v3474
        %v3581 = vsub.f32 %v3245, %v3474
        %v3582 = vsub.f32 %v3246, %v3474
        %v3583 = vsub.f32 %v3247, %v3474
        %v3584 = vsub.f32 %v3248, %v3475
        %v3585 = vsub.f32 %v3249, %v3475
        %v3586 = vsub.f32 %v3250, %v3475
        %v3587 = vsub.f32 %v3251, %v3475
        %v3588 = vsub.f32 %v3252, %v3475
        %v3589 = vsub.f32 %v3253, %v3475
        %v3590 = vsub.f32 %v3254, %v3476
        %v3591 = vsub.f32 %v3255, %v3476
        %v3592 = vsub.f32 %v3256, %v3476
        %v3593 = vsub.f32 %v3257, %v3476
        %v3594 = vsub.f32 %v3258, %v3476
        %v3595 = vsub.f32 %v3259, %v3476
        %v3596 = vsub.f32 %v3260, %v3477
        %v3597 = vsub.f32 %v3261, %v3477
        %v3598 = vsub.f32 %v3262, %v3477
        %v3599 = vsub.f32 %v3263, %v3477
        %v3600 = vsub.f32 %v3264, %v3477
        %v3601 = vsub.f32 %v3265, %v3477
        %v3602 = vsub.f32 %v3266, %v3478
        %v3603 = vsub.f32 %v3267, %v3478
        %v3604 = vsub.f32 %v3268, %v3478
        %v3605 = vsub.f32 %v3269, %v3478
        %v3606 = vsub.f32 %v3270, %v3478
        %v3607 = vsub.f32 %v3271, %v3478
        %v3608 = vsub.f32 %v3272, %v3479
        %v3609 = vsub.f32 %v3273, %v3479
        %v3610 = vsub.f32 %v3274, %v3479
        %v3611 = vsub.f32 %v3275, %v3479
        %v3612 = vsub.f32 %v3276, %v3479
        %v3613 = vsub.f32 %v3277, %v3479
        %v3614 = vsub.f32 %v3278, %v3480
        %v3615 = vsub.f32 %v3279, %v3480
        %v3616 = vsub.f32 %v3280, %v3480
        %v3617 = vsub.f32 %v3281, %v3480
        %v3618 = vsub.f32 %v3282, %v3480
        %v3619 = vsub.f32 %v3283, %v3480
        %v3620 = vsub.f32 %v3284, %v3481
        %v3621 = vsub.f32 %v3285, %v3481
        %v3622 = vsub.f32 %v3286, %v3481
        %v3623 = vsub.f32 %v3287, %v3481
        %v3624 = vsub.f32 %v3288, %v3481
        %v3625 = vsub.f32 %v3289, %v3481
        %v3626 = vmul.f32 %v3482, %v3482
        %v3627 = vmul.f32 %v3483, %v3483
        %v3628 = vmul.f32 %v3484, %v3484
        %v3629 = vmul.f32 %v3485, %v3485
        %v3630 = vmul.f32 %v3486, %v3486
        %v3631 = vmul.f32 %v3487, %v3487
        %v3632 = vmul.f32 %v3488, %v3488
        %v3633 = vmul.f32 %v3489, %v3489
        %v3634 = vmul.f32 %v3490, %v3490
        %v3635 = vmul.f32 %v3491, %v3491
        %v3636 = vmul.f32 %v3492, %v3492
        %v3637 = vmul.f32 %v3493, %v3493
        %v3638 = vmul.f32 %v3494, %v3494
        %v3639 = vmul.f32 %v3495, %v3495
        %v3640 = vmul.f32 %v3496, %v3496
        %v3641 = vmul.f32 %v3497, %v3497
        %v3642 = vmul.f32 %v3498, %v3498
        %v3643 = vmul.f32 %v3499, %v3499
        %v3644 = vmul.f32 %v3500, %v3500
        %v3645 = vmul.f32 %v3501, %v3501
        %v3646 = vmul.f32 %v3502, %v3502
        %v3647 = vmul.f32 %v3503, %v3503
        %v3648 = vmul.f32 %v3504, %v3504
        %v3649 = vmul.f32 %v3505, %v3505
        %v3650 = vmul.f32 %v3506, %v3506
        %v3651 = vmul.f32 %v3507, %v3507
        %v3652 = vmul.f32 %v3508, %v3508
        %v3653 = vmul.f32 %v3509, %v3509
        %v3654 = vmul.f32 %v3510, %v3510
        %v3655 = vmul.f32 %v3511, %v3511
        %v3656 = vmul.f32 %v3512, %v3512
        %v3657 = vmul.f32 %v3513, %v3513
        %v3658 = vmul.f32 %v3514, %v3514
        %v3659 = vmul.f32 %v3515, %v3515
        %v3660 = vmul.f32 %v3516, %v3516
        %v3661 = vmul.f32 %v3517, %v3517
        %v3662 = vmul.f32 %v3518, %v3518
        %v3663 = vmul.f32 %v3519, %v3519
        %v3664 = vmul.f32 %v3520, %v3520
        %v3665 = vmul.f32 %v3521, %v3521
        %v3666 = vmul.f32 %v3522, %v3522
        %v3667 = vmul.f32 %v3523, %v3523
        %v3668 = vmul.f32 %v3524, %v3524
        %v3669 = vmul.f32 %v3525, %v3525
        %v3670 = vmul.f32 %v3526, %v3526
        %v3671 = vmul.f32 %v3527, %v3527
        %v3672 = vmul.f32 %v3528, %v3528
        %v3673 = vmul.f32 %v3529, %v3529
        %v3674 = vmul.f32 %v3530, %v3530
        %v3675 = vmul.f32 %v3531, %v3531
        %v3676 = vmul.f32 %v3532, %v3532
        %v3677 = vmul.f32 %v3533, %v3533
        %v3678 = vmul.f32 %v3534, %v3534
        %v3679 = vmul.f32 %v3535, %v3535
        %v3680 = vmul.f32 %v3536, %v3536
        %v3681 = vmul.f32 %v3537, %v3537
        %v3682 = vmul.f32 %v3538, %v3538
        %v3683 = vmul.f32 %v3539, %v3539
        %v3684 = vmul.f32 %v3540, %v3540
        %v3685 = vmul.f32 %v3541, %v3541
        %v3686 = vmul.f32 %v3542, %v3542
        %v3687 = vmul.f32 %v3543, %v3543
        %v3688 = vmul.f32 %v3544, %v3544
        %v3689 = vmul.f32 %v3545, %v3545
        %v3690 = vmul.f32 %v3546, %v3546
        %v3691 = vmul.f32 %v3547, %v3547
        %v3692 = vmul.f32 %v3548, %v3548
        %v3693 = vmul.f32 %v3549, %v3549
        %v3694 = vmul.f32 %v3550, %v3550
        %v3695 = vmul.f32 %v3551, %v3551
        %v3696 = vmul.f32 %v3552, %v3552
        %v3697 = vmul.f32 %v3553, %v3553
        %v3698 = vmul.f32 %v3554, %v3554
        %v3699 = vmul.f32 %v3555, %v3555
        %v3700 = vmul.f32 %v3556, %v3556
        %v3701 = vmul.f32 %v3557, %v3557
        %v3702 = vmul.f32 %v3558, %v3558
        %v3703 = vmul.f32 %v3559, %v3559
        %v3704 = vmul.f32 %v3560, %v3560
        %v3705 = vmul.f32 %v3561, %v3561
        %v3706 = vmul.f32 %v3562, %v3562
        %v3707 = vmul.f32 %v3563, %v3563
        %v3708 = vmul.f32 %v3564, %v3564
        %v3709 = vmul.f32 %v3565, %v3565
        %v3710 = vmul.f32 %v3566, %v3566
        %v3711 = vmul.f32 %v3567, %v3567
        %v3712 = vmul.f32 %v3568, %v3568
        %v3713 = vmul.f32 %v3569, %v3569
        %v3714 = vmul.f32 %v3570, %v3570
        %v3715 = vmul.f32 %v3571, %v3571
        %v3716 = vmul.f32 %v3572, %v3572
        %v3717 = vmul.f32 %v3573, %v3573
        %v3718 = vmul.f32 %v3574, %v3574
        %v3719 = vmul.f32 %v3575, %v3575
        %v3720 = vmul.f32 %v3576, %v3576
        %v3721 = vmul.f32 %v3577, %v3577
        %v3722 = vmul.f32 %v3578, %v3578
        %v3723 = vmul.f32 %v3579, %v3579
        %v3724 = vmul.f32 %v3580, %v3580
        %v3725 = vmul.f32 %v3581, %v3581
        %v3726 = vmul.f32 %v3582, %v3582
        %v3727 = vmul.f32 %v3583, %v3583
        %v3728 = vmul.f32 %v3584, %v3584
        %v3729 = vmul.f32 %v3585, %v3585
        %v3730 = vmul.f32 %v3586, %v3586
        %v3731 = vmul.f32 %v3587, %v3587
        %v3732 = vmul.f32 %v3588, %v3588
        %v3733 = vmul.f32 %v3589, %v3589
        %v3734 = vmul.f32 %v3590, %v3590
        %v3735 = vmul.f32 %v3591, %v3591
        %v3736 = vmul.f32 %v3592, %v3592
        %v3737 = vmul.f32 %v3593, %v3593
        %v3738 = vmul.f32 %v3594, %v3594
        %v3739 = vmul.f32 %v3595, %v3595
        %v3740 = vmul.f32 %v3596, %v3596
        %v3741 = vmul.f32 %v3597, %v3597
        %v3742 = vmul.f32 %v3598, %v3598
        %v3743 = vmul.f32 %v3599, %v3599
        %v3744 = vmul.f32 %v3600, %v3600
        %v3745 = vmul.f32 %v3601, %v3601
        %v3746 = vmul.f32 %v3602, %v3602
        %v3747 = vmul.f32 %v3603, %v3603
        %v3748 = vmul.f32 %v3604, %v3604
        %v3749 = vmul.f32 %v3605, %v3605
        %v3750 = vmul.f32 %v3606, %v3606
        %v3751 = vmul.f32 %v3607, %v3607
        %v3752 = vmul.f32 %v3608, %v3608
        %v3753 = vmul.f32 %v3609, %v3609
        %v3754 = vmul.f32 %v3610, %v3610
        %v3755 = vmul.f32 %v3611, %v3611
        %v3756 = vmul.f32 %v3612, %v3612
        %v3757 = vmul.f32 %v3613, %v3613
        %v3758 = vmul.f32 %v3614, %v3614
        %v3759 = vmul.f32 %v3615, %v3615
        %v3760 = vmul.f32 %v3616, %v3616
        %v3761 = vmul.f32 %v3617, %v3617
        %v3762 = vmul.f32 %v3618, %v3618
        %v3763 = vmul.f32 %v3619, %v3619
        %v3764 = vmul.f32 %v3620, %v3620
        %v3765 = vmul.f32 %v3621, %v3621
        %v3766 = vmul.f32 %v3622, %v3622
        %v3767 = vmul.f32 %v3623, %v3623
        %v3768 = vmul.f32 %v3624, %v3624
        %v3769 = vmul.f32 %v3625, %v3625
        %v3770 = vadd.f32 %v3626, %v3627
        %v3771 = vadd.f32 %v3770, %v3628
        %v3772 = vadd.f32 %v3771, %v3629
        %v3773 = vadd.f32 %v3772, %v3630
        %v3774 = vadd.f32 %v3773, %v3631
        %3775 = vadd.xlane.f32.xlu0 %v3774
        %v3776 = vpop.xlane.xlu0 %3775
        %v3777 = vadd.f32 %v3632, %v3633
        %v3778 = vadd.f32 %v3777, %v3634
        %v3779 = vadd.f32 %v3778, %v3635
        %v3780 = vadd.f32 %v3779, %v3636
        %v3781 = vadd.f32 %v3780, %v3637
        %3782 = vadd.xlane.f32.xlu0 %v3781
        %v3783 = vpop.xlane.xlu0 %3782
        %v3784 = vadd.f32 %v3638, %v3639
        %v3785 = vadd.f32 %v3784, %v3640
        %v3786 = vadd.f32 %v3785, %v3641
        %v3787 = vadd.f32 %v3786, %v3642
        %v3788 = vadd.f32 %v3787, %v3643
        %3789 = vadd.xlane.f32.xlu0 %v3788
        %v3790 = vpop.xlane.xlu0 %3789
        %v3791 = vadd.f32 %v3644, %v3645
        %v3792 = vadd.f32 %v3791, %v3646
        %v3793 = vadd.f32 %v3792, %v3647
        %v3794 = vadd.f32 %v3793, %v3648
        %v3795 = vadd.f32 %v3794, %v3649
        %3796 = vadd.xlane.f32.xlu0 %v3795
        %v3797 = vpop.xlane.xlu0 %3796
        %v3798 = vadd.f32 %v3650, %v3651
        %v3799 = vadd.f32 %v3798, %v3652
        %v3800 = vadd.f32 %v3799, %v3653
        %v3801 = vadd.f32 %v3800, %v3654
        %v3802 = vadd.f32 %v3801, %v3655
        %3803 = vadd.xlane.f32.xlu0 %v3802
        %v3804 = vpop.xlane.xlu0 %3803
        %v3805 = vadd.f32 %v3656, %v3657
        %v3806 = vadd.f32 %v3805, %v3658
        %v3807 = vadd.f32 %v3806, %v3659
        %v3808 = vadd.f32 %v3807, %v3660
        %v3809 = vadd.f32 %v3808, %v3661
        %3810 = vadd.xlane.f32.xlu0 %v3809
        %v3811 = vpop.xlane.xlu0 %3810
        %v3812 = vadd.f32 %v3662, %v3663
        %v3813 = vadd.f32 %v3812, %v3664
        %v3814 = vadd.f32 %v3813, %v3665
        %v3815 = vadd.f32 %v3814, %v3666
        %v3816 = vadd.f32 %v3815, %v3667
        %3817 = vadd.xlane.f32.xlu0 %v3816
        %v3818 = vpop.xlane.xlu0 %3817
        %v3819 = vadd.f32 %v3668, %v3669
        %v3820 = vadd.f32 %v3819, %v3670
        %v3821 = vadd.f32 %v3820, %v3671
        %v3822 = vadd.f32 %v3821, %v3672
        %v3823 = vadd.f32 %v3822, %v3673
        %3824 = vadd.xlane.f32.xlu0 %v3823
        %v3825 = vpop.xlane.xlu0 %3824
        %v3826 = vadd.f32 %v3674, %v3675
        %v3827 = vadd.f32 %v3826, %v3676
        %v3828 = vadd.f32 %v3827, %v3677
        %v3829 = vadd.f32 %v3828, %v3678
        %v3830 = vadd.f32 %v3829, %v3679
        %3831 = vadd.xlane.f32.xlu0 %v3830
        %v3832 = vpop.xlane.xlu0 %3831
        %v3833 = vadd.f32 %v3680, %v3681
        %v3834 = vadd.f32 %v3833, %v3682
        %v3835 = vadd.f32 %v3834, %v3683
        %v3836 = vadd.f32 %v3835, %v3684
        %v3837 = vadd.f32 %v3836, %v3685
        %3838 = vadd.xlane.f32.xlu0 %v3837
        %v3839 = vpop.xlane.xlu0 %3838
        %v3840 = vadd.f32 %v3686, %v3687
        %v3841 = vadd.f32 %v3840, %v3688
        %v3842 = vadd.f32 %v3841, %v3689
        %v3843 = vadd.f32 %v3842, %v3690
        %v3844 = vadd.f32 %v3843, %v3691
        %3845 = vadd.xlane.f32.xlu0 %v3844
        %v3846 = vpop.xlane.xlu0 %3845
        %v3847 = vadd.f32 %v3692, %v3693
        %v3848 = vadd.f32 %v3847, %v3694
        %v3849 = vadd.f32 %v3848, %v3695
        %v3850 = vadd.f32 %v3849, %v3696
        %v3851 = vadd.f32 %v3850, %v3697
        %3852 = vadd.xlane.f32.xlu0 %v3851
        %v3853 = vpop.xlane.xlu0 %3852
        %v3854 = vadd.f32 %v3698, %v3699
        %v3855 = vadd.f32 %v3854, %v3700
        %v3856 = vadd.f32 %v3855, %v3701
        %v3857 = vadd.f32 %v3856, %v3702
        %v3858 = vadd.f32 %v3857, %v3703
        %3859 = vadd.xlane.f32.xlu0 %v3858
        %v3860 = vpop.xlane.xlu0 %3859
        %v3861 = vadd.f32 %v3704, %v3705
        %v3862 = vadd.f32 %v3861, %v3706
        %v3863 = vadd.f32 %v3862, %v3707
        %v3864 = vadd.f32 %v3863, %v3708
        %v3865 = vadd.f32 %v3864, %v3709
        %3866 = vadd.xlane.f32.xlu0 %v3865
        %v3867 = vpop.xlane.xlu0 %3866
        %v3868 = vadd.f32 %v3710, %v3711
        %v3869 = vadd.f32 %v3868, %v3712
        %v3870 = vadd.f32 %v3869, %v3713
        %v3871 = vadd.f32 %v3870, %v3714
        %v3872 = vadd.f32 %v3871, %v3715
        %3873 = vadd.xlane.f32.xlu0 %v3872
        %v3874 = vpop.xlane.xlu0 %3873
        %v3875 = vadd.f32 %v3716, %v3717
        %v3876 = vadd.f32 %v3875, %v3718
        %v3877 = vadd.f32 %v3876, %v3719
        %v3878 = vadd.f32 %v3877, %v3720
        %v3879 = vadd.f32 %v3878, %v3721
        %3880 = vadd.xlane.f32.xlu0 %v3879
        %v3881 = vpop.xlane.xlu0 %3880
        %v3882 = vadd.f32 %v3722, %v3723
        %v3883 = vadd.f32 %v3882, %v3724
        %v3884 = vadd.f32 %v3883, %v3725
        %v3885 = vadd.f32 %v3884, %v3726
        %v3886 = vadd.f32 %v3885, %v3727
        %3887 = vadd.xlane.f32.xlu0 %v3886
        %v3888 = vpop.xlane.xlu0 %3887
        %v3889 = vadd.f32 %v3728, %v3729
        %v3890 = vadd.f32 %v3889, %v3730
        %v3891 = vadd.f32 %v3890, %v3731
        %v3892 = vadd.f32 %v3891, %v3732
        %v3893 = vadd.f32 %v3892, %v3733
        %3894 = vadd.xlane.f32.xlu0 %v3893
        %v3895 = vpop.xlane.xlu0 %3894
        %v3896 = vadd.f32 %v3734, %v3735
        %v3897 = vadd.f32 %v3896, %v3736
        %v3898 = vadd.f32 %v3897, %v3737
        %v3899 = vadd.f32 %v3898, %v3738
        %v3900 = vadd.f32 %v3899, %v3739
        %3901 = vadd.xlane.f32.xlu0 %v3900
        %v3902 = vpop.xlane.xlu0 %3901
        %v3903 = vadd.f32 %v3740, %v3741
        %v3904 = vadd.f32 %v3903, %v3742
        %v3905 = vadd.f32 %v3904, %v3743
        %v3906 = vadd.f32 %v3905, %v3744
        %v3907 = vadd.f32 %v3906, %v3745
        %3908 = vadd.xlane.f32.xlu0 %v3907
        %v3909 = vpop.xlane.xlu0 %3908
        %v3910 = vadd.f32 %v3746, %v3747
        %v3911 = vadd.f32 %v3910, %v3748
        %v3912 = vadd.f32 %v3911, %v3749
        %v3913 = vadd.f32 %v3912, %v3750
        %v3914 = vadd.f32 %v3913, %v3751
        %3915 = vadd.xlane.f32.xlu0 %v3914
        %v3916 = vpop.xlane.xlu0 %3915
        %v3917 = vadd.f32 %v3752, %v3753
        %v3918 = vadd.f32 %v3917, %v3754
        %v3919 = vadd.f32 %v3918, %v3755
        %v3920 = vadd.f32 %v3919, %v3756
        %v3921 = vadd.f32 %v3920, %v3757
        %3922 = vadd.xlane.f32.xlu0 %v3921
        %v3923 = vpop.xlane.xlu0 %3922
        %v3924 = vadd.f32 %v3758, %v3759
        %v3925 = vadd.f32 %v3924, %v3760
        %v3926 = vadd.f32 %v3925, %v3761
        %v3927 = vadd.f32 %v3926, %v3762
        %v3928 = vadd.f32 %v3927, %v3763
        %3929 = vadd.xlane.f32.xlu0 %v3928
        %v3930 = vpop.xlane.xlu0 %3929
        %v3931 = vadd.f32 %v3764, %v3765
        %v3932 = vadd.f32 %v3931, %v3766
        %v3933 = vadd.f32 %v3932, %v3767
        %v3934 = vadd.f32 %v3933, %v3768
        %v3935 = vadd.f32 %v3934, %v3769
        %3936 = vadd.xlane.f32.xlu0 %v3935
        %v3937 = vpop.xlane.xlu0 %3936
        %v3938 = vmul.f32 %v3776, 0.0013020834
        %v3939 = vmul.f32 %v3783, 0.0013020834
        %v3940 = vmul.f32 %v3790, 0.0013020834
        %v3941 = vmul.f32 %v3797, 0.0013020834
        %v3942 = vmul.f32 %v3804, 0.0013020834
        %v3943 = vmul.f32 %v3811, 0.0013020834
        %v3944 = vmul.f32 %v3818, 0.0013020834
        %v3945 = vmul.f32 %v3825, 0.0013020834
        %v3946 = vmul.f32 %v3832, 0.0013020834
        %v3947 = vmul.f32 %v3839, 0.0013020834
        %v3948 = vmul.f32 %v3846, 0.0013020834
        %v3949 = vmul.f32 %v3853, 0.0013020834
        %v3950 = vmul.f32 %v3860, 0.0013020834
        %v3951 = vmul.f32 %v3867, 0.0013020834
        %v3952 = vmul.f32 %v3874, 0.0013020834
        %v3953 = vmul.f32 %v3881, 0.0013020834
        %v3954 = vmul.f32 %v3888, 0.0013020834
        %v3955 = vmul.f32 %v3895, 0.0013020834
        %v3956 = vmul.f32 %v3902, 0.0013020834
        %v3957 = vmul.f32 %v3909, 0.0013020834
        %v3958 = vmul.f32 %v3916, 0.0013020834
        %v3959 = vmul.f32 %v3923, 0.0013020834
        %v3960 = vmul.f32 %v3930, 0.0013020834
        %v3961 = vmul.f32 %v3937, 0.0013020834
        %v3962 = vadd.f32 %v3938, 1e-12
        %v3963 = vadd.f32 %v3939, 1e-12
        %v3964 = vadd.f32 %v3940, 1e-12
        %v3965 = vadd.f32 %v3941, 1e-12
        %v3966 = vadd.f32 %v3942, 1e-12
        %v3967 = vadd.f32 %v3943, 1e-12
        %v3968 = vadd.f32 %v3944, 1e-12
        %v3969 = vadd.f32 %v3945, 1e-12
        %v3970 = vadd.f32 %v3946, 1e-12
        %v3971 = vadd.f32 %v3947, 1e-12
        %v3972 = vadd.f32 %v3948, 1e-12
        %v3973 = vadd.f32 %v3949, 1e-12
        %v3974 = vadd.f32 %v3950, 1e-12
        %v3975 = vadd.f32 %v3951, 1e-12
        %v3976 = vadd.f32 %v3952, 1e-12
        %v3977 = vadd.f32 %v3953, 1e-12
        %v3978 = vadd.f32 %v3954, 1e-12
        %v3979 = vadd.f32 %v3955, 1e-12
        %v3980 = vadd.f32 %v3956, 1e-12
        %v3981 = vadd.f32 %v3957, 1e-12
        %v3982 = vadd.f32 %v3958, 1e-12
        %v3983 = vadd.f32 %v3959, 1e-12
        %v3984 = vadd.f32 %v3960, 1e-12
        %v3985 = vadd.f32 %v3961, 1e-12
        %v3986 = vrsqrt.pop %v3962
        %v3987 = vrsqrt.pop %v3963
        %v3988 = vrsqrt.pop %v3964
        %v3989 = vrsqrt.pop %v3965
        %v3990 = vrsqrt.pop %v3966
        %v3991 = vrsqrt.pop %v3967
        %v3992 = vrsqrt.pop %v3968
        %v3993 = vrsqrt.pop %v3969
        %v3994 = vrsqrt.pop %v3970
        %v3995 = vrsqrt.pop %v3971
        %v3996 = vrsqrt.pop %v3972
        %v3997 = vrsqrt.pop %v3973
        %v3998 = vrsqrt.pop %v3974
        %v3999 = vrsqrt.pop %v3975
        %v4000 = vrsqrt.pop %v3976
        %v4001 = vrsqrt.pop %v3977
        %v4002 = vrsqrt.pop %v3978
        %v4003 = vrsqrt.pop %v3979
        %v4004 = vrsqrt.pop %v3980
        %v4005 = vrsqrt.pop %v3981
        %v4006 = vrsqrt.pop %v3982
        %v4007 = vrsqrt.pop %v3983
        %v4008 = vrsqrt.pop %v3984
        %v4009 = vrsqrt.pop %v3985
        %v4010 = vmul.f32 %v3482, %v3986
        %v4011 = vmul.f32 %v3483, %v3986
        %v4012 = vmul.f32 %v3484, %v3986
        %v4013 = vmul.f32 %v3485, %v3986
        %v4014 = vmul.f32 %v3486, %v3986
        %v4015 = vmul.f32 %v3487, %v3986
        %v4016 = vmul.f32 %v3488, %v3987
        %v4017 = vmul.f32 %v3489, %v3987
        %v4018 = vmul.f32 %v3490, %v3987
        %v4019 = vmul.f32 %v3491, %v3987
        %v4020 = vmul.f32 %v3492, %v3987
        %v4021 = vmul.f32 %v3493, %v3987
        %v4022 = vmul.f32 %v3494, %v3988
        %v4023 = vmul.f32 %v3495, %v3988
        %v4024 = vmul.f32 %v3496, %v3988
        %v4025 = vmul.f32 %v3497, %v3988
        %v4026 = vmul.f32 %v3498, %v3988
        %v4027 = vmul.f32 %v3499, %v3988
        %v4028 = vmul.f32 %v3500, %v3989
        %v4029 = vmul.f32 %v3501, %v3989
        %v4030 = vmul.f32 %v3502, %v3989
        %v4031 = vmul.f32 %v3503, %v3989
        %v4032 = vmul.f32 %v3504, %v3989
        %v4033 = vmul.f32 %v3505, %v3989
        %v4034 = vmul.f32 %v3506, %v3990
        %v4035 = vmul.f32 %v3507, %v3990
        %v4036 = vmul.f32 %v3508, %v3990
        %v4037 = vmul.f32 %v3509, %v3990
        %v4038 = vmul.f32 %v3510, %v3990
        %v4039 = vmul.f32 %v3511, %v3990
        %v4040 = vmul.f32 %v3512, %v3991
        %v4041 = vmul.f32 %v3513, %v3991
        %v4042 = vmul.f32 %v3514, %v3991
        %v4043 = vmul.f32 %v3515, %v3991
        %v4044 = vmul.f32 %v3516, %v3991
        %v4045 = vmul.f32 %v3517, %v3991
        %v4046 = vmul.f32 %v3518, %v3992
        %v4047 = vmul.f32 %v3519, %v3992
        %v4048 = vmul.f32 %v3520, %v3992
        %v4049 = vmul.f32 %v3521, %v3992
        %v4050 = vmul.f32 %v3522, %v3992
        %v4051 = vmul.f32 %v3523, %v3992
        %v4052 = vmul.f32 %v3524, %v3993
        %v4053 = vmul.f32 %v3525, %v3993
        %v4054 = vmul.f32 %v3526, %v3993
        %v4055 = vmul.f32 %v3527, %v3993
        %v4056 = vmul.f32 %v3528, %v3993
        %v4057 = vmul.f32 %v3529, %v3993
        %v4058 = vmul.f32 %v3530, %v3994
        %v4059 = vmul.f32 %v3531, %v3994
        %v4060 = vmul.f32 %v3532, %v3994
        %v4061 = vmul.f32 %v3533, %v3994
        %v4062 = vmul.f32 %v3534, %v3994
        %v4063 = vmul.f32 %v3535, %v3994
        %v4064 = vmul.f32 %v3536, %v3995
        %v4065 = vmul.f32 %v3537, %v3995
        %v4066 = vmul.f32 %v3538, %v3995
        %v4067 = vmul.f32 %v3539, %v3995
        %v4068 = vmul.f32 %v3540, %v3995
        %v4069 = vmul.f32 %v3541, %v3995
        %v4070 = vmul.f32 %v3542, %v3996
        %v4071 = vmul.f32 %v3543, %v3996
        %v4072 = vmul.f32 %v3544, %v3996
        %v4073 = vmul.f32 %v3545, %v3996
        %v4074 = vmul.f32 %v3546, %v3996
        %v4075 = vmul.f32 %v3547, %v3996
        %v4076 = vmul.f32 %v3548, %v3997
        %v4077 = vmul.f32 %v3549, %v3997
        %v4078 = vmul.f32 %v3550, %v3997
        %v4079 = vmul.f32 %v3551, %v3997
        %v4080 = vmul.f32 %v3552, %v3997
        %v4081 = vmul.f32 %v3553, %v3997
        %v4082 = vmul.f32 %v3554, %v3998
        %v4083 = vmul.f32 %v3555, %v3998
        %v4084 = vmul.f32 %v3556, %v3998
        %v4085 = vmul.f32 %v3557, %v3998
        %v4086 = vmul.f32 %v3558, %v3998
        %v4087 = vmul.f32 %v3559, %v3998
        %v4088 = vmul.f32 %v3560, %v3999
        %v4089 = vmul.f32 %v3561, %v3999
        %v4090 = vmul.f32 %v3562, %v3999
        %v4091 = vmul.f32 %v3563, %v3999
        %v4092 = vmul.f32 %v3564, %v3999
        %v4093 = vmul.f32 %v3565, %v3999
        %v4094 = vmul.f32 %v3566, %v4000
        %v4095 = vmul.f32 %v3567, %v4000
        %v4096 = vmul.f32 %v3568, %v4000
        %v4097 = vmul.f32 %v3569, %v4000
        %v4098 = vmul.f32 %v3570, %v4000
        %v4099 = vmul.f32 %v3571, %v4000
        %v4100 = vmul.f32 %v3572, %v4001
        %v4101 = vmul.f32 %v3573, %v4001
        %v4102 = vmul.f32 %v3574, %v4001
        %v4103 = vmul.f32 %v3575, %v4001
        %v4104 = vmul.f32 %v3576, %v4001
        %v4105 = vmul.f32 %v3577, %v4001
        %v4106 = vmul.f32 %v3578, %v4002
        %v4107 = vmul.f32 %v3579, %v4002
        %v4108 = vmul.f32 %v3580, %v4002
        %v4109 = vmul.f32 %v3581, %v4002
        %v4110 = vmul.f32 %v3582, %v4002
        %v4111 = vmul.f32 %v3583, %v4002
        %v4112 = vmul.f32 %v3584, %v4003
        %v4113 = vmul.f32 %v3585, %v4003
        %v4114 = vmul.f32 %v3586, %v4003
        %v4115 = vmul.f32 %v3587, %v4003
        %v4116 = vmul.f32 %v3588, %v4003
        %v4117 = vmul.f32 %v3589, %v4003
        %v4118 = vmul.f32 %v3590, %v4004
        %v4119 = vmul.f32 %v3591, %v4004
        %v4120 = vmul.f32 %v3592, %v4004
        %v4121 = vmul.f32 %v3593, %v4004
        %v4122 = vmul.f32 %v3594, %v4004
        %v4123 = vmul.f32 %v3595, %v4004
        %v4124 = vmul.f32 %v3596, %v4005
        %v4125 = vmul.f32 %v3597, %v4005
        %v4126 = vmul.f32 %v3598, %v4005
        %v4127 = vmul.f32 %v3599, %v4005
        %v4128 = vmul.f32 %v3600, %v4005
        %v4129 = vmul.f32 %v3601, %v4005
        %v4130 = vmul.f32 %v3602, %v4006
        %v4131 = vmul.f32 %v3603, %v4006
        %v4132 = vmul.f32 %v3604, %v4006
        %v4133 = vmul.f32 %v3605, %v4006
        %v4134 = vmul.f32 %v3606, %v4006
        %v4135 = vmul.f32 %v3607, %v4006
        %v4136 = vmul.f32 %v3608, %v4007
        %v4137 = vmul.f32 %v3609, %v4007
        %v4138 = vmul.f32 %v3610, %v4007
        %v4139 = vmul.f32 %v3611, %v4007
        %v4140 = vmul.f32 %v3612, %v4007
        %v4141 = vmul.f32 %v3613, %v4007
        %v4142 = vmul.f32 %v3614, %v4008
        %v4143 = vmul.f32 %v3615, %v4008
        %v4144 = vmul.f32 %v3616, %v4008
        %v4145 = vmul.f32 %v3617, %v4008
        %v4146 = vmul.f32 %v3618, %v4008
        %v4147 = vmul.f32 %v3619, %v4008
        %v4148 = vmul.f32 %v3620, %v4009
        %v4149 = vmul.f32 %v3621, %v4009
        %v4150 = vmul.f32 %v3622, %v4009
        %v4151 = vmul.f32 %v3623, %v4009
        %v4152 = vmul.f32 %v3624, %v4009
        %v4153 = vmul.f32 %v3625, %v4009
        %v4155 = vlaneseq
        %v4156 = vshrl.u32 %v4155, 7
        %v4157 = vsub.s32 0, %v4156
        %v4158 = vrot.slane %v1088, %v4157
        %v4159 = vlaneseq
        %v4160 = vshrl.u32 %v4159, 7
        %v4161 = vsub.s32 1, %v4160
        %v4162 = vrot.slane %v1088, %v4161
        %v4163 = vlaneseq
        %v4164 = vshrl.u32 %v4163, 7
        %v4165 = vsub.s32 2, %v4164
        %v4166 = vrot.slane %v1088, %v4165
        %v4167 = vlaneseq
        %v4168 = vshrl.u32 %v4167, 7
        %v4169 = vsub.s32 3, %v4168
        %v4170 = vrot.slane %v1088, %v4169
        %v4171 = vlaneseq
        %v4172 = vshrl.u32 %v4171, 7
        %v4173 = vsub.s32 4, %v4172
        %v4174 = vrot.slane %v1088, %v4173
        %v4175 = vlaneseq
        %v4176 = vshrl.u32 %v4175, 7
        %v4177 = vsub.s32 5, %v4176
        %v4178 = vrot.slane %v1088, %v4177
        %v4185 = vmul.f32 %v4010, %v4158
        %v4186 = vmul.f32 %v4011, %v4162
        %v4187 = vmul.f32 %v4012, %v4166
        %v4188 = vmul.f32 %v4013, %v4170
        %v4189 = vmul.f32 %v4014, %v4174
        %v4190 = vmul.f32 %v4015, %v4178
        %v4191 = vmul.f32 %v4016, %v4158
        %v4192 = vmul.f32 %v4017, %v4162
        %v4193 = vmul.f32 %v4018, %v4166
        %v4194 = vmul.f32 %v4019, %v4170
        %v4195 = vmul.f32 %v4020, %v4174
        %v4196 = vmul.f32 %v4021, %v4178
        %v4197 = vmul.f32 %v4022, %v4158
        %v4198 = vmul.f32 %v4023, %v4162
        %v4199 = vmul.f32 %v4024, %v4166
        %v4200 = vmul.f32 %v4025, %v4170
        %v4201 = vmul.f32 %v4026, %v4174
        %v4202 = vmul.f32 %v4027, %v4178
        %v4203 = vmul.f32 %v4028, %v4158
        %v4204 = vmul.f32 %v4029, %v4162
        %v4205 = vmul.f32 %v4030, %v4166
        %v4206 = vmul.f32 %v4031, %v4170
        %v4207 = vmul.f32 %v4032, %v4174
        %v4208 = vmul.f32 %v4033, %v4178
        %v4209 = vmul.f32 %v4034, %v4158
        %v4210 = vmul.f32 %v4035, %v4162
        %v4211 = vmul.f32 %v4036, %v4166
        %v4212 = vmul.f32 %v4037, %v4170
        %v4213 = vmul.f32 %v4038, %v4174
        %v4214 = vmul.f32 %v4039, %v4178
        %v4215 = vmul.f32 %v4040, %v4158
        %v4216 = vmul.f32 %v4041, %v4162
        %v4217 = vmul.f32 %v4042, %v4166
        %v4218 = vmul.f32 %v4043, %v4170
        %v4219 = vmul.f32 %v4044, %v4174
        %v4220 = vmul.f32 %v4045, %v4178
        %v4221 = vmul.f32 %v4046, %v4158
        %v4222 = vmul.f32 %v4047, %v4162
        %v4223 = vmul.f32 %v4048, %v4166
        %v4224 = vmul.f32 %v4049, %v4170
        %v4225 = vmul.f32 %v4050, %v4174
        %v4226 = vmul.f32 %v4051, %v4178
        %v4227 = vmul.f32 %v4052, %v4158
        %v4228 = vmul.f32 %v4053, %v4162
        %v4229 = vmul.f32 %v4054, %v4166
        %v4230 = vmul.f32 %v4055, %v4170
        %v4231 = vmul.f32 %v4056, %v4174
        %v4232 = vmul.f32 %v4057, %v4178
        %v4233 = vmul.f32 %v4058, %v4158
        %v4234 = vmul.f32 %v4059, %v4162
        %v4235 = vmul.f32 %v4060, %v4166
        %v4236 = vmul.f32 %v4061, %v4170
        %v4237 = vmul.f32 %v4062, %v4174
        %v4238 = vmul.f32 %v4063, %v4178
        %v4239 = vmul.f32 %v4064, %v4158
        %v4240 = vmul.f32 %v4065, %v4162
        %v4241 = vmul.f32 %v4066, %v4166
        %v4242 = vmul.f32 %v4067, %v4170
        %v4243 = vmul.f32 %v4068, %v4174
        %v4244 = vmul.f32 %v4069, %v4178
        %v4245 = vmul.f32 %v4070, %v4158
        %v4246 = vmul.f32 %v4071, %v4162
        %v4247 = vmul.f32 %v4072, %v4166
        %v4248 = vmul.f32 %v4073, %v4170
        %v4249 = vmul.f32 %v4074, %v4174
        %v4250 = vmul.f32 %v4075, %v4178
        %v4251 = vmul.f32 %v4076, %v4158
        %v4252 = vmul.f32 %v4077, %v4162
        %v4253 = vmul.f32 %v4078, %v4166
        %v4254 = vmul.f32 %v4079, %v4170
        %v4255 = vmul.f32 %v4080, %v4174
        %v4256 = vmul.f32 %v4081, %v4178
        %v4257 = vmul.f32 %v4082, %v4158
        %v4258 = vmul.f32 %v4083, %v4162
        %v4259 = vmul.f32 %v4084, %v4166
        %v4260 = vmul.f32 %v4085, %v4170
        %v4261 = vmul.f32 %v4086, %v4174
        %v4262 = vmul.f32 %v4087, %v4178
        %v4263 = vmul.f32 %v4088, %v4158
        %v4264 = vmul.f32 %v4089, %v4162
        %v4265 = vmul.f32 %v4090, %v4166
        %v4266 = vmul.f32 %v4091, %v4170
        %v4267 = vmul.f32 %v4092, %v4174
        %v4268 = vmul.f32 %v4093, %v4178
        %v4269 = vmul.f32 %v4094, %v4158
        %v4270 = vmul.f32 %v4095, %v4162
        %v4271 = vmul.f32 %v4096, %v4166
        %v4272 = vmul.f32 %v4097, %v4170
        %v4273 = vmul.f32 %v4098, %v4174
        %v4274 = vmul.f32 %v4099, %v4178
        %v4275 = vmul.f32 %v4100, %v4158
        %v4276 = vmul.f32 %v4101, %v4162
        %v4277 = vmul.f32 %v4102, %v4166
        %v4278 = vmul.f32 %v4103, %v4170
        %v4279 = vmul.f32 %v4104, %v4174
        %v4280 = vmul.f32 %v4105, %v4178
        %v4281 = vmul.f32 %v4106, %v4158
        %v4282 = vmul.f32 %v4107, %v4162
        %v4283 = vmul.f32 %v4108, %v4166
        %v4284 = vmul.f32 %v4109, %v4170
        %v4285 = vmul.f32 %v4110, %v4174
        %v4286 = vmul.f32 %v4111, %v4178
        %v4287 = vmul.f32 %v4112, %v4158
        %v4288 = vmul.f32 %v4113, %v4162
        %v4289 = vmul.f32 %v4114, %v4166
        %v4290 = vmul.f32 %v4115, %v4170
        %v4291 = vmul.f32 %v4116, %v4174
        %v4292 = vmul.f32 %v4117, %v4178
        %v4293 = vmul.f32 %v4118, %v4158
        %v4294 = vmul.f32 %v4119, %v4162
        %v4295 = vmul.f32 %v4120, %v4166
        %v4296 = vmul.f32 %v4121, %v4170
        %v4297 = vmul.f32 %v4122, %v4174
        %v4298 = vmul.f32 %v4123, %v4178
        %v4299 = vmul.f32 %v4124, %v4158
        %v4300 = vmul.f32 %v4125, %v4162
        %v4301 = vmul.f32 %v4126, %v4166
        %v4302 = vmul.f32 %v4127, %v4170
        %v4303 = vmul.f32 %v4128, %v4174
        %v4304 = vmul.f32 %v4129, %v4178
        %v4305 = vmul.f32 %v4130, %v4158
        %v4306 = vmul.f32 %v4131, %v4162
        %v4307 = vmul.f32 %v4132, %v4166
        %v4308 = vmul.f32 %v4133, %v4170
        %v4309 = vmul.f32 %v4134, %v4174
        %v4310 = vmul.f32 %v4135, %v4178
        %v4311 = vmul.f32 %v4136, %v4158
        %v4312 = vmul.f32 %v4137, %v4162
        %v4313 = vmul.f32 %v4138, %v4166
        %v4314 = vmul.f32 %v4139, %v4170
        %v4315 = vmul.f32 %v4140, %v4174
        %v4316 = vmul.f32 %v4141, %v4178
        %v4317 = vmul.f32 %v4142, %v4158
        %v4318 = vmul.f32 %v4143, %v4162
        %v4319 = vmul.f32 %v4144, %v4166
        %v4320 = vmul.f32 %v4145, %v4170
        %v4321 = vmul.f32 %v4146, %v4174
        %v4322 = vmul.f32 %v4147, %v4178
        %v4323 = vmul.f32 %v4148, %v4158
        %v4324 = vmul.f32 %v4149, %v4162
        %v4325 = vmul.f32 %v4150, %v4166
        %v4326 = vmul.f32 %v4151, %v4170
        %v4327 = vmul.f32 %v4152, %v4174
        %v4328 = vmul.f32 %v4153, %v4178
        %v4330 = vlaneseq
        %v4331 = vshrl.u32 %v4330, 7
        %v4332 = vsub.s32 0, %v4331
        %v4333 = vrot.slane %v1089, %v4332
        %v4334 = vlaneseq
        %v4335 = vshrl.u32 %v4334, 7
        %v4336 = vsub.s32 1, %v4335
        %v4337 = vrot.slane %v1089, %v4336
        %v4338 = vlaneseq
        %v4339 = vshrl.u32 %v4338, 7
        %v4340 = vsub.s32 2, %v4339
        %v4341 = vrot.slane %v1089, %v4340
        %v4342 = vlaneseq
        %v4343 = vshrl.u32 %v4342, 7
        %v4344 = vsub.s32 3, %v4343
        %v4345 = vrot.slane %v1089, %v4344
        %v4346 = vlaneseq
        %v4347 = vshrl.u32 %v4346, 7
        %v4348 = vsub.s32 4, %v4347
        %v4349 = vrot.slane %v1089, %v4348
        %v4350 = vlaneseq
        %v4351 = vshrl.u32 %v4350, 7
        %v4352 = vsub.s32 5, %v4351
        %v4353 = vrot.slane %v1089, %v4352
        %v4360 = vadd.f32 %v4185, %v4333
        %v4361 = vadd.f32 %v4186, %v4337
        %v4362 = vadd.f32 %v4187, %v4341
        %v4363 = vadd.f32 %v4188, %v4345
        %v4364 = vadd.f32 %v4189, %v4349
        %v4365 = vadd.f32 %v4190, %v4353
        %v4366 = vadd.f32 %v4191, %v4333
        %v4367 = vadd.f32 %v4192, %v4337
        %v4368 = vadd.f32 %v4193, %v4341
        %v4369 = vadd.f32 %v4194, %v4345
        %v4370 = vadd.f32 %v4195, %v4349
        %v4371 = vadd.f32 %v4196, %v4353
        %v4372 = vadd.f32 %v4197, %v4333
        %v4373 = vadd.f32 %v4198, %v4337
        %v4374 = vadd.f32 %v4199, %v4341
        %v4375 = vadd.f32 %v4200, %v4345
        %v4376 = vadd.f32 %v4201, %v4349
        %v4377 = vadd.f32 %v4202, %v4353
        %v4378 = vadd.f32 %v4203, %v4333
        %v4379 = vadd.f32 %v4204, %v4337
        %v4380 = vadd.f32 %v4205, %v4341
        %v4381 = vadd.f32 %v4206, %v4345
        %v4382 = vadd.f32 %v4207, %v4349
        %v4383 = vadd.f32 %v4208, %v4353
        %v4384 = vadd.f32 %v4209, %v4333
        %v4385 = vadd.f32 %v4210, %v4337
        %v4386 = vadd.f32 %v4211, %v4341
        %v4387 = vadd.f32 %v4212, %v4345
        %v4388 = vadd.f32 %v4213, %v4349
        %v4389 = vadd.f32 %v4214, %v4353
        %v4390 = vadd.f32 %v4215, %v4333
        %v4391 = vadd.f32 %v4216, %v4337
        %v4392 = vadd.f32 %v4217, %v4341
        %v4393 = vadd.f32 %v4218, %v4345
        %v4394 = vadd.f32 %v4219, %v4349
        %v4395 = vadd.f32 %v4220, %v4353
        %v4396 = vadd.f32 %v4221, %v4333
        %v4397 = vadd.f32 %v4222, %v4337
        %v4398 = vadd.f32 %v4223, %v4341
        %v4399 = vadd.f32 %v4224, %v4345
        %v4400 = vadd.f32 %v4225, %v4349
        %v4401 = vadd.f32 %v4226, %v4353
        %v4402 = vadd.f32 %v4227, %v4333
        %v4403 = vadd.f32 %v4228, %v4337
        %v4404 = vadd.f32 %v4229, %v4341
        %v4405 = vadd.f32 %v4230, %v4345
        %v4406 = vadd.f32 %v4231, %v4349
        %v4407 = vadd.f32 %v4232, %v4353
        %v4408 = vadd.f32 %v4233, %v4333
        %v4409 = vadd.f32 %v4234, %v4337
        %v4410 = vadd.f32 %v4235, %v4341
        %v4411 = vadd.f32 %v4236, %v4345
        %v4412 = vadd.f32 %v4237, %v4349
        %v4413 = vadd.f32 %v4238, %v4353
        %v4414 = vadd.f32 %v4239, %v4333
        %v4415 = vadd.f32 %v4240, %v4337
        %v4416 = vadd.f32 %v4241, %v4341
        %v4417 = vadd.f32 %v4242, %v4345
        %v4418 = vadd.f32 %v4243, %v4349
        %v4419 = vadd.f32 %v4244, %v4353
        %v4420 = vadd.f32 %v4245, %v4333
        %v4421 = vadd.f32 %v4246, %v4337
        %v4422 = vadd.f32 %v4247, %v4341
        %v4423 = vadd.f32 %v4248, %v4345
        %v4424 = vadd.f32 %v4249, %v4349
        %v4425 = vadd.f32 %v4250, %v4353
        %v4426 = vadd.f32 %v4251, %v4333
        %v4427 = vadd.f32 %v4252, %v4337
        %v4428 = vadd.f32 %v4253, %v4341
        %v4429 = vadd.f32 %v4254, %v4345
        %v4430 = vadd.f32 %v4255, %v4349
        %v4431 = vadd.f32 %v4256, %v4353
        %v4432 = vadd.f32 %v4257, %v4333
        %v4433 = vadd.f32 %v4258, %v4337
        %v4434 = vadd.f32 %v4259, %v4341
        %v4435 = vadd.f32 %v4260, %v4345
        %v4436 = vadd.f32 %v4261, %v4349
        %v4437 = vadd.f32 %v4262, %v4353
        %v4438 = vadd.f32 %v4263, %v4333
        %v4439 = vadd.f32 %v4264, %v4337
        %v4440 = vadd.f32 %v4265, %v4341
        %v4441 = vadd.f32 %v4266, %v4345
        %v4442 = vadd.f32 %v4267, %v4349
        %v4443 = vadd.f32 %v4268, %v4353
        %v4444 = vadd.f32 %v4269, %v4333
        %v4445 = vadd.f32 %v4270, %v4337
        %v4446 = vadd.f32 %v4271, %v4341
        %v4447 = vadd.f32 %v4272, %v4345
        %v4448 = vadd.f32 %v4273, %v4349
        %v4449 = vadd.f32 %v4274, %v4353
        %v4450 = vadd.f32 %v4275, %v4333
        %v4451 = vadd.f32 %v4276, %v4337
        %v4452 = vadd.f32 %v4277, %v4341
        %v4453 = vadd.f32 %v4278, %v4345
        %v4454 = vadd.f32 %v4279, %v4349
        %v4455 = vadd.f32 %v4280, %v4353
        %v4456 = vadd.f32 %v4281, %v4333
        %v4457 = vadd.f32 %v4282, %v4337
        %v4458 = vadd.f32 %v4283, %v4341
        %v4459 = vadd.f32 %v4284, %v4345
        %v4460 = vadd.f32 %v4285, %v4349
        %v4461 = vadd.f32 %v4286, %v4353
        %v4462 = vadd.f32 %v4287, %v4333
        %v4463 = vadd.f32 %v4288, %v4337
        %v4464 = vadd.f32 %v4289, %v4341
        %v4465 = vadd.f32 %v4290, %v4345
        %v4466 = vadd.f32 %v4291, %v4349
        %v4467 = vadd.f32 %v4292, %v4353
        %v4468 = vadd.f32 %v4293, %v4333
        %v4469 = vadd.f32 %v4294, %v4337
        %v4470 = vadd.f32 %v4295, %v4341
        %v4471 = vadd.f32 %v4296, %v4345
        %v4472 = vadd.f32 %v4297, %v4349
        %v4473 = vadd.f32 %v4298, %v4353
        %v4474 = vadd.f32 %v4299, %v4333
        %v4475 = vadd.f32 %v4300, %v4337
        %v4476 = vadd.f32 %v4301, %v4341
        %v4477 = vadd.f32 %v4302, %v4345
        %v4478 = vadd.f32 %v4303, %v4349
        %v4479 = vadd.f32 %v4304, %v4353
        %v4480 = vadd.f32 %v4305, %v4333
        %v4481 = vadd.f32 %v4306, %v4337
        %v4482 = vadd.f32 %v4307, %v4341
        %v4483 = vadd.f32 %v4308, %v4345
        %v4484 = vadd.f32 %v4309, %v4349
        %v4485 = vadd.f32 %v4310, %v4353
        %v4486 = vadd.f32 %v4311, %v4333
        %v4487 = vadd.f32 %v4312, %v4337
        %v4488 = vadd.f32 %v4313, %v4341
        %v4489 = vadd.f32 %v4314, %v4345
        %v4490 = vadd.f32 %v4315, %v4349
        %v4491 = vadd.f32 %v4316, %v4353
        %v4492 = vadd.f32 %v4317, %v4333
        %v4493 = vadd.f32 %v4318, %v4337
        %v4494 = vadd.f32 %v4319, %v4341
        %v4495 = vadd.f32 %v4320, %v4345
        %v4496 = vadd.f32 %v4321, %v4349
        %v4497 = vadd.f32 %v4322, %v4353
        %v4498 = vadd.f32 %v4323, %v4333
        %v4499 = vadd.f32 %v4324, %v4337
        %v4500 = vadd.f32 %v4325, %v4341
        %v4501 = vadd.f32 %v4326, %v4345
        %v4502 = vadd.f32 %v4327, %v4349
        %v4503 = vadd.f32 %v4328, %v4353
        %4504 = vst [vmem:[%s363] sm:$0xff] %v4360
        %4505 = vst [vmem:[%s363 + $0x8] sm:$0xff] %v4361
        %4506 = vst [vmem:[%s363 + $0x10] sm:$0xff] %v4362
        %4507 = vst [vmem:[%s363 + $0x18] sm:$0xff] %v4363
        %4508 = vst [vmem:[%s363 + $0x20] sm:$0xff] %v4364
        %4509 = vst [vmem:[%s363 + $0x28] sm:$0xff] %v4365
        %4510 = vst [vmem:[%s363 + $0x30] sm:$0xff] %v4366
        %4511 = vst [vmem:[%s363 + $0x38] sm:$0xff] %v4367
        %4512 = vst [vmem:[%s363 + $0x40] sm:$0xff] %v4368
        %4513 = vst [vmem:[%s363 + $0x48] sm:$0xff] %v4369
        %4514 = vst [vmem:[%s363 + $0x50] sm:$0xff] %v4370
        %4515 = vst [vmem:[%s363 + $0x58] sm:$0xff] %v4371
        %4516 = vst [vmem:[%s363 + $0x60] sm:$0xff] %v4372
        %4517 = vst [vmem:[%s363 + $0x68] sm:$0xff] %v4373
        %4518 = vst [vmem:[%s363 + $0x70] sm:$0xff] %v4374
        %4519 = vst [vmem:[%s363 + $0x78] sm:$0xff] %v4375
        %4520 = vst [vmem:[%s363 + $0x80] sm:$0xff] %v4376
        %4521 = vst [vmem:[%s363 + $0x88] sm:$0xff] %v4377
        %4522 = vst [vmem:[%s363 + $0x90] sm:$0xff] %v4378
        %4523 = vst [vmem:[%s363 + $0x98] sm:$0xff] %v4379
        %4524 = vst [vmem:[%s363 + $0xa0] sm:$0xff] %v4380
        %4525 = vst [vmem:[%s363 + $0xa8] sm:$0xff] %v4381
        %4526 = vst [vmem:[%s363 + $0xb0] sm:$0xff] %v4382
        %4527 = vst [vmem:[%s363 + $0xb8] sm:$0xff] %v4383
        %4528 = vst [vmem:[%s363 + $0xc0] sm:$0xff] %v4384
        %4529 = vst [vmem:[%s363 + $0xc8] sm:$0xff] %v4385
        %4530 = vst [vmem:[%s363 + $0xd0] sm:$0xff] %v4386
        %4531 = vst [vmem:[%s363 + $0xd8] sm:$0xff] %v4387
        %4532 = vst [vmem:[%s363 + $0xe0] sm:$0xff] %v4388
        %4533 = vst [vmem:[%s363 + $0xe8] sm:$0xff] %v4389
        %4534 = vst [vmem:[%s363 + $0xf0] sm:$0xff] %v4390
        %4535 = vst [vmem:[%s363 + $0xf8] sm:$0xff] %v4391
        %4536 = vst [vmem:[%s363 + $0x100] sm:$0xff] %v4392
        %4537 = vst [vmem:[%s363 + $0x108] sm:$0xff] %v4393
        %4538 = vst [vmem:[%s363 + $0x110] sm:$0xff] %v4394
        %4539 = vst [vmem:[%s363 + $0x118] sm:$0xff] %v4395
        %4540 = vst [vmem:[%s363 + $0x120] sm:$0xff] %v4396
        %4541 = vst [vmem:[%s363 + $0x128] sm:$0xff] %v4397
        %4542 = vst [vmem:[%s363 + $0x130] sm:$0xff] %v4398
        %4543 = vst [vmem:[%s363 + $0x138] sm:$0xff] %v4399
        %4544 = vst [vmem:[%s363 + $0x140] sm:$0xff] %v4400
        %4545 = vst [vmem:[%s363 + $0x148] sm:$0xff] %v4401
        %4546 = vst [vmem:[%s363 + $0x150] sm:$0xff] %v4402
        %4547 = vst [vmem:[%s363 + $0x158] sm:$0xff] %v4403
        %4548 = vst [vmem:[%s363 + $0x160] sm:$0xff] %v4404
        %4549 = vst [vmem:[%s363 + $0x168] sm:$0xff] %v4405
        %4550 = vst [vmem:[%s363 + $0x170] sm:$0xff] %v4406
        %4551 = vst [vmem:[%s363 + $0x178] sm:$0xff] %v4407
        %4552 = vst [vmem:[%s363 + $0x180] sm:$0xff] %v4408
        %4553 = vst [vmem:[%s363 + $0x188] sm:$0xff] %v4409
        %4554 = vst [vmem:[%s363 + $0x190] sm:$0xff] %v4410
        %4555 = vst [vmem:[%s363 + $0x198] sm:$0xff] %v4411
        %4556 = vst [vmem:[%s363 + $0x1a0] sm:$0xff] %v4412
        %4557 = vst [vmem:[%s363 + $0x1a8] sm:$0xff] %v4413
        %4558 = vst [vmem:[%s363 + $0x1b0] sm:$0xff] %v4414
        %4559 = vst [vmem:[%s363 + $0x1b8] sm:$0xff] %v4415
        %4560 = vst [vmem:[%s363 + $0x1c0] sm:$0xff] %v4416
        %4561 = vst [vmem:[%s363 + $0x1c8] sm:$0xff] %v4417
        %4562 = vst [vmem:[%s363 + $0x1d0] sm:$0xff] %v4418
        %4563 = vst [vmem:[%s363 + $0x1d8] sm:$0xff] %v4419
        %4564 = vst [vmem:[%s363 + $0x1e0] sm:$0xff] %v4420
        %4565 = vst [vmem:[%s363 + $0x1e8] sm:$0xff] %v4421
        %4566 = vst [vmem:[%s363 + $0x1f0] sm:$0xff] %v4422
        %4567 = vst [vmem:[%s363 + $0x1f8] sm:$0xff] %v4423
        %4568 = vst [vmem:[%s363 + $0x200] sm:$0xff] %v4424
        %4569 = vst [vmem:[%s363 + $0x208] sm:$0xff] %v4425
        %4570 = vst [vmem:[%s363 + $0x210] sm:$0xff] %v4426
        %4571 = vst [vmem:[%s363 + $0x218] sm:$0xff] %v4427
        %4572 = vst [vmem:[%s363 + $0x220] sm:$0xff] %v4428
        %4573 = vst [vmem:[%s363 + $0x228] sm:$0xff] %v4429
        %4574 = vst [vmem:[%s363 + $0x230] sm:$0xff] %v4430
        %4575 = vst [vmem:[%s363 + $0x238] sm:$0xff] %v4431
        %4576 = vst [vmem:[%s363 + $0x240] sm:$0xff] %v4432
        %4577 = vst [vmem:[%s363 + $0x248] sm:$0xff] %v4433
        %4578 = vst [vmem:[%s363 + $0x250] sm:$0xff] %v4434
        %4579 = vst [vmem:[%s363 + $0x258] sm:$0xff] %v4435
        %4580 = vst [vmem:[%s363 + $0x260] sm:$0xff] %v4436
        %4581 = vst [vmem:[%s363 + $0x268] sm:$0xff] %v4437
        %4582 = vst [vmem:[%s363 + $0x270] sm:$0xff] %v4438
        %4583 = vst [vmem:[%s363 + $0x278] sm:$0xff] %v4439
        %4584 = vst [vmem:[%s363 + $0x280] sm:$0xff] %v4440
        %4585 = vst [vmem:[%s363 + $0x288] sm:$0xff] %v4441
        %4586 = vst [vmem:[%s363 + $0x290] sm:$0xff] %v4442
        %4587 = vst [vmem:[%s363 + $0x298] sm:$0xff] %v4443
        %4588 = vst [vmem:[%s363 + $0x2a0] sm:$0xff] %v4444
        %4589 = vst [vmem:[%s363 + $0x2a8] sm:$0xff] %v4445
        %4590 = vst [vmem:[%s363 + $0x2b0] sm:$0xff] %v4446
        %4591 = vst [vmem:[%s363 + $0x2b8] sm:$0xff] %v4447
        %4592 = vst [vmem:[%s363 + $0x2c0] sm:$0xff] %v4448
        %4593 = vst [vmem:[%s363 + $0x2c8] sm:$0xff] %v4449
        %4594 = vst [vmem:[%s363 + $0x2d0] sm:$0xff] %v4450
        %4595 = vst [vmem:[%s363 + $0x2d8] sm:$0xff] %v4451
        %4596 = vst [vmem:[%s363 + $0x2e0] sm:$0xff] %v4452
        %4597 = vst [vmem:[%s363 + $0x2e8] sm:$0xff] %v4453
        %4598 = vst [vmem:[%s363 + $0x2f0] sm:$0xff] %v4454
        %4599 = vst [vmem:[%s363 + $0x2f8] sm:$0xff] %v4455
        %4600 = vst [vmem:[%s363 + $0x300] sm:$0xff] %v4456
        %4601 = vst [vmem:[%s363 + $0x308] sm:$0xff] %v4457
        %4602 = vst [vmem:[%s363 + $0x310] sm:$0xff] %v4458
        %4603 = vst [vmem:[%s363 + $0x318] sm:$0xff] %v4459
        %4604 = vst [vmem:[%s363 + $0x320] sm:$0xff] %v4460
        %4605 = vst [vmem:[%s363 + $0x328] sm:$0xff] %v4461
        %4606 = vst [vmem:[%s363 + $0x330] sm:$0xff] %v4462
        %4607 = vst [vmem:[%s363 + $0x338] sm:$0xff] %v4463
        %4608 = vst [vmem:[%s363 + $0x340] sm:$0xff] %v4464
        %4609 = vst [vmem:[%s363 + $0x348] sm:$0xff] %v4465
        %4610 = vst [vmem:[%s363 + $0x350] sm:$0xff] %v4466
        %4611 = vst [vmem:[%s363 + $0x358] sm:$0xff] %v4467
        %4612 = vst [vmem:[%s363 + $0x360] sm:$0xff] %v4468
        %4613 = vst [vmem:[%s363 + $0x368] sm:$0xff] %v4469
        %4614 = vst [vmem:[%s363 + $0x370] sm:$0xff] %v4470
        %4615 = vst [vmem:[%s363 + $0x378] sm:$0xff] %v4471
        %4616 = vst [vmem:[%s363 + $0x380] sm:$0xff] %v4472
        %4617 = vst [vmem:[%s363 + $0x388] sm:$0xff] %v4473
        %4618 = vst [vmem:[%s363 + $0x390] sm:$0xff] %v4474
        %4619 = vst [vmem:[%s363 + $0x398] sm:$0xff] %v4475
        %4620 = vst [vmem:[%s363 + $0x3a0] sm:$0xff] %v4476
        %4621 = vst [vmem:[%s363 + $0x3a8] sm:$0xff] %v4477
        %4622 = vst [vmem:[%s363 + $0x3b0] sm:$0xff] %v4478
        %4623 = vst [vmem:[%s363 + $0x3b8] sm:$0xff] %v4479
        %4624 = vst [vmem:[%s363 + $0x3c0] sm:$0xff] %v4480
        %4625 = vst [vmem:[%s363 + $0x3c8] sm:$0xff] %v4481
        %4626 = vst [vmem:[%s363 + $0x3d0] sm:$0xff] %v4482
        %4627 = vst [vmem:[%s363 + $0x3d8] sm:$0xff] %v4483
        %4628 = vst [vmem:[%s363 + $0x3e0] sm:$0xff] %v4484
        %4629 = vst [vmem:[%s363 + $0x3e8] sm:$0xff] %v4485
        %4630 = vst [vmem:[%s363 + $0x3f0] sm:$0xff] %v4486
        %4631 = vst [vmem:[%s363 + $0x3f8] sm:$0xff] %v4487
        %4632 = vst [vmem:[%s363 + $0x400] sm:$0xff] %v4488
        %4633 = vst [vmem:[%s363 + $0x408] sm:$0xff] %v4489
        %4634 = vst [vmem:[%s363 + $0x410] sm:$0xff] %v4490
        %4635 = vst [vmem:[%s363 + $0x418] sm:$0xff] %v4491
        %4636 = vst [vmem:[%s363 + $0x420] sm:$0xff] %v4492
        %4637 = vst [vmem:[%s363 + $0x428] sm:$0xff] %v4493
        %4638 = vst [vmem:[%s363 + $0x430] sm:$0xff] %v4494
        %4639 = vst [vmem:[%s363 + $0x438] sm:$0xff] %v4495
        %4640 = vst [vmem:[%s363 + $0x440] sm:$0xff] %v4496
        %4641 = vst [vmem:[%s363 + $0x448] sm:$0xff] %v4497
        %4642 = vst [vmem:[%s363 + $0x450] sm:$0xff] %v4498
        %4643 = vst [vmem:[%s363 + $0x458] sm:$0xff] %v4499
        %4644 = vst [vmem:[%s363 + $0x460] sm:$0xff] %v4500
        %4645 = vst [vmem:[%s363 + $0x468] sm:$0xff] %v4501
        %4646 = vst [vmem:[%s363 + $0x470] sm:$0xff] %v4502
        %4647 = vst [vmem:[%s363 + $0x478] sm:$0xff] %v4503
        %s4648 = sand.u32 %s172, 1
        %s4649 = scalar_lea.sflag [#allocation4], %s4648
        %s4650 = sand.u32 %s172, 1
        %s4651 = smul.addr %s4650, 1152
        %s4652 = scalar_lea.vmem [#allocation13], %s4651
        // Predicated region
        $region69: #{tpu_custom_call.1} parent=43 // pred_check
          %p4653 = pneg %p182
        $region70: #{tpu_custom_call.1} parent=43 // pred_check_branch
          %4655 = sbr.rel (%p4653) target = $region72
        $region71: #{tpu_custom_call.1} parent=43 // pred_region
          %s4656 = smul.u32 24, %s28
          %s4658 = ssub.s32 18432, 18432
          %4659 = vsyncadd %s4649, %s4658
          %s4660 = smul.addr %s4656, 6
          %s4661 = smul.addr %s4660, 128
          %s4662 = scalar_lea.hbm %s6, %s4661
          %s4663 = sshll.u32 %s4652, 4
          %s4664 = int_to_ptr.vmem [resolvable:$true] %s4663
          %4669 = dma.vmem_to_hbm [thread:$0]  %s4664, 18432, %s4662, %s4649, 768, 768, 48
        $region72: #{tpu_custom_call.1} parent=43 // pred_fallthru
          _
      $region44: #{tpu_custom_call.1} parent=5 // pred_fallthru
        _
      %p4670 = scmp.le.s32.totalorder 2, %s23
      // Predicated region
      $region73: #{tpu_custom_call.1} parent=5 // pred_check
        %p4671 = pneg %p4670
      $region74: #{tpu_custom_call.1} parent=5 // pred_check_branch
        %4673 = sbr.rel (%p4671) target = $region76
      $region75: #{tpu_custom_call.1} parent=5 // pred_region
        %s4674 = ssub.s32 %s23, 2
        // Predicated region
        $region77: #{tpu_custom_call.1} parent=75 // pred_check
          %p4675 = pneg %p188
        $region78: #{tpu_custom_call.1} parent=75 // pred_check_branch
          %4677 = sbr.rel (%p4675) target = $region80
        $region79: #{tpu_custom_call.1} parent=75 // pred_region
          %s4678 = sand.u32 %s173, 1
          %s4679 = scalar_lea.sflag [#allocation4], %s4678
          %s4680 = sand.u32 %s173, 1
          %s4681 = smul.addr %s4680, 1152
          %s4682 = scalar_lea.vmem [#allocation13], %s4681
          %4683 = dma.done %s4679, 18432
        $region80: #{tpu_custom_call.1} parent=75 // pred_fallthru
          _
      $region76: #{tpu_custom_call.1} parent=5 // pred_fallthru
        _
    $region6: #{tpu_custom_call.1} parent=1 // loop_footer
      %s27 = sadd.s32 1, %s23
    $region7: #{tpu_custom_call.1} parent=1 // loop_footer_branch
      %22 = sbr.rel target = $region3
    $region8: #{tpu_custom_call.1} parent=1 // loop_exit
      _
    %4684 = vsyncpa [#allocation3], 1
    %s4685 = scalar_lea.sflag [#allocation3], 1
    %4686 = vsyncpa %s4685, 1
    %4687 = vsyncpa [#allocation6], 1
    %4688 = vsyncpa [#allocation9], 1
    %s4689 = scalar_lea.sflag [#allocation9], 1
    %4690 = vsyncpa %s4689, 1
    %4691 = vsyncpa [#allocation12], 1
    %4692 = vsyncpa [#allocation4], 1
    %s4693 = scalar_lea.sflag [#allocation4], 1
    %4694 = vsyncpa %s4693, 1

</llo_original>
